<compile_context>
chip_gen: v6e
topology: v6e:2x2x1
jax: 0.10.0
libtpu: 0.0.40
codegen_flags: <defaults>
</compile_context>

<pallas_src>
import numpy as np
import jax
import jax.numpy as jnp
from jax import lax
from jax.experimental import pallas as pl
from jax.experimental.pallas import tpu as pltpu

# ----------------------------- hyper-parameters ------------------------------
N_SRC_VOCAB = 50
D_WORD_VEC = 32
D_MODEL = 32
N_LAYERS = 2
N_HEAD = 2
D_K = 16
D_V = 16
D_INNER = 64
PAD_IDX = 0
N_POSITION = 200
EPS = 1e-6

B = 2
S = 8
BS = B * S

# ------------------------- packed parameter-slab layout -----------------------
# One (TOTAL_ROWS, 128) f32 slab holds everything static; static Python offsets are
# shared between the init-time packer and the kernel (traced with static slices).
EMB_ROWS_PAD = ((N_SRC_VOCAB + 7) // 8) * 8          # 56 (rows 50:56 stay zero)
HK = N_HEAD * D_K                                     # 32
# rows 0:N_POSITION  -> cols 0:32 tab_x | 32:64 tab_y | 64:96 tab_page | 96:128 emb
R_LN0G = N_POSITION                                   # 200: ln0 gamma (cols 0:32)
R_LN0B = N_POSITION + 1                               # 201: ln0 beta
R_SMASK = N_POSITION + 8                              # 208: (BS,BS) block-diag mask
R_LAYER0 = R_SMASK + ((BS + 7) // 8) * 8              # 224
# per-layer block (relative offsets):
#   +0   .. +32  : w_qkv (32,96) in cols 0:96 ; wo (32,32) in cols 96:128
#   +32  .. +40  : 8 vector rows: b_qkv, bo, ln1_g, ln1_b, b1, b2, ln2_g, ln2_b
#   +40  .. +72  : w1 (32,64) cols 0:64
#   +72  .. +136 : w2 (64,32) cols 0:32
OFF_VECS = D_MODEL                                    # 32
OFF_W1 = OFF_VECS + 8                                 # 40
OFF_W2 = OFF_W1 + D_MODEL                             # 72
LAYER_STRIDE = OFF_W2 + D_INNER                       # 136
TOTAL_ROWS = R_LAYER0 + N_LAYERS * LAYER_STRIDE       # 496  (~254 KB -> VMEM resident)


# --------------------------------- kernel ------------------------------------
def _ln(y, g, b):
    mean = jnp.mean(y, axis=-1, keepdims=True)
    var = jnp.mean((y - mean) ** 2, axis=-1, keepdims=True)
    return (y - mean) * lax.rsqrt(var + EPS) * g + b


def encoder_kernel(slab_ref, idx_ref, kv_ref, o_ref):
    f32 = jnp.float32
    idx = idx_ref[...]                                  # (BS, 4) int32

    # --- embedding + positional gathers as one-hot MXU matmuls (in-kernel) ----
    def gather(col, n_rows, c0, c1):
        oh = (idx[:, col:col + 1] ==
              lax.broadcasted_iota(jnp.int32, (BS, n_rows), 1)).astype(f32)
        return jnp.dot(oh, slab_ref[0:n_rows, c0:c1], preferred_element_type=f32)

    x = (gather(0, EMB_ROWS_PAD, 96, 128)               # word embedding (pad row = 0)
         + gather(1, N_POSITION, 0, 32)                 # sinusoid_x[pos_x]
         + gather(2, N_POSITION, 32, 64)                # sinusoid_y[pos_y]
         + gather(3, N_POSITION, 64, 96))               # sinusoid_page[pos_page]
    # dropout(p=0.1) is identity at inference time.
    x = _ln(x, slab_ref[R_LN0G:R_LN0G + 1, 0:D_MODEL],
            slab_ref[R_LN0B:R_LN0B + 1, 0:D_MODEL])

    # --- additive attention mask: static block-diag part (from slab) + key-valid
    keymask = jnp.where(kv_ref[...] != 0, 0.0, -1e9).astype(f32)      # (1, BS)
    addmask = slab_ref[R_SMASK:R_SMASK + BS, 0:BS] + keymask          # (BS, BS)

    scale = 1.0 / (D_K ** 0.5)

    for li in range(N_LAYERS):                           # static unroll over layers
        base = R_LAYER0 + li * LAYER_STRIDE
        wqkv = slab_ref[base:base + D_MODEL, 0:3 * HK]                # (32, 96)
        wo = slab_ref[base:base + N_HEAD * D_V, 96:128]               # (32, 32)
        vec = base + OFF_VECS
        bqkv = slab_ref[vec + 0:vec + 1, 0:3 * HK]
        bo = slab_ref[vec + 1:vec + 2, 0:D_MODEL]
        g1 = slab_ref[vec + 2:vec + 3, 0:D_MODEL]
        be1 = slab_ref[vec + 3:vec + 4, 0:D_MODEL]
        b1 = slab_ref[vec + 4:vec + 5, 0:D_INNER]
        b2 = slab_ref[vec + 5:vec + 6, 0:D_MODEL]
        g2 = slab_ref[vec + 6:vec + 7, 0:D_MODEL]
        be2 = slab_ref[vec + 7:vec + 8, 0:D_MODEL]
        w1 = slab_ref[base + OFF_W1:base + OFF_W1 + D_MODEL, 0:D_INNER]   # (32, 64)
        w2 = slab_ref[base + OFF_W2:base + OFF_W2 + D_INNER, 0:D_MODEL]   # (64, 32)

        # Fused Q/K/V projection on the flattened (B*S, D) activation.
        qkv = jnp.dot(x, wqkv, preferred_element_type=f32) + bqkv         # (BS, 96)

        proj = None
        for h in range(N_HEAD):                          # static unroll over heads
            qh = qkv[:, h * D_K:(h + 1) * D_K]
            kh = qkv[:, HK + h * D_K:HK + (h + 1) * D_K]
            vh = qkv[:, 2 * HK + h * D_V:2 * HK + (h + 1) * D_V]
            # scores = q @ k^T without materializing a transposed copy of k
            s = lax.dot_general(qh, kh, (((1,), (1,)), ((), ())),
                                preferred_element_type=f32) * scale        # (BS, BS)
            s = s + addmask
            s = s - jnp.max(s, axis=-1, keepdims=True)
            p = jnp.exp(s)
            p = p * pl.reciprocal(jnp.sum(p, axis=-1, keepdims=True), approx=True)
            oh_ = jnp.dot(p, vh, preferred_element_type=f32)               # (BS, D_V)
            contrib = jnp.dot(oh_, wo[h * D_V:(h + 1) * D_V, :],
                              preferred_element_type=f32)                  # (BS, D)
            proj = contrib if proj is None else proj + contrib
        # dropout identity; residual + post-LayerNorm
        x = _ln(proj + bo + x, g1, be1)

        # position-wise FFN
        h1 = jnp.maximum(jnp.dot(x, w1, preferred_element_type=f32) + b1, 0.0)
        y = jnp.dot(h1, w2, preferred_element_type=f32) + b2
        x = _ln(y + x, g2, be2)

    # 32-lane store is a masked vst, but it's 2 KB once per forward -> not worth a
    # lane-dense relayout (per perf review).
    o_ref[...] = x


# -------------------------------- wrapper -------------------------------------
@jax.jit
def encoder_forward(slab, src_seq, src_mask, pos_x, pos_y, pos_page):
    # Only per-call glue left in XLA: pack the 4 index vectors and the key-valid row.
    idx = jnp.stack([src_seq.reshape(-1), pos_x.reshape(-1),
                     pos_y.reshape(-1), pos_page.reshape(-1)],
                    axis=1).astype(jnp.int32)                        # (BS, 4)
    keyvalid = src_mask.reshape(1, BS).astype(jnp.int32)             # (1, BS)

    vmem_spec = pl.BlockSpec(memory_space=pltpu.MemorySpace.VMEM)
    out2 = pl.pallas_call(
        encoder_kernel,
        out_shape=jax.ShapeDtypeStruct((BS, D_MODEL), jnp.float32),
        in_specs=[vmem_spec, vmem_spec, vmem_spec],
        out_specs=vmem_spec,
    )(slab, idx, keyvalid)
    return out2.reshape(B, S, D_MODEL)


# ---------------------------- params / pos-encoding ---------------------------
def sinusoid_table(n_position, d_hid):
    pos = np.arange(n_position)[:, None].astype(np.float64)
    i = np.arange(d_hid)[None, :]
    angle = pos / np.power(10000.0, 2.0 * (i // 2) / d_hid)
    table = np.zeros((n_position, d_hid))
    table[:, 0::2] = np.sin(angle[:, 0::2])
    table[:, 1::2] = np.cos(angle[:, 1::2])
    return jnp.asarray(table, jnp.float32)


def init_params(key):
    def normal(k, shape, scale):
        return scale * jax.random.normal(k, shape, dtype=jnp.float32)

    keys = iter(jax.random.split(key, 64))
    emb = normal(next(keys), (N_SRC_VOCAB, D_WORD_VEC), 0.05)
    emb = emb.at[PAD_IDX].set(0.0)                      # padding_idx row is zero

    # TODO(synk): position_enc is an injected module in the original code; modeled
    # here as additive sinusoid tables indexed by x / y / page positions.
    params = {
        "emb": emb,
        "tab_x": sinusoid_table(N_POSITION, D_MODEL),
        "tab_y": sinusoid_table(N_POSITION, D_MODEL),
        "tab_page": sinusoid_table(N_POSITION, D_MODEL),
        "ln0_g": jnp.ones((D_MODEL,), jnp.float32),
        "ln0_b": jnp.zeros((D_MODEL,), jnp.float32),
        "layers": [],
    }
    for _ in range(N_LAYERS):
        lp = {
            "wq": normal(next(keys), (D_MODEL, N_HEAD * D_K), 0.05),
            "bq": normal(next(keys), (N_HEAD * D_K,), 0.01),
            "wk": normal(next(keys), (D_MODEL, N_HEAD * D_K), 0.05),
            "bk": normal(next(keys), (N_HEAD * D_K,), 0.01),
            "wv": normal(next(keys), (D_MODEL, N_HEAD * D_V), 0.05),
            "bv": normal(next(keys), (N_HEAD * D_V,), 0.01),
            "wo": normal(next(keys), (N_HEAD * D_V, D_MODEL), 0.05),
            "bo": normal(next(keys), (D_MODEL,), 0.01),
            "ln1_g": jnp.ones((D_MODEL,), jnp.float32),
            "ln1_b": jnp.zeros((D_MODEL,), jnp.float32),
            "w1": normal(next(keys), (D_MODEL, D_INNER), 0.05),
            "b1": normal(next(keys), (D_INNER,), 0.01),
            "w2": normal(next(keys), (D_INNER, D_MODEL), 0.05),
            "b2": normal(next(keys), (D_MODEL,), 0.01),
            "ln2_g": jnp.ones((D_MODEL,), jnp.float32),
            "ln2_b": jnp.zeros((D_MODEL,), jnp.float32),
        }
        params["layers"].append(lp)
    return params


def pack_params(params):
    """One-time, init-side packing of every parameter into a single (496,128) slab."""
    slab = np.zeros((TOTAL_ROWS, 128), np.float32)
    slab[0:N_POSITION, 0:32] = np.asarray(params["tab_x"])
    slab[0:N_POSITION, 32:64] = np.asarray(params["tab_y"])
    slab[0:N_POSITION, 64:96] = np.asarray(params["tab_page"])
    slab[0:N_SRC_VOCAB, 96:128] = np.asarray(params["emb"])
    slab[R_LN0G, 0:D_MODEL] = np.asarray(params["ln0_g"])
    slab[R_LN0B, 0:D_MODEL] = np.asarray(params["ln0_b"])
    # static block-diagonal part of the flattened (BS,BS) additive attention mask
    bid = np.repeat(np.arange(B), S)
    slab[R_SMASK:R_SMASK + BS, 0:BS] = np.where(bid[:, None] == bid[None, :], 0.0, -1e9)
    for li, lp in enumerate(params["layers"]):
        base = R_LAYER0 + li * LAYER_STRIDE
        slab[base:base + D_MODEL, 0:3 * HK] = np.concatenate(
            [np.asarray(lp["wq"]), np.asarray(lp["wk"]), np.asarray(lp["wv"])], axis=1)
        slab[base:base + N_HEAD * D_V, 96:128] = np.asarray(lp["wo"])
        vec = base + OFF_VECS
        slab[vec + 0, 0:3 * HK] = np.concatenate(
            [np.asarray(lp["bq"]), np.asarray(lp["bk"]), np.asarray(lp["bv"])])
        slab[vec + 1, 0:D_MODEL] = np.asarray(lp["bo"])
        slab[vec + 2, 0:D_MODEL] = np.asarray(lp["ln1_g"])
        slab[vec + 3, 0:D_MODEL] = np.asarray(lp["ln1_b"])
        slab[vec + 4, 0:D_INNER] = np.asarray(lp["b1"])
        slab[vec + 5, 0:D_MODEL] = np.asarray(lp["b2"])
        slab[vec + 6, 0:D_MODEL] = np.asarray(lp["ln2_g"])
        slab[vec + 7, 0:D_MODEL] = np.asarray(lp["ln2_b"])
        slab[base + OFF_W1:base + OFF_W1 + D_MODEL, 0:D_INNER] = np.asarray(lp["w1"])
        slab[base + OFF_W2:base + OFF_W2 + D_INNER, 0:D_MODEL] = np.asarray(lp["w2"])
    return jnp.asarray(slab)


# ------------------------------ pure-JAX reference ----------------------------
def _ln_ref(y, g, b):
    mean = jnp.mean(y, axis=-1, keepdims=True)
    var = jnp.mean((y - mean) ** 2, axis=-1, keepdims=True)
    return (y - mean) / jnp.sqrt(var + EPS) * g + b


def encoder_ref(params, src_seq, src_mask, pos_x, pos_y, pos_page):
    with jax.default_matmul_precision("highest"):
        emb = params["emb"][src_seq]
        x = emb + params["tab_x"][pos_x] + params["tab_y"][pos_y] + params["tab_page"][pos_page]
        x = _ln_ref(x, params["ln0_g"], params["ln0_b"])
        mask = src_mask[:, :, None, :]                               # (B,1,1,S)
        for lp in params["layers"]:
            q = (x @ lp["wq"] + lp["bq"]).reshape(B, S, N_HEAD, D_K).transpose(0, 2, 1, 3)
            k = (x @ lp["wk"] + lp["bk"]).reshape(B, S, N_HEAD, D_K).transpose(0, 2, 1, 3)
            v = (x @ lp["wv"] + lp["bv"]).reshape(B, S, N_HEAD, D_V).transpose(0, 2, 1, 3)
            attn = jnp.einsum("bhqd,bhkd->bhqk", q, k) / (D_K ** 0.5)
            attn = jnp.where(mask, attn, -1e9)
            attn = jax.nn.softmax(attn, axis=-1)
            out = jnp.einsum("bhqk,bhkd->bhqd", attn, v)
            out = out.transpose(0, 2, 1, 3).reshape(B, S, N_HEAD * D_V)
            out = out @ lp["wo"] + lp["bo"]
            x = _ln_ref(out + x, lp["ln1_g"], lp["ln1_b"])
            h = jax.nn.relu(x @ lp["w1"] + lp["b1"])
            y = h @ lp["w2"] + lp["b2"]
            x = _ln_ref(y + x, lp["ln2_g"], lp["ln2_b"])
        return x


# ----------------------------------- main --------------------------------------
if __name__ == "__main__":
    key = jax.random.PRNGKey(0)
    kp, ks, kx, ky, kpage = jax.random.split(key, 5)
    params = init_params(kp)
    slab = pack_params(params)                          # one-time param packing

    src_seq = jax.random.randint(ks, (B, S), 1, N_SRC_VOCAB, dtype=jnp.int32)
    src_seq = src_seq.at[1, S - 2:].set(PAD_IDX)        # some padding tokens
    src_mask = (src_seq != PAD_IDX)[:, None, :]         # (B, 1, S) bool
    pos_x = jax.random.randint(kx, (B, S), 0, N_POSITION, dtype=jnp.int32)
    pos_y = jax.random.randint(ky, (B, S), 0, N_POSITION, dtype=jnp.int32)
    pos_page = jax.random.randint(kpage, (B, S), 0, 8, dtype=jnp.int32)

    out = encoder_forward(slab, src_seq, src_mask, pos_x, pos_y, pos_page)
    out = jax.block_until_ready(out)

    ref = encoder_ref(params, src_seq, src_mask, pos_x, pos_y, pos_page)
    np.testing.assert_allclose(np.asarray(out), np.asarray(ref), atol=5e-3, rtol=5e-3)
    print("KERNEL_OK")
</pallas_src>

<mosaic_0001>
module attributes {stable_mosaic.version = 11 : i64} {
  func.func @encoder_kernel(%arg0: memref<496x128xf32, #tpu.memory_space<vmem>>, %arg1: memref<16x4xi32, #tpu.memory_space<vmem>>, %arg2: memref<1x16xi32, #tpu.memory_space<vmem>>, %arg3: memref<16x32xf32, #tpu.memory_space<vmem>>) attributes {dimension_semantics = [], scalar_prefetch = 0 : i64, scratch_operands = 0 : i64, tpu.core_type = #tpu.core_type<tc>} {
    %c0 = arith.constant 0 : index
    %c0_0 = arith.constant 0 : index
    %0 = vector.load %arg1[%c0, %c0_0] : memref<16x4xi32, #tpu.memory_space<vmem>>, vector<16x4xi32>
    %1 = vector.extract_strided_slice %0 {offsets = [0, 0], sizes = [16, 1], strides = [1, 1]} : vector<16x4xi32> to vector<16x1xi32>
    %2 = tpu.iota {dimensions = array<i32: 1>} : vector<16x56xi32>
    %3 = vector.broadcast %1 : vector<16x1xi32> to vector<16x56xi32>
    %4 = arith.cmpi eq, %3, %2 : vector<16x56xi32>
    %5 = arith.extui %4 : vector<16x56xi1> to vector<16x56xi32>
    %6 = arith.sitofp %5 : vector<16x56xi32> to vector<16x56xf32>
    %c0_1 = arith.constant 0 : index
    %c96 = arith.constant 96 : index
    %7 = vector.load %arg0[%c0_1, %c96] : memref<496x128xf32, #tpu.memory_space<vmem>>, vector<56x32xf32>
    %cst = arith.constant dense<0.000000e+00> : vector<16x32xf32>
    %8 = tpu.matmul %6, %7, %cst {dimension_numbers = #tpu.dot_dimension_numbers<[1], [0], [0], [1], [0, 0, 1, 1], [], []>} : vector<16x56xf32>, vector<56x32xf32>, vector<16x32xf32> -> vector<16x32xf32>
    %9 = vector.extract_strided_slice %0 {offsets = [0, 1], sizes = [16, 1], strides = [1, 1]} : vector<16x4xi32> to vector<16x1xi32>
    %10 = tpu.iota {dimensions = array<i32: 1>} : vector<16x200xi32>
    %11 = vector.broadcast %9 : vector<16x1xi32> to vector<16x200xi32>
    %12 = arith.cmpi eq, %11, %10 : vector<16x200xi32>
    %13 = arith.extui %12 : vector<16x200xi1> to vector<16x200xi32>
    %14 = arith.sitofp %13 : vector<16x200xi32> to vector<16x200xf32>
    %c0_2 = arith.constant 0 : index
    %c0_3 = arith.constant 0 : index
    %15 = vector.load %arg0[%c0_2, %c0_3] : memref<496x128xf32, #tpu.memory_space<vmem>>, vector<200x32xf32>
    %cst_4 = arith.constant dense<0.000000e+00> : vector<16x32xf32>
    %16 = tpu.matmul %14, %15, %cst_4 {dimension_numbers = #tpu.dot_dimension_numbers<[1], [0], [0], [1], [0, 0, 1, 1], [], []>} : vector<16x200xf32>, vector<200x32xf32>, vector<16x32xf32> -> vector<16x32xf32>
    %17 = arith.addf %8, %16 : vector<16x32xf32>
    %18 = vector.extract_strided_slice %0 {offsets = [0, 2], sizes = [16, 1], strides = [1, 1]} : vector<16x4xi32> to vector<16x1xi32>
    %19 = tpu.iota {dimensions = array<i32: 1>} : vector<16x200xi32>
    %20 = vector.broadcast %18 : vector<16x1xi32> to vector<16x200xi32>
    %21 = arith.cmpi eq, %20, %19 : vector<16x200xi32>
    %22 = arith.extui %21 : vector<16x200xi1> to vector<16x200xi32>
    %23 = arith.sitofp %22 : vector<16x200xi32> to vector<16x200xf32>
    %c0_5 = arith.constant 0 : index
    %c32 = arith.constant 32 : index
    %24 = vector.load %arg0[%c0_5, %c32] : memref<496x128xf32, #tpu.memory_space<vmem>>, vector<200x32xf32>
    %cst_6 = arith.constant dense<0.000000e+00> : vector<16x32xf32>
    %25 = tpu.matmul %23, %24, %cst_6 {dimension_numbers = #tpu.dot_dimension_numbers<[1], [0], [0], [1], [0, 0, 1, 1], [], []>} : vector<16x200xf32>, vector<200x32xf32>, vector<16x32xf32> -> vector<16x32xf32>
    %26 = arith.addf %17, %25 : vector<16x32xf32>
    %27 = vector.extract_strided_slice %0 {offsets = [0, 3], sizes = [16, 1], strides = [1, 1]} : vector<16x4xi32> to vector<16x1xi32>
    %28 = tpu.iota {dimensions = array<i32: 1>} : vector<16x200xi32>
    %29 = vector.broadcast %27 : vector<16x1xi32> to vector<16x200xi32>
    %30 = arith.cmpi eq, %29, %28 : vector<16x200xi32>
    %31 = arith.extui %30 : vector<16x200xi1> to vector<16x200xi32>
    %32 = arith.sitofp %31 : vector<16x200xi32> to vector<16x200xf32>
    %c0_7 = arith.constant 0 : index
    %c64 = arith.constant 64 : index
    %33 = vector.load %arg0[%c0_7, %c64] : memref<496x128xf32, #tpu.memory_space<vmem>>, vector<200x32xf32>
    %cst_8 = arith.constant dense<0.000000e+00> : vector<16x32xf32>
    %34 = tpu.matmul %32, %33, %cst_8 {dimension_numbers = #tpu.dot_dimension_numbers<[1], [0], [0], [1], [0, 0, 1, 1], [], []>} : vector<16x200xf32>, vector<200x32xf32>, vector<16x32xf32> -> vector<16x32xf32>
    %35 = arith.addf %26, %34 : vector<16x32xf32>
    %c200 = arith.constant 200 : index
    %c0_9 = arith.constant 0 : index
    %36 = vector.load %arg0[%c200, %c0_9] : memref<496x128xf32, #tpu.memory_space<vmem>>, vector<1x32xf32>
    %c201 = arith.constant 201 : index
    %c0_10 = arith.constant 0 : index
    %37 = vector.load %arg0[%c201, %c0_10] : memref<496x128xf32, #tpu.memory_space<vmem>>, vector<1x32xf32>
    %cst_11 = arith.constant dense<0.000000e+00> : vector<16xf32>
    %38 = vector.multi_reduction <add>, %35, %cst_11 [1] : vector<16x32xf32> to vector<16xf32>
    %39 = vector.shape_cast %38 : vector<16xf32> to vector<16x1xf32>
    %cst_12 = arith.constant 3.200000e+01 : f32
    %40 = vector.broadcast %cst_12 : f32 to vector<16x1xf32>
    %41 = arith.divf %39, %40 : vector<16x1xf32>
    %42 = vector.broadcast %41 : vector<16x1xf32> to vector<16x32xf32>
    %43 = arith.subf %35, %42 : vector<16x32xf32>
    %44 = arith.mulf %43, %43 : vector<16x32xf32>
    %cst_13 = arith.constant dense<0.000000e+00> : vector<16xf32>
    %45 = vector.multi_reduction <add>, %44, %cst_13 [1] : vector<16x32xf32> to vector<16xf32>
    %46 = vector.shape_cast %45 : vector<16xf32> to vector<16x1xf32>
    %cst_14 = arith.constant 3.200000e+01 : f32
    %47 = vector.broadcast %cst_14 : f32 to vector<16x1xf32>
    %48 = arith.divf %46, %47 : vector<16x1xf32>
    %49 = vector.broadcast %41 : vector<16x1xf32> to vector<16x32xf32>
    %50 = arith.subf %35, %49 : vector<16x32xf32>
    %cst_15 = arith.constant 9.99999997E-7 : f32
    %51 = vector.broadcast %cst_15 : f32 to vector<16x1xf32>
    %52 = arith.addf %48, %51 : vector<16x1xf32>
    %53 = math.rsqrt %52 : vector<16x1xf32>
    %54 = vector.broadcast %53 : vector<16x1xf32> to vector<16x32xf32>
    %55 = arith.mulf %50, %54 : vector<16x32xf32>
    %56 = vector.broadcast %36 : vector<1x32xf32> to vector<16x32xf32>
    %57 = arith.mulf %55, %56 : vector<16x32xf32>
    %58 = vector.broadcast %37 : vector<1x32xf32> to vector<16x32xf32>
    %59 = arith.addf %57, %58 : vector<16x32xf32>
    %c0_16 = arith.constant 0 : index
    %c0_17 = arith.constant 0 : index
    %60 = vector.load %arg2[%c0_16, %c0_17] : memref<1x16xi32, #tpu.memory_space<vmem>>, vector<1x16xi32>
    %c0_i32 = arith.constant 0 : i32
    %61 = vector.broadcast %c0_i32 : i32 to vector<1x16xi32>
    %62 = arith.cmpi ne, %60, %61 : vector<1x16xi32>
    %cst_18 = arith.constant 0.000000e+00 : f32
    %cst_19 = arith.constant -1.000000e+09 : f32
    %63 = vector.broadcast %cst_18 : f32 to vector<1x16xf32>
    %64 = vector.broadcast %cst_19 : f32 to vector<1x16xf32>
    %65 = arith.select %62, %63, %64 : vector<1x16xi1>, vector<1x16xf32>
    %c208 = arith.constant 208 : index
    %c0_20 = arith.constant 0 : index
    %66 = vector.load %arg0[%c208, %c0_20] : memref<496x128xf32, #tpu.memory_space<vmem>>, vector<16x16xf32>
    %67 = vector.broadcast %65 : vector<1x16xf32> to vector<16x16xf32>
    %68 = arith.addf %66, %67 : vector<16x16xf32>
    %c224 = arith.constant 224 : index
    %c0_21 = arith.constant 0 : index
    %69 = vector.load %arg0[%c224, %c0_21] : memref<496x128xf32, #tpu.memory_space<vmem>>, vector<32x96xf32>
    %c224_22 = arith.constant 224 : index
    %c96_23 = arith.constant 96 : index
    %70 = vector.load %arg0[%c224_22, %c96_23] : memref<496x128xf32, #tpu.memory_space<vmem>>, vector<32x32xf32>
    %c256 = arith.constant 256 : index
    %c0_24 = arith.constant 0 : index
    %71 = vector.load %arg0[%c256, %c0_24] : memref<496x128xf32, #tpu.memory_space<vmem>>, vector<1x96xf32>
    %c257 = arith.constant 257 : index
    %c0_25 = arith.constant 0 : index
    %72 = vector.load %arg0[%c257, %c0_25] : memref<496x128xf32, #tpu.memory_space<vmem>>, vector<1x32xf32>
    %c258 = arith.constant 258 : index
    %c0_26 = arith.constant 0 : index
    %73 = vector.load %arg0[%c258, %c0_26] : memref<496x128xf32, #tpu.memory_space<vmem>>, vector<1x32xf32>
    %c259 = arith.constant 259 : index
    %c0_27 = arith.constant 0 : index
    %74 = vector.load %arg0[%c259, %c0_27] : memref<496x128xf32, #tpu.memory_space<vmem>>, vector<1x32xf32>
    %c260 = arith.constant 260 : index
    %c0_28 = arith.constant 0 : index
    %75 = vector.load %arg0[%c260, %c0_28] : memref<496x128xf32, #tpu.memory_space<vmem>>, vector<1x64xf32>
    %c261 = arith.constant 261 : index
    %c0_29 = arith.constant 0 : index
    %76 = vector.load %arg0[%c261, %c0_29] : memref<496x128xf32, #tpu.memory_space<vmem>>, vector<1x32xf32>
    %c262 = arith.constant 262 : index
    %c0_30 = arith.constant 0 : index
    %77 = vector.load %arg0[%c262, %c0_30] : memref<496x128xf32, #tpu.memory_space<vmem>>, vector<1x32xf32>
    %c263 = arith.constant 263 : index
    %c0_31 = arith.constant 0 : index
    %78 = vector.load %arg0[%c263, %c0_31] : memref<496x128xf32, #tpu.memory_space<vmem>>, vector<1x32xf32>
    %c264 = arith.constant 264 : index
    %c0_32 = arith.constant 0 : index
    %79 = vector.load %arg0[%c264, %c0_32] : memref<496x128xf32, #tpu.memory_space<vmem>>, vector<32x64xf32>
    %c296 = arith.constant 296 : index
    %c0_33 = arith.constant 0 : index
    %80 = vector.load %arg0[%c296, %c0_33] : memref<496x128xf32, #tpu.memory_space<vmem>>, vector<64x32xf32>
    %cst_34 = arith.constant dense<0.000000e+00> : vector<16x96xf32>
    %81 = tpu.matmul %59, %69, %cst_34 {dimension_numbers = #tpu.dot_dimension_numbers<[1], [0], [0], [1], [0, 0, 1, 1], [], []>} : vector<16x32xf32>, vector<32x96xf32>, vector<16x96xf32> -> vector<16x96xf32>
    %82 = vector.broadcast %71 : vector<1x96xf32> to vector<16x96xf32>
    %83 = arith.addf %81, %82 : vector<16x96xf32>
    %84 = vector.extract_strided_slice %83 {offsets = [0, 0], sizes = [16, 16], strides = [1, 1]} : vector<16x96xf32> to vector<16x16xf32>
    %85 = vector.extract_strided_slice %83 {offsets = [0, 32], sizes = [16, 16], strides = [1, 1]} : vector<16x96xf32> to vector<16x16xf32>
    %86 = vector.extract_strided_slice %83 {offsets = [0, 64], sizes = [16, 16], strides = [1, 1]} : vector<16x96xf32> to vector<16x16xf32>
    %cst_35 = arith.constant dense<0.000000e+00> : vector<16x16xf32>
    %87 = tpu.matmul %84, %85, %cst_35 {dimension_numbers = #tpu.dot_dimension_numbers<[1], [1], [0], [0], [0, 0, 1, 0], [], []>} : vector<16x16xf32>, vector<16x16xf32>, vector<16x16xf32> -> vector<16x16xf32>
    %cst_36 = arith.constant 2.500000e-01 : f32
    %88 = vector.broadcast %cst_36 : f32 to vector<16x16xf32>
    %89 = arith.mulf %87, %88 : vector<16x16xf32>
    %90 = arith.addf %89, %68 : vector<16x16xf32>
    %cst_37 = arith.constant dense<0xFF800000> : vector<16xf32>
    %91 = vector.multi_reduction <maximumf>, %90, %cst_37 [1] : vector<16x16xf32> to vector<16xf32>
    %92 = vector.shape_cast %91 : vector<16xf32> to vector<16x1xf32>
    %93 = vector.broadcast %92 : vector<16x1xf32> to vector<16x16xf32>
    %94 = arith.subf %90, %93 : vector<16x16xf32>
    %95 = math.exp %94 : vector<16x16xf32>
    %cst_38 = arith.constant dense<0.000000e+00> : vector<16xf32>
    %96 = vector.multi_reduction <add>, %95, %cst_38 [1] : vector<16x16xf32> to vector<16xf32>
    %97 = vector.shape_cast %96 : vector<16xf32> to vector<16x1xf32>
    %98 = tpu.reciprocal %97 {approx = true} : vector<16x1xf32> -> vector<16x1xf32>
    %99 = vector.broadcast %98 : vector<16x1xf32> to vector<16x16xf32>
    %100 = arith.mulf %95, %99 : vector<16x16xf32>
    %cst_39 = arith.constant dense<0.000000e+00> : vector<16x16xf32>
    %101 = tpu.matmul %100, %86, %cst_39 {dimension_numbers = #tpu.dot_dimension_numbers<[1], [0], [0], [1], [0, 0, 1, 1], [], []>} : vector<16x16xf32>, vector<16x16xf32>, vector<16x16xf32> -> vector<16x16xf32>
    %102 = vector.extract_strided_slice %70 {offsets = [0, 0], sizes = [16, 32], strides = [1, 1]} : vector<32x32xf32> to vector<16x32xf32>
    %cst_40 = arith.constant dense<0.000000e+00> : vector<16x32xf32>
    %103 = tpu.matmul %101, %102, %cst_40 {dimension_numbers = #tpu.dot_dimension_numbers<[1], [0], [0], [1], [0, 0, 1, 1], [], []>} : vector<16x16xf32>, vector<16x32xf32>, vector<16x32xf32> -> vector<16x32xf32>
    %104 = vector.extract_strided_slice %83 {offsets = [0, 16], sizes = [16, 16], strides = [1, 1]} : vector<16x96xf32> to vector<16x16xf32>
    %105 = vector.extract_strided_slice %83 {offsets = [0, 48], sizes = [16, 16], strides = [1, 1]} : vector<16x96xf32> to vector<16x16xf32>
    %106 = vector.extract_strided_slice %83 {offsets = [0, 80], sizes = [16, 16], strides = [1, 1]} : vector<16x96xf32> to vector<16x16xf32>
    %cst_41 = arith.constant dense<0.000000e+00> : vector<16x16xf32>
    %107 = tpu.matmul %104, %105, %cst_41 {dimension_numbers = #tpu.dot_dimension_numbers<[1], [1], [0], [0], [0, 0, 1, 0], [], []>} : vector<16x16xf32>, vector<16x16xf32>, vector<16x16xf32> -> vector<16x16xf32>
    %cst_42 = arith.constant 2.500000e-01 : f32
    %108 = vector.broadcast %cst_42 : f32 to vector<16x16xf32>
    %109 = arith.mulf %107, %108 : vector<16x16xf32>
    %110 = arith.addf %109, %68 : vector<16x16xf32>
    %cst_43 = arith.constant dense<0xFF800000> : vector<16xf32>
    %111 = vector.multi_reduction <maximumf>, %110, %cst_43 [1] : vector<16x16xf32> to vector<16xf32>
    %112 = vector.shape_cast %111 : vector<16xf32> to vector<16x1xf32>
    %113 = vector.broadcast %112 : vector<16x1xf32> to vector<16x16xf32>
    %114 = arith.subf %110, %113 : vector<16x16xf32>
    %115 = math.exp %114 : vector<16x16xf32>
    %cst_44 = arith.constant dense<0.000000e+00> : vector<16xf32>
    %116 = vector.multi_reduction <add>, %115, %cst_44 [1] : vector<16x16xf32> to vector<16xf32>
    %117 = vector.shape_cast %116 : vector<16xf32> to vector<16x1xf32>
    %118 = tpu.reciprocal %117 {approx = true} : vector<16x1xf32> -> vector<16x1xf32>
    %119 = vector.broadcast %118 : vector<16x1xf32> to vector<16x16xf32>
    %120 = arith.mulf %115, %119 : vector<16x16xf32>
    %cst_45 = arith.constant dense<0.000000e+00> : vector<16x16xf32>
    %121 = tpu.matmul %120, %106, %cst_45 {dimension_numbers = #tpu.dot_dimension_numbers<[1], [0], [0], [1], [0, 0, 1, 1], [], []>} : vector<16x16xf32>, vector<16x16xf32>, vector<16x16xf32> -> vector<16x16xf32>
    %122 = vector.extract_strided_slice %70 {offsets = [16, 0], sizes = [16, 32], strides = [1, 1]} : vector<32x32xf32> to vector<16x32xf32>
    %cst_46 = arith.constant dense<0.000000e+00> : vector<16x32xf32>
    %123 = tpu.matmul %121, %122, %cst_46 {dimension_numbers = #tpu.dot_dimension_numbers<[1], [0], [0], [1], [0, 0, 1, 1], [], []>} : vector<16x16xf32>, vector<16x32xf32>, vector<16x32xf32> -> vector<16x32xf32>
    %124 = arith.addf %103, %123 : vector<16x32xf32>
    %125 = vector.broadcast %72 : vector<1x32xf32> to vector<16x32xf32>
    %126 = arith.addf %124, %125 : vector<16x32xf32>
    %127 = arith.addf %126, %59 : vector<16x32xf32>
    %cst_47 = arith.constant dense<0.000000e+00> : vector<16xf32>
    %128 = vector.multi_reduction <add>, %127, %cst_47 [1] : vector<16x32xf32> to vector<16xf32>
    %129 = vector.shape_cast %128 : vector<16xf32> to vector<16x1xf32>
    %cst_48 = arith.constant 3.200000e+01 : f32
    %130 = vector.broadcast %cst_48 : f32 to vector<16x1xf32>
    %131 = arith.divf %129, %130 : vector<16x1xf32>
    %132 = vector.broadcast %131 : vector<16x1xf32> to vector<16x32xf32>
    %133 = arith.subf %127, %132 : vector<16x32xf32>
    %134 = arith.mulf %133, %133 : vector<16x32xf32>
    %cst_49 = arith.constant dense<0.000000e+00> : vector<16xf32>
    %135 = vector.multi_reduction <add>, %134, %cst_49 [1] : vector<16x32xf32> to vector<16xf32>
    %136 = vector.shape_cast %135 : vector<16xf32> to vector<16x1xf32>
    %cst_50 = arith.constant 3.200000e+01 : f32
    %137 = vector.broadcast %cst_50 : f32 to vector<16x1xf32>
    %138 = arith.divf %136, %137 : vector<16x1xf32>
    %139 = vector.broadcast %131 : vector<16x1xf32> to vector<16x32xf32>
    %140 = arith.subf %127, %139 : vector<16x32xf32>
    %cst_51 = arith.constant 9.99999997E-7 : f32
    %141 = vector.broadcast %cst_51 : f32 to vector<16x1xf32>
    %142 = arith.addf %138, %141 : vector<16x1xf32>
    %143 = math.rsqrt %142 : vector<16x1xf32>
    %144 = vector.broadcast %143 : vector<16x1xf32> to vector<16x32xf32>
    %145 = arith.mulf %140, %144 : vector<16x32xf32>
    %146 = vector.broadcast %73 : vector<1x32xf32> to vector<16x32xf32>
    %147 = arith.mulf %145, %146 : vector<16x32xf32>
    %148 = vector.broadcast %74 : vector<1x32xf32> to vector<16x32xf32>
    %149 = arith.addf %147, %148 : vector<16x32xf32>
    %cst_52 = arith.constant dense<0.000000e+00> : vector<16x64xf32>
    %150 = tpu.matmul %149, %79, %cst_52 {dimension_numbers = #tpu.dot_dimension_numbers<[1], [0], [0], [1], [0, 0, 1, 1], [], []>} : vector<16x32xf32>, vector<32x64xf32>, vector<16x64xf32> -> vector<16x64xf32>
    %151 = vector.broadcast %75 : vector<1x64xf32> to vector<16x64xf32>
    %152 = arith.addf %150, %151 : vector<16x64xf32>
    %cst_53 = arith.constant 0.000000e+00 : f32
    %153 = vector.broadcast %cst_53 : f32 to vector<16x64xf32>
    %154 = arith.maximumf %152, %153 : vector<16x64xf32>
    %cst_54 = arith.constant dense<0.000000e+00> : vector<16x32xf32>
    %155 = tpu.matmul %154, %80, %cst_54 {dimension_numbers = #tpu.dot_dimension_numbers<[1], [0], [0], [1], [0, 0, 1, 1], [], []>} : vector<16x64xf32>, vector<64x32xf32>, vector<16x32xf32> -> vector<16x32xf32>
    %156 = vector.broadcast %76 : vector<1x32xf32> to vector<16x32xf32>
    %157 = arith.addf %155, %156 : vector<16x32xf32>
    %158 = arith.addf %157, %149 : vector<16x32xf32>
    %cst_55 = arith.constant dense<0.000000e+00> : vector<16xf32>
    %159 = vector.multi_reduction <add>, %158, %cst_55 [1] : vector<16x32xf32> to vector<16xf32>
    %160 = vector.shape_cast %159 : vector<16xf32> to vector<16x1xf32>
    %cst_56 = arith.constant 3.200000e+01 : f32
    %161 = vector.broadcast %cst_56 : f32 to vector<16x1xf32>
    %162 = arith.divf %160, %161 : vector<16x1xf32>
    %163 = vector.broadcast %162 : vector<16x1xf32> to vector<16x32xf32>
    %164 = arith.subf %158, %163 : vector<16x32xf32>
    %165 = arith.mulf %164, %164 : vector<16x32xf32>
    %cst_57 = arith.constant dense<0.000000e+00> : vector<16xf32>
    %166 = vector.multi_reduction <add>, %165, %cst_57 [1] : vector<16x32xf32> to vector<16xf32>
    %167 = vector.shape_cast %166 : vector<16xf32> to vector<16x1xf32>
    %cst_58 = arith.constant 3.200000e+01 : f32
    %168 = vector.broadcast %cst_58 : f32 to vector<16x1xf32>
    %169 = arith.divf %167, %168 : vector<16x1xf32>
    %170 = vector.broadcast %162 : vector<16x1xf32> to vector<16x32xf32>
    %171 = arith.subf %158, %170 : vector<16x32xf32>
    %cst_59 = arith.constant 9.99999997E-7 : f32
    %172 = vector.broadcast %cst_59 : f32 to vector<16x1xf32>
    %173 = arith.addf %169, %172 : vector<16x1xf32>
    %174 = math.rsqrt %173 : vector<16x1xf32>
    %175 = vector.broadcast %174 : vector<16x1xf32> to vector<16x32xf32>
    %176 = arith.mulf %171, %175 : vector<16x32xf32>
    %177 = vector.broadcast %77 : vector<1x32xf32> to vector<16x32xf32>
    %178 = arith.mulf %176, %177 : vector<16x32xf32>
    %179 = vector.broadcast %78 : vector<1x32xf32> to vector<16x32xf32>
    %180 = arith.addf %178, %179 : vector<16x32xf32>
    %c360 = arith.constant 360 : index
    %c0_60 = arith.constant 0 : index
    %181 = vector.load %arg0[%c360, %c0_60] : memref<496x128xf32, #tpu.memory_space<vmem>>, vector<32x96xf32>
    %c360_61 = arith.constant 360 : index
    %c96_62 = arith.constant 96 : index
    %182 = vector.load %arg0[%c360_61, %c96_62] : memref<496x128xf32, #tpu.memory_space<vmem>>, vector<32x32xf32>
    %c392 = arith.constant 392 : index
    %c0_63 = arith.constant 0 : index
    %183 = vector.load %arg0[%c392, %c0_63] : memref<496x128xf32, #tpu.memory_space<vmem>>, vector<1x96xf32>
    %c393 = arith.constant 393 : index
    %c0_64 = arith.constant 0 : index
    %184 = vector.load %arg0[%c393, %c0_64] : memref<496x128xf32, #tpu.memory_space<vmem>>, vector<1x32xf32>
    %c394 = arith.constant 394 : index
    %c0_65 = arith.constant 0 : index
    %185 = vector.load %arg0[%c394, %c0_65] : memref<496x128xf32, #tpu.memory_space<vmem>>, vector<1x32xf32>
    %c395 = arith.constant 395 : index
    %c0_66 = arith.constant 0 : index
    %186 = vector.load %arg0[%c395, %c0_66] : memref<496x128xf32, #tpu.memory_space<vmem>>, vector<1x32xf32>
    %c396 = arith.constant 396 : index
    %c0_67 = arith.constant 0 : index
    %187 = vector.load %arg0[%c396, %c0_67] : memref<496x128xf32, #tpu.memory_space<vmem>>, vector<1x64xf32>
    %c397 = arith.constant 397 : index
    %c0_68 = arith.constant 0 : index
    %188 = vector.load %arg0[%c397, %c0_68] : memref<496x128xf32, #tpu.memory_space<vmem>>, vector<1x32xf32>
    %c398 = arith.constant 398 : index
    %c0_69 = arith.constant 0 : index
    %189 = vector.load %arg0[%c398, %c0_69] : memref<496x128xf32, #tpu.memory_space<vmem>>, vector<1x32xf32>
    %c399 = arith.constant 399 : index
    %c0_70 = arith.constant 0 : index
    %190 = vector.load %arg0[%c399, %c0_70] : memref<496x128xf32, #tpu.memory_space<vmem>>, vector<1x32xf32>
    %c400 = arith.constant 400 : index
    %c0_71 = arith.constant 0 : index
    %191 = vector.load %arg0[%c400, %c0_71] : memref<496x128xf32, #tpu.memory_space<vmem>>, vector<32x64xf32>
    %c432 = arith.constant 432 : index
    %c0_72 = arith.constant 0 : index
    %192 = vector.load %arg0[%c432, %c0_72] : memref<496x128xf32, #tpu.memory_space<vmem>>, vector<64x32xf32>
    %cst_73 = arith.constant dense<0.000000e+00> : vector<16x96xf32>
    %193 = tpu.matmul %180, %181, %cst_73 {dimension_numbers = #tpu.dot_dimension_numbers<[1], [0], [0], [1], [0, 0, 1, 1], [], []>} : vector<16x32xf32>, vector<32x96xf32>, vector<16x96xf32> -> vector<16x96xf32>
    %194 = vector.broadcast %183 : vector<1x96xf32> to vector<16x96xf32>
    %195 = arith.addf %193, %194 : vector<16x96xf32>
    %196 = vector.extract_strided_slice %195 {offsets = [0, 0], sizes = [16, 16], strides = [1, 1]} : vector<16x96xf32> to vector<16x16xf32>
    %197 = vector.extract_strided_slice %195 {offsets = [0, 32], sizes = [16, 16], strides = [1, 1]} : vector<16x96xf32> to vector<16x16xf32>
    %198 = vector.extract_strided_slice %195 {offsets = [0, 64], sizes = [16, 16], strides = [1, 1]} : vector<16x96xf32> to vector<16x16xf32>
    %cst_74 = arith.constant dense<0.000000e+00> : vector<16x16xf32>
    %199 = tpu.matmul %196, %197, %cst_74 {dimension_numbers = #tpu.dot_dimension_numbers<[1], [1], [0], [0], [0, 0, 1, 0], [], []>} : vector<16x16xf32>, vector<16x16xf32>, vector<16x16xf32> -> vector<16x16xf32>
    %cst_75 = arith.constant 2.500000e-01 : f32
    %200 = vector.broadcast %cst_75 : f32 to vector<16x16xf32>
    %201 = arith.mulf %199, %200 : vector<16x16xf32>
    %202 = arith.addf %201, %68 : vector<16x16xf32>
    %cst_76 = arith.constant dense<0xFF800000> : vector<16xf32>
    %203 = vector.multi_reduction <maximumf>, %202, %cst_76 [1] : vector<16x16xf32> to vector<16xf32>
    %204 = vector.shape_cast %203 : vector<16xf32> to vector<16x1xf32>
    %205 = vector.broadcast %204 : vector<16x1xf32> to vector<16x16xf32>
    %206 = arith.subf %202, %205 : vector<16x16xf32>
    %207 = math.exp %206 : vector<16x16xf32>
    %cst_77 = arith.constant dense<0.000000e+00> : vector<16xf32>
    %208 = vector.multi_reduction <add>, %207, %cst_77 [1] : vector<16x16xf32> to vector<16xf32>
    %209 = vector.shape_cast %208 : vector<16xf32> to vector<16x1xf32>
    %210 = tpu.reciprocal %209 {approx = true} : vector<16x1xf32> -> vector<16x1xf32>
    %211 = vector.broadcast %210 : vector<16x1xf32> to vector<16x16xf32>
    %212 = arith.mulf %207, %211 : vector<16x16xf32>
    %cst_78 = arith.constant dense<0.000000e+00> : vector<16x16xf32>
    %213 = tpu.matmul %212, %198, %cst_78 {dimension_numbers = #tpu.dot_dimension_numbers<[1], [0], [0], [1], [0, 0, 1, 1], [], []>} : vector<16x16xf32>, vector<16x16xf32>, vector<16x16xf32> -> vector<16x16xf32>
    %214 = vector.extract_strided_slice %182 {offsets = [0, 0], sizes = [16, 32], strides = [1, 1]} : vector<32x32xf32> to vector<16x32xf32>
    %cst_79 = arith.constant dense<0.000000e+00> : vector<16x32xf32>
    %215 = tpu.matmul %213, %214, %cst_79 {dimension_numbers = #tpu.dot_dimension_numbers<[1], [0], [0], [1], [0, 0, 1, 1], [], []>} : vector<16x16xf32>, vector<16x32xf32>, vector<16x32xf32> -> vector<16x32xf32>
    %216 = vector.extract_strided_slice %195 {offsets = [0, 16], sizes = [16, 16], strides = [1, 1]} : vector<16x96xf32> to vector<16x16xf32>
    %217 = vector.extract_strided_slice %195 {offsets = [0, 48], sizes = [16, 16], strides = [1, 1]} : vector<16x96xf32> to vector<16x16xf32>
    %218 = vector.extract_strided_slice %195 {offsets = [0, 80], sizes = [16, 16], strides = [1, 1]} : vector<16x96xf32> to vector<16x16xf32>
    %cst_80 = arith.constant dense<0.000000e+00> : vector<16x16xf32>
    %219 = tpu.matmul %216, %217, %cst_80 {dimension_numbers = #tpu.dot_dimension_numbers<[1], [1], [0], [0], [0, 0, 1, 0], [], []>} : vector<16x16xf32>, vector<16x16xf32>, vector<16x16xf32> -> vector<16x16xf32>
    %cst_81 = arith.constant 2.500000e-01 : f32
    %220 = vector.broadcast %cst_81 : f32 to vector<16x16xf32>
    %221 = arith.mulf %219, %220 : vector<16x16xf32>
    %222 = arith.addf %221, %68 : vector<16x16xf32>
    %cst_82 = arith.constant dense<0xFF800000> : vector<16xf32>
    %223 = vector.multi_reduction <maximumf>, %222, %cst_82 [1] : vector<16x16xf32> to vector<16xf32>
    %224 = vector.shape_cast %223 : vector<16xf32> to vector<16x1xf32>
    %225 = vector.broadcast %224 : vector<16x1xf32> to vector<16x16xf32>
    %226 = arith.subf %222, %225 : vector<16x16xf32>
    %227 = math.exp %226 : vector<16x16xf32>
    %cst_83 = arith.constant dense<0.000000e+00> : vector<16xf32>
    %228 = vector.multi_reduction <add>, %227, %cst_83 [1] : vector<16x16xf32> to vector<16xf32>
    %229 = vector.shape_cast %228 : vector<16xf32> to vector<16x1xf32>
    %230 = tpu.reciprocal %229 {approx = true} : vector<16x1xf32> -> vector<16x1xf32>
    %231 = vector.broadcast %230 : vector<16x1xf32> to vector<16x16xf32>
    %232 = arith.mulf %227, %231 : vector<16x16xf32>
    %cst_84 = arith.constant dense<0.000000e+00> : vector<16x16xf32>
    %233 = tpu.matmul %232, %218, %cst_84 {dimension_numbers = #tpu.dot_dimension_numbers<[1], [0], [0], [1], [0, 0, 1, 1], [], []>} : vector<16x16xf32>, vector<16x16xf32>, vector<16x16xf32> -> vector<16x16xf32>
    %234 = vector.extract_strided_slice %182 {offsets = [16, 0], sizes = [16, 32], strides = [1, 1]} : vector<32x32xf32> to vector<16x32xf32>
    %cst_85 = arith.constant dense<0.000000e+00> : vector<16x32xf32>
    %235 = tpu.matmul %233, %234, %cst_85 {dimension_numbers = #tpu.dot_dimension_numbers<[1], [0], [0], [1], [0, 0, 1, 1], [], []>} : vector<16x16xf32>, vector<16x32xf32>, vector<16x32xf32> -> vector<16x32xf32>
    %236 = arith.addf %215, %235 : vector<16x32xf32>
    %237 = vector.broadcast %184 : vector<1x32xf32> to vector<16x32xf32>
    %238 = arith.addf %236, %237 : vector<16x32xf32>
    %239 = arith.addf %238, %180 : vector<16x32xf32>
    %cst_86 = arith.constant dense<0.000000e+00> : vector<16xf32>
    %240 = vector.multi_reduction <add>, %239, %cst_86 [1] : vector<16x32xf32> to vector<16xf32>
    %241 = vector.shape_cast %240 : vector<16xf32> to vector<16x1xf32>
    %cst_87 = arith.constant 3.200000e+01 : f32
    %242 = vector.broadcast %cst_87 : f32 to vector<16x1xf32>
    %243 = arith.divf %241, %242 : vector<16x1xf32>
    %244 = vector.broadcast %243 : vector<16x1xf32> to vector<16x32xf32>
    %245 = arith.subf %239, %244 : vector<16x32xf32>
    %246 = arith.mulf %245, %245 : vector<16x32xf32>
    %cst_88 = arith.constant dense<0.000000e+00> : vector<16xf32>
    %247 = vector.multi_reduction <add>, %246, %cst_88 [1] : vector<16x32xf32> to vector<16xf32>
    %248 = vector.shape_cast %247 : vector<16xf32> to vector<16x1xf32>
    %cst_89 = arith.constant 3.200000e+01 : f32
    %249 = vector.broadcast %cst_89 : f32 to vector<16x1xf32>
    %250 = arith.divf %248, %249 : vector<16x1xf32>
    %251 = vector.broadcast %243 : vector<16x1xf32> to vector<16x32xf32>
    %252 = arith.subf %239, %251 : vector<16x32xf32>
    %cst_90 = arith.constant 9.99999997E-7 : f32
    %253 = vector.broadcast %cst_90 : f32 to vector<16x1xf32>
    %254 = arith.addf %250, %253 : vector<16x1xf32>
    %255 = math.rsqrt %254 : vector<16x1xf32>
    %256 = vector.broadcast %255 : vector<16x1xf32> to vector<16x32xf32>
    %257 = arith.mulf %252, %256 : vector<16x32xf32>
    %258 = vector.broadcast %185 : vector<1x32xf32> to vector<16x32xf32>
    %259 = arith.mulf %257, %258 : vector<16x32xf32>
    %260 = vector.broadcast %186 : vector<1x32xf32> to vector<16x32xf32>
    %261 = arith.addf %259, %260 : vector<16x32xf32>
    %cst_91 = arith.constant dense<0.000000e+00> : vector<16x64xf32>
    %262 = tpu.matmul %261, %191, %cst_91 {dimension_numbers = #tpu.dot_dimension_numbers<[1], [0], [0], [1], [0, 0, 1, 1], [], []>} : vector<16x32xf32>, vector<32x64xf32>, vector<16x64xf32> -> vector<16x64xf32>
    %263 = vector.broadcast %187 : vector<1x64xf32> to vector<16x64xf32>
    %264 = arith.addf %262, %263 : vector<16x64xf32>
    %cst_92 = arith.constant 0.000000e+00 : f32
    %265 = vector.broadcast %cst_92 : f32 to vector<16x64xf32>
    %266 = arith.maximumf %264, %265 : vector<16x64xf32>
    %cst_93 = arith.constant dense<0.000000e+00> : vector<16x32xf32>
    %267 = tpu.matmul %266, %192, %cst_93 {dimension_numbers = #tpu.dot_dimension_numbers<[1], [0], [0], [1], [0, 0, 1, 1], [], []>} : vector<16x64xf32>, vector<64x32xf32>, vector<16x32xf32> -> vector<16x32xf32>
    %268 = vector.broadcast %188 : vector<1x32xf32> to vector<16x32xf32>
    %269 = arith.addf %267, %268 : vector<16x32xf32>
    %270 = arith.addf %269, %261 : vector<16x32xf32>
    %cst_94 = arith.constant dense<0.000000e+00> : vector<16xf32>
    %271 = vector.multi_reduction <add>, %270, %cst_94 [1] : vector<16x32xf32> to vector<16xf32>
    %272 = vector.shape_cast %271 : vector<16xf32> to vector<16x1xf32>
    %cst_95 = arith.constant 3.200000e+01 : f32
    %273 = vector.broadcast %cst_95 : f32 to vector<16x1xf32>
    %274 = arith.divf %272, %273 : vector<16x1xf32>
    %275 = vector.broadcast %274 : vector<16x1xf32> to vector<16x32xf32>
    %276 = arith.subf %270, %275 : vector<16x32xf32>
    %277 = arith.mulf %276, %276 : vector<16x32xf32>
    %cst_96 = arith.constant dense<0.000000e+00> : vector<16xf32>
    %278 = vector.multi_reduction <add>, %277, %cst_96 [1] : vector<16x32xf32> to vector<16xf32>
    %279 = vector.shape_cast %278 : vector<16xf32> to vector<16x1xf32>
    %cst_97 = arith.constant 3.200000e+01 : f32
    %280 = vector.broadcast %cst_97 : f32 to vector<16x1xf32>
    %281 = arith.divf %279, %280 : vector<16x1xf32>
    %282 = vector.broadcast %274 : vector<16x1xf32> to vector<16x32xf32>
    %283 = arith.subf %270, %282 : vector<16x32xf32>
    %cst_98 = arith.constant 9.99999997E-7 : f32
    %284 = vector.broadcast %cst_98 : f32 to vector<16x1xf32>
    %285 = arith.addf %281, %284 : vector<16x1xf32>
    %286 = math.rsqrt %285 : vector<16x1xf32>
    %287 = vector.broadcast %286 : vector<16x1xf32> to vector<16x32xf32>
    %288 = arith.mulf %283, %287 : vector<16x32xf32>
    %289 = vector.broadcast %189 : vector<1x32xf32> to vector<16x32xf32>
    %290 = arith.mulf %288, %289 : vector<16x32xf32>
    %291 = vector.broadcast %190 : vector<1x32xf32> to vector<16x32xf32>
    %292 = arith.addf %290, %291 : vector<16x32xf32>
    %c0_99 = arith.constant 0 : index
    %c0_100 = arith.constant 0 : index
    %293 = vector.load %arg3[%c0_99, %c0_100] : memref<16x32xf32, #tpu.memory_space<vmem>>, vector<16x32xf32>
    tpu.vector_store %arg3[%c0_99, %c0_100], %292 {strides = array<i32>} : memref<16x32xf32, #tpu.memory_space<vmem>>, vector<16x32xf32>,
    return
  }
}

</mosaic_0001>

<llo_original>
// kernel: encoder_forward.1
$region0: #{encoder_forward.1}
  #allocation0 [shape = 'u32[]', space=smem, size = 0x4, offset = 0x4, fixed_abs, tag = 'smem constant byte address 0x4 - core index']
  #allocation1 [shape = 'u32[144,128]{1,0:T(1,128)}', space=vmem, size = 0x12000, scoped, tag = 'internal scratch']
  %s0 = inlined_call_operand.hbm [shape: f32[496,128], index: 0, kind: input, shape index: {}]
  %s1 = inlined_call_operand.vmem [shape: s32[16,4], index: 1, kind: input, shape index: {}]
  %s2 = inlined_call_operand.vmem [shape: s32[1,16], index: 2, kind: input, shape index: {}]
  %s3 = inlined_call_operand.hbm [shape: f32[16,32], index: 3, kind: output, shape index: {}]
  %s4 = sld [smem:[#allocation0]]
  $region26: #{encoder_forward.1} parent=0
    _
  %s6 = ssub.s32 1, %s4
  %s7 = scalar_select 0, %s6, %s4
  $region1: #{encoder_forward.1} parent=0
    #allocation2 [shape = 'u8[253952]{0}', space=vmem, size = 0x3e000, scoped, tag = 'input window, operand 0, single buffered']
    #allocation3 [shape = 's32[1]{0}', space=sflag, size = 0x4, scoped, tag = 'scoped memory for encoder_forward.1']
    #allocation4 [shape = 's32[1]{0}', space=sflag, size = 0x4, scoped, tag = 'scoped memory for encoder_forward.1']
    #allocation5 [shape = 'u8[8192]{0}', space=vmem, size = 0x2000, scoped, tag = 'output window, operand 0, single buffered']
    %8 = vsyncpa [#allocation3], 0
    %9 = vsyncpa [#allocation4], 0
    // Predicated region
    $region2: #{encoder_forward.1} parent=1 // pred_check
      _
    $region3: #{encoder_forward.1} parent=1 // pred_check_branch
      %11 = sbr.rel (0) target = $region5
    $region4: #{encoder_forward.1} parent=1 // pred_region
      %s13 = ssub.s32 7936, 7936
      %14 = vsyncadd [#allocation3], %s13
      %s15 = sshll.u32 [#allocation2], 4
      %s16 = int_to_ptr.vmem [resolvable:$true] %s15
      %21 = dma.hbm_to_vmem [thread:$0]  %s0, 7936, %s16, [#allocation3], 128, 128, 8
    $region5: #{encoder_forward.1} parent=1 // pred_fallthru
      _
    // Predicated region
    $region6: #{encoder_forward.1} parent=1 // pred_check
      _
    $region7: #{encoder_forward.1} parent=1 // pred_check_branch
      %23 = sbr.rel (0) target = $region9
    $region8: #{encoder_forward.1} parent=1 // pred_region
      _
    $region9: #{encoder_forward.1} parent=1 // pred_fallthru
      _
    // Predicated region
    $region10: #{encoder_forward.1} parent=1 // pred_check
      _
    $region11: #{encoder_forward.1} parent=1 // pred_check_branch
      %25 = sbr.rel (0) target = $region13
    $region12: #{encoder_forward.1} parent=1 // pred_region
      _
    $region13: #{encoder_forward.1} parent=1 // pred_fallthru
      _
    // Predicated region
    $region14: #{encoder_forward.1} parent=1 // pred_check
      _
    $region15: #{encoder_forward.1} parent=1 // pred_check_branch
      %27 = sbr.rel (0) target = $region17
    $region16: #{encoder_forward.1} parent=1 // pred_region
      %28 = dma.done [#allocation3], 7936
    $region17: #{encoder_forward.1} parent=1 // pred_fallthru
      _
    %v29 = vld [vmem:[%s1] sm:$0xff]
    %v30 = vld [vmem:[%s1 + $0x8] sm:$0xff]
    %v31 = vlaneseq
    %v32 = vand.u32 %v31, 127
    %33 = vset.pattern.permute.xlu0 0
    %34 = vperm.xlu0 %33, %v29
    %v35 = vpop.permute.xlu0 %34
    %36 = vset.pattern.permute.xlu0 0
    %37 = vperm.xlu0 %36, %v30
    %v38 = vpop.permute.xlu0 %37
    %vm39 = vcmp.eq.s32.totalorder %v35, %v32
    %vm40 = vcmp.eq.s32.totalorder %v38, %v32
    %v41 = vsel %vm39, 1, 0
    %v42 = vsel %vm40, 1, 0
    %v43 = vcvt.s32.f32 %v41
    %v44 = vcvt.s32.f32 %v42
    %v45 = vld [vmem:[#allocation2] sm:$0xff]
    %v46 = vld [vmem:[#allocation2 + $0x8] sm:$0xff]
    %v47 = vld [vmem:[#allocation2 + $0x10] sm:$0xff]
    %v48 = vld [vmem:[#allocation2 + $0x18] sm:$0xff]
    %v49 = vld [vmem:[#allocation2 + $0x20] sm:$0xff]
    %v50 = vld [vmem:[#allocation2 + $0x28] sm:$0xff]
    %v51 = vld [vmem:[#allocation2 + $0x30] sm:$0xff]
    %v52 = vadd.s32 %v32, 128
    %53 = vset.pattern.permute.xlu0 1
    %54 = vperm.xlu0 %53, %v29
    %v55 = vpop.permute.xlu0 %54
    %56 = vset.pattern.permute.xlu0 1
    %57 = vperm.xlu0 %56, %v30
    %v58 = vpop.permute.xlu0 %57
    %vm59 = vcmp.eq.s32.totalorder %v55, %v32
    %vm60 = vcmp.eq.s32.totalorder %v55, %v52
    %vm61 = vcmp.eq.s32.totalorder %v58, %v32
    %vm62 = vcmp.eq.s32.totalorder %v58, %v52
    %v63 = vsel %vm59, 1, 0
    %v64 = vsel %vm60, 1, 0
    %v65 = vsel %vm61, 1, 0
    %v66 = vsel %vm62, 1, 0
    %v67 = vcvt.s32.f32 %v63
    %v68 = vcvt.s32.f32 %v64
    %v69 = vcvt.s32.f32 %v65
    %v70 = vcvt.s32.f32 %v66
    %v71 = vld [vmem:[#allocation2] sm:$0xff]
    %v72 = vld [vmem:[#allocation2 + $0x8] sm:$0xff]
    %v73 = vld [vmem:[#allocation2 + $0x10] sm:$0xff]
    %v74 = vld [vmem:[#allocation2 + $0x18] sm:$0xff]
    %v75 = vld [vmem:[#allocation2 + $0x20] sm:$0xff]
    %v76 = vld [vmem:[#allocation2 + $0x28] sm:$0xff]
    %v77 = vld [vmem:[#allocation2 + $0x30] sm:$0xff]
    %v78 = vld [vmem:[#allocation2 + $0x38] sm:$0xff]
    %v79 = vld [vmem:[#allocation2 + $0x40] sm:$0xff]
    %v80 = vld [vmem:[#allocation2 + $0x48] sm:$0xff]
    %v81 = vld [vmem:[#allocation2 + $0x50] sm:$0xff]
    %v82 = vld [vmem:[#allocation2 + $0x58] sm:$0xff]
    %v83 = vld [vmem:[#allocation2 + $0x60] sm:$0xff]
    %v84 = vld [vmem:[#allocation2 + $0x68] sm:$0xff]
    %v85 = vld [vmem:[#allocation2 + $0x70] sm:$0xff]
    %v86 = vld [vmem:[#allocation2 + $0x78] sm:$0xff]
    %v87 = vld [vmem:[#allocation2 + $0x80] sm:$0xff]
    %v88 = vld [vmem:[#allocation2 + $0x88] sm:$0xff]
    %v89 = vld [vmem:[#allocation2 + $0x90] sm:$0xff]
    %v90 = vld [vmem:[#allocation2 + $0x98] sm:$0xff]
    %v91 = vld [vmem:[#allocation2 + $0xa0] sm:$0xff]
    %v92 = vld [vmem:[#allocation2 + $0xa8] sm:$0xff]
    %v93 = vld [vmem:[#allocation2 + $0xb0] sm:$0xff]
    %v94 = vld [vmem:[#allocation2 + $0xb8] sm:$0xff]
    %v95 = vld [vmem:[#allocation2 + $0xc0] sm:$0xff]
    %vm96 = vcmask 588800
    %v98 = vsel %vm96, %v68, 0
    %v101 = vsel %vm96, %v70, 0
    %103 = vmatprep.subr.mxu0 0.0
    %104 = vmatpush1.msra.mxu0 %v86
    %105 = vmatprep.subr.mxu0 0.0
    %106 = vmatpush1.msra.mxu0 %v85
    %107 = vmatprep.subr.mxu0 0.0
    %108 = vmatpush1.msra.mxu0 %v84
    %109 = vmatprep.subr.mxu0 0.0
    %110 = vmatpush1.msra.mxu0 %v83
    %111 = vmatprep.subr.mxu0 0.0
    %112 = vmatpush1.msra.mxu0 %v82
    %113 = vmatprep.subr.mxu0 0.0
    %114 = vmatpush1.msra.mxu0 %v81
    %115 = vmatprep.subr.mxu0 0.0
    %116 = vmatpush1.msra.mxu0 %v80
    %117 = vmatprep.subr.mxu0 0.0
    %118 = vmatpush1.msra.mxu0 %v79
    %119 = vmatprep.subr.mxu0 0.0
    %120 = vmatpush1.msra.mxu0 %v78
    %121 = vmatprep.subr.mxu0 0.0
    %122 = vmatpush1.msra.mxu0 %v77
    %123 = vmatprep.subr.mxu0 0.0
    %124 = vmatpush1.msra.mxu0 %v76
    %125 = vmatprep.subr.mxu0 0.0
    %126 = vmatpush1.msra.mxu0 %v75
    %127 = vmatprep.subr.mxu0 0.0
    %128 = vmatpush1.msra.mxu0 %v74
    %129 = vmatprep.subr.mxu0 0.0
    %130 = vmatpush1.msra.mxu0 %v73
    %131 = vmatprep.subr.mxu0 0.0
    %132 = vmatpush1.msra.mxu0 %v72
    %133 = vmatprep.subr.mxu0 0.0
    %134 = vmatpush1.msra.mxu0 %v71
    %135 = vmatprep.subr.mxu0 0.0
    %136 = vmatpush2.msra.mxu0 0.0
    %137 = vmatprep.subr.mxu0 0.0
    %138 = vmatpush2.msra.mxu0 0.0
    %139 = vmatprep.subr.mxu0 0.0
    %140 = vmatpush2.msra.mxu0 0.0
    %141 = vmatprep.subr.mxu0 0.0
    %142 = vmatpush2.msra.mxu0 0.0
    %143 = vmatprep.subr.mxu0 0.0
    %144 = vmatpush2.msra.mxu0 0.0
    %145 = vmatprep.subr.mxu0 0.0
    %146 = vmatpush2.msra.mxu0 0.0
    %147 = vmatprep.subr.mxu0 0.0
    %148 = vmatpush2.msra.mxu0 0.0
    %149 = vmatprep.subr.mxu0 0.0
    %150 = vmatpush2.msra.mxu0 %v95
    %151 = vmatprep.subr.mxu0 0.0
    %152 = vmatpush2.msra.mxu0 %v94
    %153 = vmatprep.subr.mxu0 0.0
    %154 = vmatpush2.msra.mxu0 %v93
    %155 = vmatprep.subr.mxu0 0.0
    %156 = vmatpush2.msra.mxu0 %v92
    %157 = vmatprep.subr.mxu0 0.0
    %158 = vmatpush2.msra.mxu0 %v91
    %159 = vmatprep.subr.mxu0 0.0
    %160 = vmatpush2.msra.mxu0 %v90
    %161 = vmatprep.subr.mxu0 0.0
    %162 = vmatpush2.msra.mxu0 %v89
    %163 = vmatprep.subr.mxu0 0.0
    %164 = vmatpush2.msra.mxu0 %v88
    %165 = vmatprep.subr.mxu0 0.0
    %166 = vmatpush2.msra.mxu0 %v87
    %167 = vmatprep.mubr.f32.mxu0 %v98
    %168 = vmatmul.mubr.f32.gmra.mxu0 %v67
    %v169 = vpop.f32.mrf.mxu0
    %v170 = vadd.f32 0.0, %v169
    %v171 = vpop.f32.mrf.mxu0
    %172 = vmatprep.mubr.f32.mxu0 %v101
    %173 = vmatmul.mubr.f32.gmra.mxu0 %v69
    %v174 = vpop.f32.mrf.mxu0
    %v175 = vadd.f32 0.0, %v174
    %v176 = vpop.f32.mrf.mxu0
    %177 = vdwg.mxu0
    %185 = vrot.lane.b32.xlu0 %v45, 32
    %v186 = vpop.permute.xlu0 %185
    %187 = vrot.lane.b32.xlu0 %v46, 32
    %v188 = vpop.permute.xlu0 %187
    %189 = vrot.lane.b32.xlu0 %v47, 32
    %v190 = vpop.permute.xlu0 %189
    %191 = vrot.lane.b32.xlu0 %v48, 32
    %v192 = vpop.permute.xlu0 %191
    %193 = vrot.lane.b32.xlu0 %v49, 32
    %v194 = vpop.permute.xlu0 %193
    %195 = vrot.lane.b32.xlu0 %v50, 32
    %v196 = vpop.permute.xlu0 %195
    %197 = vrot.lane.b32.xlu0 %v51, 32
    %v198 = vpop.permute.xlu0 %197
    %vm206 = vcmask 457728
    %v208 = vsel %vm206, %v43, 0
    %v211 = vsel %vm206, %v44, 0
    %213 = vmatprep.subr.mxu0 0.0
    %214 = vmatpush1.msra.mxu0 0.0
    %215 = vmatprep.subr.mxu0 0.0
    %216 = vmatpush1.msra.mxu0 0.0
    %217 = vmatprep.subr.mxu0 0.0
    %218 = vmatpush1.msra.mxu0 0.0
    %219 = vmatprep.subr.mxu0 0.0
    %220 = vmatpush1.msra.mxu0 0.0
    %221 = vmatprep.subr.mxu0 0.0
    %222 = vmatpush1.msra.mxu0 0.0
    %223 = vmatprep.subr.mxu0 0.0
    %224 = vmatpush1.msra.mxu0 0.0
    %225 = vmatprep.subr.mxu0 0.0
    %226 = vmatpush1.msra.mxu0 0.0
    %227 = vmatprep.subr.mxu0 0.0
    %228 = vmatpush1.msra.mxu0 0.0
    %229 = vmatprep.subr.mxu0 0.0
    %230 = vmatpush1.msra.mxu0 0.0
    %231 = vmatprep.subr.mxu0 0.0
    %232 = vmatpush1.msra.mxu0 %v198
    %233 = vmatprep.subr.mxu0 0.0
    %234 = vmatpush1.msra.mxu0 %v196
    %235 = vmatprep.subr.mxu0 0.0
    %236 = vmatpush1.msra.mxu0 %v194
    %237 = vmatprep.subr.mxu0 0.0
    %238 = vmatpush1.msra.mxu0 %v192
    %239 = vmatprep.subr.mxu0 0.0
    %240 = vmatpush1.msra.mxu0 %v190
    %241 = vmatprep.subr.mxu0 0.0
    %242 = vmatpush1.msra.mxu0 %v188
    %243 = vmatprep.subr.mxu0 0.0
    %244 = vmatpush1.msra.mxu0 %v186
    %245 = vmatprep.subr.mxu0 0.0
    %246 = vmatpush2.msra.mxu0 0.0
    %247 = vmatprep.subr.mxu0 0.0
    %248 = vmatpush2.msra.mxu0 0.0
    %249 = vmatprep.subr.mxu0 0.0
    %250 = vmatpush2.msra.mxu0 0.0
    %251 = vmatprep.subr.mxu0 0.0
    %252 = vmatpush2.msra.mxu0 0.0
    %253 = vmatprep.subr.mxu0 0.0
    %254 = vmatpush2.msra.mxu0 0.0
    %255 = vmatprep.subr.mxu0 0.0
    %256 = vmatpush2.msra.mxu0 0.0
    %257 = vmatprep.subr.mxu0 0.0
    %258 = vmatpush2.msra.mxu0 0.0
    %259 = vmatprep.subr.mxu0 0.0
    %260 = vmatpush2.msra.mxu0 0.0
    %261 = vmatprep.subr.mxu0 0.0
    %262 = vmatpush2.msra.mxu0 0.0
    %263 = vmatprep.subr.mxu0 0.0
    %264 = vmatpush2.msra.mxu0 0.0
    %265 = vmatprep.subr.mxu0 0.0
    %266 = vmatpush2.msra.mxu0 0.0
    %267 = vmatprep.subr.mxu0 0.0
    %268 = vmatpush2.msra.mxu0 0.0
    %269 = vmatprep.subr.mxu0 0.0
    %270 = vmatpush2.msra.mxu0 0.0
    %271 = vmatprep.subr.mxu0 0.0
    %272 = vmatpush2.msra.mxu0 0.0
    %273 = vmatprep.subr.mxu0 0.0
    %274 = vmatpush2.msra.mxu0 0.0
    %275 = vmatprep.subr.mxu0 0.0
    %276 = vmatpush2.msra.mxu0 0.0
    %277 = vmatprep.mubr.f32.mxu0 0.0
    %278 = vmatmul.mubr.f32.gmra.mxu0 %v208
    %v279 = vpop.f32.mrf.mxu0
    %v280 = vadd.f32 %v170, %v279
    %v281 = vpop.f32.mrf.mxu0
    %282 = vmatprep.mubr.f32.mxu0 0.0
    %283 = vmatmul.mubr.f32.gmra.mxu0 %v211
    %v284 = vpop.f32.mrf.mxu0
    %v285 = vadd.f32 %v175, %v284
    %v286 = vpop.f32.mrf.mxu0
    %287 = vdwg.mxu0
    %288 = vset.pattern.permute.xlu0 2
    %289 = vperm.xlu0 %288, %v29
    %v290 = vpop.permute.xlu0 %289
    %291 = vset.pattern.permute.xlu0 2
    %292 = vperm.xlu0 %291, %v30
    %v293 = vpop.permute.xlu0 %292
    %vm294 = vcmp.eq.s32.totalorder %v290, %v32
    %vm295 = vcmp.eq.s32.totalorder %v290, %v52
    %vm296 = vcmp.eq.s32.totalorder %v293, %v32
    %vm297 = vcmp.eq.s32.totalorder %v293, %v52
    %v298 = vsel %vm294, 1, 0
    %v299 = vsel %vm295, 1, 0
    %v300 = vsel %vm296, 1, 0
    %v301 = vsel %vm297, 1, 0
    %v302 = vcvt.s32.f32 %v298
    %v303 = vcvt.s32.f32 %v299
    %v304 = vcvt.s32.f32 %v300
    %v305 = vcvt.s32.f32 %v301
    %331 = vrot.lane.b32.xlu0 %v71, 96
    %v332 = vpop.permute.xlu0 %331
    %333 = vrot.lane.b32.xlu0 %v72, 96
    %v334 = vpop.permute.xlu0 %333
    %335 = vrot.lane.b32.xlu0 %v73, 96
    %v336 = vpop.permute.xlu0 %335
    %337 = vrot.lane.b32.xlu0 %v74, 96
    %v338 = vpop.permute.xlu0 %337
    %339 = vrot.lane.b32.xlu0 %v75, 96
    %v340 = vpop.permute.xlu0 %339
    %341 = vrot.lane.b32.xlu0 %v76, 96
    %v342 = vpop.permute.xlu0 %341
    %343 = vrot.lane.b32.xlu0 %v77, 96
    %v344 = vpop.permute.xlu0 %343
    %345 = vrot.lane.b32.xlu0 %v78, 96
    %v346 = vpop.permute.xlu0 %345
    %347 = vrot.lane.b32.xlu0 %v79, 96
    %v348 = vpop.permute.xlu0 %347
    %349 = vrot.lane.b32.xlu0 %v80, 96
    %v350 = vpop.permute.xlu0 %349
    %351 = vrot.lane.b32.xlu0 %v81, 96
    %v352 = vpop.permute.xlu0 %351
    %353 = vrot.lane.b32.xlu0 %v82, 96
    %v354 = vpop.permute.xlu0 %353
    %355 = vrot.lane.b32.xlu0 %v83, 96
    %v356 = vpop.permute.xlu0 %355
    %357 = vrot.lane.b32.xlu0 %v84, 96
    %v358 = vpop.permute.xlu0 %357
    %359 = vrot.lane.b32.xlu0 %v85, 96
    %v360 = vpop.permute.xlu0 %359
    %361 = vrot.lane.b32.xlu0 %v86, 96
    %v362 = vpop.permute.xlu0 %361
    %363 = vrot.lane.b32.xlu0 %v87, 96
    %v364 = vpop.permute.xlu0 %363
    %365 = vrot.lane.b32.xlu0 %v88, 96
    %v366 = vpop.permute.xlu0 %365
    %367 = vrot.lane.b32.xlu0 %v89, 96
    %v368 = vpop.permute.xlu0 %367
    %369 = vrot.lane.b32.xlu0 %v90, 96
    %v370 = vpop.permute.xlu0 %369
    %371 = vrot.lane.b32.xlu0 %v91, 96
    %v372 = vpop.permute.xlu0 %371
    %373 = vrot.lane.b32.xlu0 %v92, 96
    %v374 = vpop.permute.xlu0 %373
    %375 = vrot.lane.b32.xlu0 %v93, 96
    %v376 = vpop.permute.xlu0 %375
    %377 = vrot.lane.b32.xlu0 %v94, 96
    %v378 = vpop.permute.xlu0 %377
    %379 = vrot.lane.b32.xlu0 %v95, 96
    %v380 = vpop.permute.xlu0 %379
    %v407 = vsel %vm96, %v303, 0
    %v410 = vsel %vm96, %v305, 0
    %412 = vmatprep.subr.mxu0 0.0
    %413 = vmatpush1.msra.mxu0 %v362
    %414 = vmatprep.subr.mxu0 0.0
    %415 = vmatpush1.msra.mxu0 %v360
    %416 = vmatprep.subr.mxu0 0.0
    %417 = vmatpush1.msra.mxu0 %v358
    %418 = vmatprep.subr.mxu0 0.0
    %419 = vmatpush1.msra.mxu0 %v356
    %420 = vmatprep.subr.mxu0 0.0
    %421 = vmatpush1.msra.mxu0 %v354
    %422 = vmatprep.subr.mxu0 0.0
    %423 = vmatpush1.msra.mxu0 %v352
    %424 = vmatprep.subr.mxu0 0.0
    %425 = vmatpush1.msra.mxu0 %v350
    %426 = vmatprep.subr.mxu0 0.0
    %427 = vmatpush1.msra.mxu0 %v348
    %428 = vmatprep.subr.mxu0 0.0
    %429 = vmatpush1.msra.mxu0 %v346
    %430 = vmatprep.subr.mxu0 0.0
    %431 = vmatpush1.msra.mxu0 %v344
    %432 = vmatprep.subr.mxu0 0.0
    %433 = vmatpush1.msra.mxu0 %v342
    %434 = vmatprep.subr.mxu0 0.0
    %435 = vmatpush1.msra.mxu0 %v340
    %436 = vmatprep.subr.mxu0 0.0
    %437 = vmatpush1.msra.mxu0 %v338
    %438 = vmatprep.subr.mxu0 0.0
    %439 = vmatpush1.msra.mxu0 %v336
    %440 = vmatprep.subr.mxu0 0.0
    %441 = vmatpush1.msra.mxu0 %v334
    %442 = vmatprep.subr.mxu0 0.0
    %443 = vmatpush1.msra.mxu0 %v332
    %444 = vmatprep.subr.mxu0 0.0
    %445 = vmatpush2.msra.mxu0 0.0
    %446 = vmatprep.subr.mxu0 0.0
    %447 = vmatpush2.msra.mxu0 0.0
    %448 = vmatprep.subr.mxu0 0.0
    %449 = vmatpush2.msra.mxu0 0.0
    %450 = vmatprep.subr.mxu0 0.0
    %451 = vmatpush2.msra.mxu0 0.0
    %452 = vmatprep.subr.mxu0 0.0
    %453 = vmatpush2.msra.mxu0 0.0
    %454 = vmatprep.subr.mxu0 0.0
    %455 = vmatpush2.msra.mxu0 0.0
    %456 = vmatprep.subr.mxu0 0.0
    %457 = vmatpush2.msra.mxu0 0.0
    %458 = vmatprep.subr.mxu0 0.0
    %459 = vmatpush2.msra.mxu0 %v380
    %460 = vmatprep.subr.mxu0 0.0
    %461 = vmatpush2.msra.mxu0 %v378
    %462 = vmatprep.subr.mxu0 0.0
    %463 = vmatpush2.msra.mxu0 %v376
    %464 = vmatprep.subr.mxu0 0.0
    %465 = vmatpush2.msra.mxu0 %v374
    %466 = vmatprep.subr.mxu0 0.0
    %467 = vmatpush2.msra.mxu0 %v372
    %468 = vmatprep.subr.mxu0 0.0
    %469 = vmatpush2.msra.mxu0 %v370
    %470 = vmatprep.subr.mxu0 0.0
    %471 = vmatpush2.msra.mxu0 %v368
    %472 = vmatprep.subr.mxu0 0.0
    %473 = vmatpush2.msra.mxu0 %v366
    %474 = vmatprep.subr.mxu0 0.0
    %475 = vmatpush2.msra.mxu0 %v364
    %476 = vmatprep.mubr.f32.mxu0 %v407
    %477 = vmatmul.mubr.f32.gmra.mxu0 %v302
    %v478 = vpop.f32.mrf.mxu0
    %v479 = vadd.f32 0.0, %v478
    %v480 = vpop.f32.mrf.mxu0
    %481 = vmatprep.mubr.f32.mxu0 %v410
    %482 = vmatmul.mubr.f32.gmra.mxu0 %v304
    %v483 = vpop.f32.mrf.mxu0
    %v484 = vadd.f32 0.0, %v483
    %v485 = vpop.f32.mrf.mxu0
    %486 = vdwg.mxu0
    %v487 = vadd.f32 %v280, %v479
    %v488 = vadd.f32 %v285, %v484
    %489 = vset.pattern.permute.xlu0 3
    %490 = vperm.xlu0 %489, %v29
    %v491 = vpop.permute.xlu0 %490
    %492 = vset.pattern.permute.xlu0 3
    %493 = vperm.xlu0 %492, %v30
    %v494 = vpop.permute.xlu0 %493
    %vm495 = vcmp.eq.s32.totalorder %v491, %v32
    %vm496 = vcmp.eq.s32.totalorder %v491, %v52
    %vm497 = vcmp.eq.s32.totalorder %v494, %v32
    %vm498 = vcmp.eq.s32.totalorder %v494, %v52
    %v499 = vsel %vm495, 1, 0
    %v500 = vsel %vm496, 1, 0
    %v501 = vsel %vm497, 1, 0
    %v502 = vsel %vm498, 1, 0
    %v503 = vcvt.s32.f32 %v499
    %v504 = vcvt.s32.f32 %v500
    %v505 = vcvt.s32.f32 %v501
    %v506 = vcvt.s32.f32 %v502
    %507 = vrot.lane.b32.xlu0 %v71, 64
    %v508 = vpop.permute.xlu0 %507
    %509 = vrot.lane.b32.xlu0 %v72, 64
    %v510 = vpop.permute.xlu0 %509
    %511 = vrot.lane.b32.xlu0 %v73, 64
    %v512 = vpop.permute.xlu0 %511
    %513 = vrot.lane.b32.xlu0 %v74, 64
    %v514 = vpop.permute.xlu0 %513
    %515 = vrot.lane.b32.xlu0 %v75, 64
    %v516 = vpop.permute.xlu0 %515
    %517 = vrot.lane.b32.xlu0 %v76, 64
    %v518 = vpop.permute.xlu0 %517
    %519 = vrot.lane.b32.xlu0 %v77, 64
    %v520 = vpop.permute.xlu0 %519
    %521 = vrot.lane.b32.xlu0 %v78, 64
    %v522 = vpop.permute.xlu0 %521
    %523 = vrot.lane.b32.xlu0 %v79, 64
    %v524 = vpop.permute.xlu0 %523
    %525 = vrot.lane.b32.xlu0 %v80, 64
    %v526 = vpop.permute.xlu0 %525
    %527 = vrot.lane.b32.xlu0 %v81, 64
    %v528 = vpop.permute.xlu0 %527
    %529 = vrot.lane.b32.xlu0 %v82, 64
    %v530 = vpop.permute.xlu0 %529
    %531 = vrot.lane.b32.xlu0 %v83, 64
    %v532 = vpop.permute.xlu0 %531
    %533 = vrot.lane.b32.xlu0 %v84, 64
    %v534 = vpop.permute.xlu0 %533
    %535 = vrot.lane.b32.xlu0 %v85, 64
    %v536 = vpop.permute.xlu0 %535
    %537 = vrot.lane.b32.xlu0 %v86, 64
    %v538 = vpop.permute.xlu0 %537
    %539 = vrot.lane.b32.xlu0 %v87, 64
    %v540 = vpop.permute.xlu0 %539
    %541 = vrot.lane.b32.xlu0 %v88, 64
    %v542 = vpop.permute.xlu0 %541
    %543 = vrot.lane.b32.xlu0 %v89, 64
    %v544 = vpop.permute.xlu0 %543
    %545 = vrot.lane.b32.xlu0 %v90, 64
    %v546 = vpop.permute.xlu0 %545
    %547 = vrot.lane.b32.xlu0 %v91, 64
    %v548 = vpop.permute.xlu0 %547
    %549 = vrot.lane.b32.xlu0 %v92, 64
    %v550 = vpop.permute.xlu0 %549
    %551 = vrot.lane.b32.xlu0 %v93, 64
    %v552 = vpop.permute.xlu0 %551
    %553 = vrot.lane.b32.xlu0 %v94, 64
    %v554 = vpop.permute.xlu0 %553
    %555 = vrot.lane.b32.xlu0 %v95, 64
    %v556 = vpop.permute.xlu0 %555
    %v583 = vsel %vm96, %v504, 0
    %v586 = vsel %vm96, %v506, 0
    %588 = vmatprep.subr.mxu0 0.0
    %589 = vmatpush1.msra.mxu0 %v538
    %590 = vmatprep.subr.mxu0 0.0
    %591 = vmatpush1.msra.mxu0 %v536
    %592 = vmatprep.subr.mxu0 0.0
    %593 = vmatpush1.msra.mxu0 %v534
    %594 = vmatprep.subr.mxu0 0.0
    %595 = vmatpush1.msra.mxu0 %v532
    %596 = vmatprep.subr.mxu0 0.0
    %597 = vmatpush1.msra.mxu0 %v530
    %598 = vmatprep.subr.mxu0 0.0
    %599 = vmatpush1.msra.mxu0 %v528
    %600 = vmatprep.subr.mxu0 0.0
    %601 = vmatpush1.msra.mxu0 %v526
    %602 = vmatprep.subr.mxu0 0.0
    %603 = vmatpush1.msra.mxu0 %v524
    %604 = vmatprep.subr.mxu0 0.0
    %605 = vmatpush1.msra.mxu0 %v522
    %606 = vmatprep.subr.mxu0 0.0
    %607 = vmatpush1.msra.mxu0 %v520
    %608 = vmatprep.subr.mxu0 0.0
    %609 = vmatpush1.msra.mxu0 %v518
    %610 = vmatprep.subr.mxu0 0.0
    %611 = vmatpush1.msra.mxu0 %v516
    %612 = vmatprep.subr.mxu0 0.0
    %613 = vmatpush1.msra.mxu0 %v514
    %614 = vmatprep.subr.mxu0 0.0
    %615 = vmatpush1.msra.mxu0 %v512
    %616 = vmatprep.subr.mxu0 0.0
    %617 = vmatpush1.msra.mxu0 %v510
    %618 = vmatprep.subr.mxu0 0.0
    %619 = vmatpush1.msra.mxu0 %v508
    %620 = vmatprep.subr.mxu0 0.0
    %621 = vmatpush2.msra.mxu0 0.0
    %622 = vmatprep.subr.mxu0 0.0
    %623 = vmatpush2.msra.mxu0 0.0
    %624 = vmatprep.subr.mxu0 0.0
    %625 = vmatpush2.msra.mxu0 0.0
    %626 = vmatprep.subr.mxu0 0.0
    %627 = vmatpush2.msra.mxu0 0.0
    %628 = vmatprep.subr.mxu0 0.0
    %629 = vmatpush2.msra.mxu0 0.0
    %630 = vmatprep.subr.mxu0 0.0
    %631 = vmatpush2.msra.mxu0 0.0
    %632 = vmatprep.subr.mxu0 0.0
    %633 = vmatpush2.msra.mxu0 0.0
    %634 = vmatprep.subr.mxu0 0.0
    %635 = vmatpush2.msra.mxu0 %v556
    %636 = vmatprep.subr.mxu0 0.0
    %637 = vmatpush2.msra.mxu0 %v554
    %638 = vmatprep.subr.mxu0 0.0
    %639 = vmatpush2.msra.mxu0 %v552
    %640 = vmatprep.subr.mxu0 0.0
    %641 = vmatpush2.msra.mxu0 %v550
    %642 = vmatprep.subr.mxu0 0.0
    %643 = vmatpush2.msra.mxu0 %v548
    %644 = vmatprep.subr.mxu0 0.0
    %645 = vmatpush2.msra.mxu0 %v546
    %646 = vmatprep.subr.mxu0 0.0
    %647 = vmatpush2.msra.mxu0 %v544
    %648 = vmatprep.subr.mxu0 0.0
    %649 = vmatpush2.msra.mxu0 %v542
    %650 = vmatprep.subr.mxu0 0.0
    %651 = vmatpush2.msra.mxu0 %v540
    %652 = vmatprep.mubr.f32.mxu0 %v583
    %653 = vmatmul.mubr.f32.gmra.mxu0 %v503
    %v654 = vpop.f32.mrf.mxu0
    %v655 = vadd.f32 0.0, %v654
    %v656 = vpop.f32.mrf.mxu0
    %657 = vmatprep.mubr.f32.mxu0 %v586
    %658 = vmatmul.mubr.f32.gmra.mxu0 %v505
    %v659 = vpop.f32.mrf.mxu0
    %v660 = vadd.f32 0.0, %v659
    %v661 = vpop.f32.mrf.mxu0
    %662 = vdwg.mxu0
    %v663 = vadd.f32 %v487, %v655
    %v664 = vadd.f32 %v488, %v660
    %v665 = vld [vmem:[#allocation2 + $0xc8] sm:$0x1]
    %v666 = vld [vmem:[#allocation2 + $0xc9] sm:$0x1]
    %vm667 = vcmask 261120
    %v668 = vsel %vm667, %v663, 0.0
    %669 = vadd.xlane.f32.xlu0 %v668
    %v670 = vpop.xlane.xlu0 %669
    %v671 = vsel %vm667, %v664, 0.0
    %672 = vadd.xlane.f32.xlu0 %v671
    %v673 = vpop.xlane.xlu0 %672
    %v674 = vrcp.pop 32.0
    %v675 = vmul.f32 %v670, %v674
    %v676 = vmul.f32 %v673, %v674
    %v677 = vsub.f32 %v663, %v675
    %v678 = vsub.f32 %v664, %v676
    %v679 = vmul.f32 %v677, %v677
    %v680 = vmul.f32 %v678, %v678
    %v681 = vsel %vm667, %v679, 0.0
    %682 = vadd.xlane.f32.xlu0 %v681
    %v683 = vpop.xlane.xlu0 %682
    %v684 = vsel %vm667, %v680, 0.0
    %685 = vadd.xlane.f32.xlu0 %v684
    %v686 = vpop.xlane.xlu0 %685
    %v687 = vmul.f32 %v683, %v674
    %v688 = vmul.f32 %v686, %v674
    %v689 = vadd.f32 %v687, 1e-06
    %v690 = vadd.f32 %v688, 1e-06
    %v691 = vrsqrt.pop %v689
    %v692 = vrsqrt.pop %v690
    %v693 = vmul.f32 %v677, %v691
    %v694 = vmul.f32 %v678, %v692
    %v695 = vlaneseq
    %v696 = vshrl.u32 %v695, 7
    %v697 = vsub.s32 0, %v696
    %v698 = vrot.slane %v665, %v697
    %v699 = vmul.f32 %v693, %v698
    %v700 = vmul.f32 %v694, %v698
    %v701 = vlaneseq
    %v702 = vshrl.u32 %v701, 7
    %v703 = vsub.s32 0, %v702
    %v704 = vrot.slane %v666, %v703
    %v705 = vadd.f32 %v699, %v704
    %v706 = vadd.f32 %v700, %v704
    %v707 = vld [vmem:[%s2] sm:$0x1]
    %vm708 = vcmp.ne.s32.totalorder %v707, 0
    %v709 = vsel %vm708, 0.0, -1e+09
    %v710 = vld [vmem:[#allocation2 + $0xd0] sm:$0xff]
    %v711 = vld [vmem:[#allocation2 + $0xd8] sm:$0xff]
    %v713 = vlaneseq
    %v714 = vshrl.u32 %v713, 7
    %v715 = vsub.s32 0, %v714
    %v716 = vrot.slane %v709, %v715
    %v718 = vadd.f32 %v710, %v716
    %v719 = vadd.f32 %v711, %v716
    %v720 = vld [vmem:[#allocation2 + $0xe0] sm:$0xff]
    %v721 = vld [vmem:[#allocation2 + $0xe8] sm:$0xff]
    %v722 = vld [vmem:[#allocation2 + $0xf0] sm:$0xff]
    %v723 = vld [vmem:[#allocation2 + $0xf8] sm:$0xff]
    %v724 = vld [vmem:[#allocation2 + $0x100] sm:$0x1]
    %v725 = vld [vmem:[#allocation2 + $0x101] sm:$0x1]
    %v726 = vld [vmem:[#allocation2 + $0x102] sm:$0x1]
    %v727 = vld [vmem:[#allocation2 + $0x103] sm:$0x1]
    %v728 = vld [vmem:[#allocation2 + $0x104] sm:$0x1]
    %v729 = vld [vmem:[#allocation2 + $0x105] sm:$0x1]
    %v730 = vld [vmem:[#allocation2 + $0x106] sm:$0x1]
    %v731 = vld [vmem:[#allocation2 + $0x107] sm:$0x1]
    %v732 = vld [vmem:[#allocation2 + $0x108] sm:$0xff]
    %v733 = vld [vmem:[#allocation2 + $0x110] sm:$0xff]
    %v734 = vld [vmem:[#allocation2 + $0x118] sm:$0xff]
    %v735 = vld [vmem:[#allocation2 + $0x120] sm:$0xff]
    %v736 = vld [vmem:[#allocation2 + $0x128] sm:$0xff]
    %v737 = vld [vmem:[#allocation2 + $0x130] sm:$0xff]
    %v738 = vld [vmem:[#allocation2 + $0x138] sm:$0xff]
    %v739 = vld [vmem:[#allocation2 + $0x140] sm:$0xff]
    %v740 = vld [vmem:[#allocation2 + $0x148] sm:$0xff]
    %v741 = vld [vmem:[#allocation2 + $0x150] sm:$0xff]
    %v742 = vld [vmem:[#allocation2 + $0x158] sm:$0xff]
    %v743 = vld [vmem:[#allocation2 + $0x160] sm:$0xff]
    %v744 = vlaneseq
    %v745 = vshrl.u32 %v744, 7
    %v746 = vsub.s32 0, %v745
    %v747 = vrot.slane %v724, %v746
    %v749 = vsel %vm667, %v705, 0
    %v752 = vsel %vm667, %v706, 0
    %754 = vmatprep.subr.mxu0 0.0
    %755 = vmatpush1.msra.mxu0 0.0
    %756 = vmatprep.subr.mxu0 0.0
    %757 = vmatpush1.msra.mxu0 0.0
    %758 = vmatprep.subr.mxu0 0.0
    %759 = vmatpush1.msra.mxu0 0.0
    %760 = vmatprep.subr.mxu0 0.0
    %761 = vmatpush1.msra.mxu0 0.0
    %762 = vmatprep.subr.mxu0 0.0
    %763 = vmatpush1.msra.mxu0 0.0
    %764 = vmatprep.subr.mxu0 0.0
    %765 = vmatpush1.msra.mxu0 0.0
    %766 = vmatprep.subr.mxu0 0.0
    %767 = vmatpush1.msra.mxu0 0.0
    %768 = vmatprep.subr.mxu0 0.0
    %769 = vmatpush1.msra.mxu0 0.0
    %770 = vmatprep.subr.mxu0 0.0
    %771 = vmatpush1.msra.mxu0 0.0
    %772 = vmatprep.subr.mxu0 0.0
    %773 = vmatpush1.msra.mxu0 0.0
    %774 = vmatprep.subr.mxu0 0.0
    %775 = vmatpush1.msra.mxu0 0.0
    %776 = vmatprep.subr.mxu0 0.0
    %777 = vmatpush1.msra.mxu0 0.0
    %778 = vmatprep.subr.mxu0 0.0
    %779 = vmatpush1.msra.mxu0 %v723
    %780 = vmatprep.subr.mxu0 0.0
    %781 = vmatpush1.msra.mxu0 %v722
    %782 = vmatprep.subr.mxu0 0.0
    %783 = vmatpush1.msra.mxu0 %v721
    %784 = vmatprep.subr.mxu0 0.0
    %785 = vmatpush1.msra.mxu0 %v720
    %786 = vmatprep.subr.mxu0 0.0
    %787 = vmatpush2.msra.mxu0 0.0
    %788 = vmatprep.subr.mxu0 0.0
    %789 = vmatpush2.msra.mxu0 0.0
    %790 = vmatprep.subr.mxu0 0.0
    %791 = vmatpush2.msra.mxu0 0.0
    %792 = vmatprep.subr.mxu0 0.0
    %793 = vmatpush2.msra.mxu0 0.0
    %794 = vmatprep.subr.mxu0 0.0
    %795 = vmatpush2.msra.mxu0 0.0
    %796 = vmatprep.subr.mxu0 0.0
    %797 = vmatpush2.msra.mxu0 0.0
    %798 = vmatprep.subr.mxu0 0.0
    %799 = vmatpush2.msra.mxu0 0.0
    %800 = vmatprep.subr.mxu0 0.0
    %801 = vmatpush2.msra.mxu0 0.0
    %802 = vmatprep.subr.mxu0 0.0
    %803 = vmatpush2.msra.mxu0 0.0
    %804 = vmatprep.subr.mxu0 0.0
    %805 = vmatpush2.msra.mxu0 0.0
    %806 = vmatprep.subr.mxu0 0.0
    %807 = vmatpush2.msra.mxu0 0.0
    %808 = vmatprep.subr.mxu0 0.0
    %809 = vmatpush2.msra.mxu0 0.0
    %810 = vmatprep.subr.mxu0 0.0
    %811 = vmatpush2.msra.mxu0 0.0
    %812 = vmatprep.subr.mxu0 0.0
    %813 = vmatpush2.msra.mxu0 0.0
    %814 = vmatprep.subr.mxu0 0.0
    %815 = vmatpush2.msra.mxu0 0.0
    %816 = vmatprep.subr.mxu0 0.0
    %817 = vmatpush2.msra.mxu0 0.0
    %818 = vmatprep.mubr.f32.mxu0 0.0
    %819 = vmatmul.mubr.f32.gmra.mxu0 %v749
    %v820 = vpop.f32.mrf.mxu0
    %v821 = vadd.f32 %v747, %v820
    %v822 = vpop.f32.mrf.mxu0
    %823 = vmatprep.mubr.f32.mxu0 0.0
    %824 = vmatmul.mubr.f32.gmra.mxu0 %v752
    %v825 = vpop.f32.mrf.mxu0
    %v826 = vadd.f32 %v747, %v825
    %v827 = vpop.f32.mrf.mxu0
    %828 = vdwg.mxu0
    %831 = vrot.lane.b32.xlu0 %v821, 96
    %v832 = vpop.permute.xlu0 %831
    %833 = vrot.lane.b32.xlu0 %v826, 96
    %v834 = vpop.permute.xlu0 %833
    %vm835 = vcmask 130048
    %v836 = vsel %vm835, %v821, 0
    %v838 = vsel %vm835, %v826, 0
    %v840 = vsel %vm835, %v832, 0
    %v842 = vsel %vm835, %v834, 0
    %844 = vmatprep.subr.mxu0 0.0
    %845 = vmatpush1.xpose.msra.mxu0 0.0
    %846 = vmatprep.subr.mxu0 0.0
    %847 = vmatpush1.xpose.msra.mxu0 0.0
    %848 = vmatprep.subr.mxu0 0.0
    %849 = vmatpush1.xpose.msra.mxu0 0.0
    %850 = vmatprep.subr.mxu0 0.0
    %851 = vmatpush1.xpose.msra.mxu0 0.0
    %852 = vmatprep.subr.mxu0 0.0
    %853 = vmatpush1.xpose.msra.mxu0 0.0
    %854 = vmatprep.subr.mxu0 0.0
    %855 = vmatpush1.xpose.msra.mxu0 0.0
    %856 = vmatprep.subr.mxu0 0.0
    %857 = vmatpush1.xpose.msra.mxu0 0.0
    %858 = vmatprep.subr.mxu0 0.0
    %859 = vmatpush1.xpose.msra.mxu0 0.0
    %860 = vmatprep.subr.mxu0 0.0
    %861 = vmatpush1.xpose.msra.mxu0 0.0
    %862 = vmatprep.subr.mxu0 0.0
    %863 = vmatpush1.xpose.msra.mxu0 0.0
    %864 = vmatprep.subr.mxu0 0.0
    %865 = vmatpush1.xpose.msra.mxu0 0.0
    %866 = vmatprep.subr.mxu0 0.0
    %867 = vmatpush1.xpose.msra.mxu0 0.0
    %868 = vmatprep.subr.mxu0 0.0
    %869 = vmatpush1.xpose.msra.mxu0 0.0
    %870 = vmatprep.subr.mxu0 0.0
    %871 = vmatpush1.xpose.msra.mxu0 0.0
    %872 = vmatprep.subr.mxu0 0.0
    %873 = vmatpush1.xpose.msra.mxu0 %v842
    %874 = vmatprep.subr.mxu0 0.0
    %875 = vmatpush1.xpose.msra.mxu0 %v840
    %876 = vmatprep.subr.mxu0 0.0
    %877 = vmatpush2.xpose.msra.mxu0 0.0
    %878 = vmatprep.subr.mxu0 0.0
    %879 = vmatpush2.xpose.msra.mxu0 0.0
    %880 = vmatprep.subr.mxu0 0.0
    %881 = vmatpush2.xpose.msra.mxu0 0.0
    %882 = vmatprep.subr.mxu0 0.0
    %883 = vmatpush2.xpose.msra.mxu0 0.0
    %884 = vmatprep.subr.mxu0 0.0
    %885 = vmatpush2.xpose.msra.mxu0 0.0
    %886 = vmatprep.subr.mxu0 0.0
    %887 = vmatpush2.xpose.msra.mxu0 0.0
    %888 = vmatprep.subr.mxu0 0.0
    %889 = vmatpush2.xpose.msra.mxu0 0.0
    %890 = vmatprep.subr.mxu0 0.0
    %891 = vmatpush2.xpose.msra.mxu0 0.0
    %892 = vmatprep.subr.mxu0 0.0
    %893 = vmatpush2.xpose.msra.mxu0 0.0
    %894 = vmatprep.subr.mxu0 0.0
    %895 = vmatpush2.xpose.msra.mxu0 0.0
    %896 = vmatprep.subr.mxu0 0.0
    %897 = vmatpush2.xpose.msra.mxu0 0.0
    %898 = vmatprep.subr.mxu0 0.0
    %899 = vmatpush2.xpose.msra.mxu0 0.0
    %900 = vmatprep.subr.mxu0 0.0
    %901 = vmatpush2.xpose.msra.mxu0 0.0
    %902 = vmatprep.subr.mxu0 0.0
    %903 = vmatpush2.xpose.msra.mxu0 0.0
    %904 = vmatprep.subr.mxu0 0.0
    %905 = vmatpush2.xpose.msra.mxu0 0.0
    %906 = vmatprep.subr.mxu0 0.0
    %907 = vmatpush2.xpose.msra.mxu0 0.0
    %908 = vmatprep.mubr.f32.mxu0 0.0
    %909 = vmatmul.mubr.f32.gmra.mxu0 %v836
    %v910 = vpop.f32.mrf.mxu0
    %v911 = vadd.f32 0.0, %v910
    %v912 = vpop.f32.mrf.mxu0
    %913 = vmatprep.mubr.f32.mxu0 0.0
    %914 = vmatmul.mubr.f32.gmra.mxu0 %v838
    %v915 = vpop.f32.mrf.mxu0
    %v916 = vadd.f32 0.0, %v915
    %v917 = vpop.f32.mrf.mxu0
    %918 = vdwg.mxu0
    %v919 = vmul.f32 %v911, 0.25
    %v920 = vmul.f32 %v916, 0.25
    %v921 = vadd.f32 %v919, %v718
    %v922 = vadd.f32 %v920, %v719
    %v923 = vsel %vm835, %v921, -inf
    %924 = vmax.xlane.f32.xlu0 %v923
    %v925 = vpop.xlane.xlu0 %924
    %v926 = vsel %vm835, %v922, -inf
    %927 = vmax.xlane.f32.xlu0 %v926
    %v928 = vpop.xlane.xlu0 %927
    %v929 = vsub.f32 %v921, %v925
    %v930 = vsub.f32 %v922, %v928
    %v931 = vmul.f32 %v929, 1.442695
    %v932 = vpow.pop %v931
    %v933 = vmul.f32 %v930, 1.442695
    %v934 = vpow.pop %v933
    %v935 = vsel %vm835, %v932, 0.0
    %936 = vadd.xlane.f32.xlu0 %v935
    %v937 = vpop.xlane.xlu0 %936
    %v938 = vsel %vm835, %v934, 0.0
    %939 = vadd.xlane.f32.xlu0 %v938
    %v940 = vpop.xlane.xlu0 %939
    %v941 = vrcp.pop %v937
    %v942 = vrcp.pop %v940
    %v943 = vmul.f32 %v932, %v941
    %v944 = vmul.f32 %v934, %v942
    %945 = vrot.lane.b32.xlu0 %v821, 64
    %v946 = vpop.permute.xlu0 %945
    %947 = vrot.lane.b32.xlu0 %v826, 64
    %v948 = vpop.permute.xlu0 %947
    %v952 = vsel %vm835, %v943, 0
    %v955 = vsel %vm835, %v944, 0
    %957 = vmatprep.subr.mxu0 0.0
    %958 = vmatpush1.msra.mxu0 0.0
    %959 = vmatprep.subr.mxu0 0.0
    %960 = vmatpush1.msra.mxu0 0.0
    %961 = vmatprep.subr.mxu0 0.0
    %962 = vmatpush1.msra.mxu0 0.0
    %963 = vmatprep.subr.mxu0 0.0
    %964 = vmatpush1.msra.mxu0 0.0
    %965 = vmatprep.subr.mxu0 0.0
    %966 = vmatpush1.msra.mxu0 0.0
    %967 = vmatprep.subr.mxu0 0.0
    %968 = vmatpush1.msra.mxu0 0.0
    %969 = vmatprep.subr.mxu0 0.0
    %970 = vmatpush1.msra.mxu0 0.0
    %971 = vmatprep.subr.mxu0 0.0
    %972 = vmatpush1.msra.mxu0 0.0
    %973 = vmatprep.subr.mxu0 0.0
    %974 = vmatpush1.msra.mxu0 0.0
    %975 = vmatprep.subr.mxu0 0.0
    %976 = vmatpush1.msra.mxu0 0.0
    %977 = vmatprep.subr.mxu0 0.0
    %978 = vmatpush1.msra.mxu0 0.0
    %979 = vmatprep.subr.mxu0 0.0
    %980 = vmatpush1.msra.mxu0 0.0
    %981 = vmatprep.subr.mxu0 0.0
    %982 = vmatpush1.msra.mxu0 0.0
    %983 = vmatprep.subr.mxu0 0.0
    %984 = vmatpush1.msra.mxu0 0.0
    %985 = vmatprep.subr.mxu0 0.0
    %986 = vmatpush1.msra.mxu0 %v948
    %987 = vmatprep.subr.mxu0 0.0
    %988 = vmatpush1.msra.mxu0 %v946
    %989 = vmatprep.subr.mxu0 0.0
    %990 = vmatpush2.msra.mxu0 0.0
    %991 = vmatprep.subr.mxu0 0.0
    %992 = vmatpush2.msra.mxu0 0.0
    %993 = vmatprep.subr.mxu0 0.0
    %994 = vmatpush2.msra.mxu0 0.0
    %995 = vmatprep.subr.mxu0 0.0
    %996 = vmatpush2.msra.mxu0 0.0
    %997 = vmatprep.subr.mxu0 0.0
    %998 = vmatpush2.msra.mxu0 0.0
    %999 = vmatprep.subr.mxu0 0.0
    %1000 = vmatpush2.msra.mxu0 0.0
    %1001 = vmatprep.subr.mxu0 0.0
    %1002 = vmatpush2.msra.mxu0 0.0
    %1003 = vmatprep.subr.mxu0 0.0
    %1004 = vmatpush2.msra.mxu0 0.0
    %1005 = vmatprep.subr.mxu0 0.0
    %1006 = vmatpush2.msra.mxu0 0.0
    %1007 = vmatprep.subr.mxu0 0.0
    %1008 = vmatpush2.msra.mxu0 0.0
    %1009 = vmatprep.subr.mxu0 0.0
    %1010 = vmatpush2.msra.mxu0 0.0
    %1011 = vmatprep.subr.mxu0 0.0
    %1012 = vmatpush2.msra.mxu0 0.0
    %1013 = vmatprep.subr.mxu0 0.0
    %1014 = vmatpush2.msra.mxu0 0.0
    %1015 = vmatprep.subr.mxu0 0.0
    %1016 = vmatpush2.msra.mxu0 0.0
    %1017 = vmatprep.subr.mxu0 0.0
    %1018 = vmatpush2.msra.mxu0 0.0
    %1019 = vmatprep.subr.mxu0 0.0
    %1020 = vmatpush2.msra.mxu0 0.0
    %1021 = vmatprep.mubr.f32.mxu0 0.0
    %1022 = vmatmul.mubr.f32.gmra.mxu0 %v952
    %v1023 = vpop.f32.mrf.mxu0
    %v1024 = vadd.f32 0.0, %v1023
    %v1025 = vpop.f32.mrf.mxu0
    %1026 = vmatprep.mubr.f32.mxu0 0.0
    %1027 = vmatmul.mubr.f32.gmra.mxu0 %v955
    %v1028 = vpop.f32.mrf.mxu0
    %v1029 = vadd.f32 0.0, %v1028
    %v1030 = vpop.f32.mrf.mxu0
    %1031 = vdwg.mxu0
    %1032 = vrot.lane.b32.xlu0 %v821, 112
    %v1033 = vpop.permute.xlu0 %1032
    %1034 = vrot.lane.b32.xlu0 %v826, 112
    %v1035 = vpop.permute.xlu0 %1034
    %1036 = vrot.lane.b32.xlu0 %v821, 80
    %v1037 = vpop.permute.xlu0 %1036
    %1038 = vrot.lane.b32.xlu0 %v826, 80
    %v1039 = vpop.permute.xlu0 %1038
    %v1040 = vsel %vm835, %v1033, 0
    %v1042 = vsel %vm835, %v1035, 0
    %v1044 = vsel %vm835, %v1037, 0
    %v1046 = vsel %vm835, %v1039, 0
    %1048 = vmatprep.subr.mxu0 0.0
    %1049 = vmatpush1.xpose.msra.mxu0 0.0
    %1050 = vmatprep.subr.mxu0 0.0
    %1051 = vmatpush1.xpose.msra.mxu0 0.0
    %1052 = vmatprep.subr.mxu0 0.0
    %1053 = vmatpush1.xpose.msra.mxu0 0.0
    %1054 = vmatprep.subr.mxu0 0.0
    %1055 = vmatpush1.xpose.msra.mxu0 0.0
    %1056 = vmatprep.subr.mxu0 0.0
    %1057 = vmatpush1.xpose.msra.mxu0 0.0
    %1058 = vmatprep.subr.mxu0 0.0
    %1059 = vmatpush1.xpose.msra.mxu0 0.0
    %1060 = vmatprep.subr.mxu0 0.0
    %1061 = vmatpush1.xpose.msra.mxu0 0.0
    %1062 = vmatprep.subr.mxu0 0.0
    %1063 = vmatpush1.xpose.msra.mxu0 0.0
    %1064 = vmatprep.subr.mxu0 0.0
    %1065 = vmatpush1.xpose.msra.mxu0 0.0
    %1066 = vmatprep.subr.mxu0 0.0
    %1067 = vmatpush1.xpose.msra.mxu0 0.0
    %1068 = vmatprep.subr.mxu0 0.0
    %1069 = vmatpush1.xpose.msra.mxu0 0.0
    %1070 = vmatprep.subr.mxu0 0.0
    %1071 = vmatpush1.xpose.msra.mxu0 0.0
    %1072 = vmatprep.subr.mxu0 0.0
    %1073 = vmatpush1.xpose.msra.mxu0 0.0
    %1074 = vmatprep.subr.mxu0 0.0
    %1075 = vmatpush1.xpose.msra.mxu0 0.0
    %1076 = vmatprep.subr.mxu0 0.0
    %1077 = vmatpush1.xpose.msra.mxu0 %v1046
    %1078 = vmatprep.subr.mxu0 0.0
    %1079 = vmatpush1.xpose.msra.mxu0 %v1044
    %1080 = vmatprep.subr.mxu0 0.0
    %1081 = vmatpush2.xpose.msra.mxu0 0.0
    %1082 = vmatprep.subr.mxu0 0.0
    %1083 = vmatpush2.xpose.msra.mxu0 0.0
    %1084 = vmatprep.subr.mxu0 0.0
    %1085 = vmatpush2.xpose.msra.mxu0 0.0
    %1086 = vmatprep.subr.mxu0 0.0
    %1087 = vmatpush2.xpose.msra.mxu0 0.0
    %1088 = vmatprep.subr.mxu0 0.0
    %1089 = vmatpush2.xpose.msra.mxu0 0.0
    %1090 = vmatprep.subr.mxu0 0.0
    %1091 = vmatpush2.xpose.msra.mxu0 0.0
    %1092 = vmatprep.subr.mxu0 0.0
    %1093 = vmatpush2.xpose.msra.mxu0 0.0
    %1094 = vmatprep.subr.mxu0 0.0
    %1095 = vmatpush2.xpose.msra.mxu0 0.0
    %1096 = vmatprep.subr.mxu0 0.0
    %1097 = vmatpush2.xpose.msra.mxu0 0.0
    %1098 = vmatprep.subr.mxu0 0.0
    %1099 = vmatpush2.xpose.msra.mxu0 0.0
    %1100 = vmatprep.subr.mxu0 0.0
    %1101 = vmatpush2.xpose.msra.mxu0 0.0
    %1102 = vmatprep.subr.mxu0 0.0
    %1103 = vmatpush2.xpose.msra.mxu0 0.0
    %1104 = vmatprep.subr.mxu0 0.0
    %1105 = vmatpush2.xpose.msra.mxu0 0.0
    %1106 = vmatprep.subr.mxu0 0.0
    %1107 = vmatpush2.xpose.msra.mxu0 0.0
    %1108 = vmatprep.subr.mxu0 0.0
    %1109 = vmatpush2.xpose.msra.mxu0 0.0
    %1110 = vmatprep.subr.mxu0 0.0
    %1111 = vmatpush2.xpose.msra.mxu0 0.0
    %1112 = vmatprep.mubr.f32.mxu0 0.0
    %1113 = vmatmul.mubr.f32.gmra.mxu0 %v1040
    %v1114 = vpop.f32.mrf.mxu0
    %v1115 = vadd.f32 0.0, %v1114
    %v1116 = vpop.f32.mrf.mxu0
    %1117 = vmatprep.mubr.f32.mxu0 0.0
    %1118 = vmatmul.mubr.f32.gmra.mxu0 %v1042
    %v1119 = vpop.f32.mrf.mxu0
    %v1120 = vadd.f32 0.0, %v1119
    %v1121 = vpop.f32.mrf.mxu0
    %1122 = vdwg.mxu0
    %v1123 = vmul.f32 %v1115, 0.25
    %v1124 = vmul.f32 %v1120, 0.25
    %v1125 = vadd.f32 %v1123, %v718
    %v1126 = vadd.f32 %v1124, %v719
    %v1127 = vsel %vm835, %v1125, -inf
    %1128 = vmax.xlane.f32.xlu0 %v1127
    %v1129 = vpop.xlane.xlu0 %1128
    %v1130 = vsel %vm835, %v1126, -inf
    %1131 = vmax.xlane.f32.xlu0 %v1130
    %v1132 = vpop.xlane.xlu0 %1131
    %v1133 = vsub.f32 %v1125, %v1129
    %v1134 = vsub.f32 %v1126, %v1132
    %v1135 = vmul.f32 %v1133, 1.442695
    %v1136 = vpow.pop %v1135
    %v1137 = vmul.f32 %v1134, 1.442695
    %v1138 = vpow.pop %v1137
    %v1139 = vsel %vm835, %v1136, 0.0
    %1140 = vadd.xlane.f32.xlu0 %v1139
    %v1141 = vpop.xlane.xlu0 %1140
    %v1142 = vsel %vm835, %v1138, 0.0
    %1143 = vadd.xlane.f32.xlu0 %v1142
    %v1144 = vpop.xlane.xlu0 %1143
    %v1145 = vrcp.pop %v1141
    %v1146 = vrcp.pop %v1144
    %v1147 = vmul.f32 %v1136, %v1145
    %v1148 = vmul.f32 %v1138, %v1146
    %1149 = vrot.lane.b32.xlu0 %v821, 48
    %v1150 = vpop.permute.xlu0 %1149
    %1151 = vrot.lane.b32.xlu0 %v826, 48
    %v1152 = vpop.permute.xlu0 %1151
    %v1156 = vsel %vm835, %v1147, 0
    %v1159 = vsel %vm835, %v1148, 0
    %1161 = vmatprep.subr.mxu0 0.0
    %1162 = vmatpush1.msra.mxu0 0.0
    %1163 = vmatprep.subr.mxu0 0.0
    %1164 = vmatpush1.msra.mxu0 0.0
    %1165 = vmatprep.subr.mxu0 0.0
    %1166 = vmatpush1.msra.mxu0 0.0
    %1167 = vmatprep.subr.mxu0 0.0
    %1168 = vmatpush1.msra.mxu0 0.0
    %1169 = vmatprep.subr.mxu0 0.0
    %1170 = vmatpush1.msra.mxu0 0.0
    %1171 = vmatprep.subr.mxu0 0.0
    %1172 = vmatpush1.msra.mxu0 0.0
    %1173 = vmatprep.subr.mxu0 0.0
    %1174 = vmatpush1.msra.mxu0 0.0
    %1175 = vmatprep.subr.mxu0 0.0
    %1176 = vmatpush1.msra.mxu0 0.0
    %1177 = vmatprep.subr.mxu0 0.0
    %1178 = vmatpush1.msra.mxu0 0.0
    %1179 = vmatprep.subr.mxu0 0.0
    %1180 = vmatpush1.msra.mxu0 0.0
    %1181 = vmatprep.subr.mxu0 0.0
    %1182 = vmatpush1.msra.mxu0 0.0
    %1183 = vmatprep.subr.mxu0 0.0
    %1184 = vmatpush1.msra.mxu0 0.0
    %1185 = vmatprep.subr.mxu0 0.0
    %1186 = vmatpush1.msra.mxu0 0.0
    %1187 = vmatprep.subr.mxu0 0.0
    %1188 = vmatpush1.msra.mxu0 0.0
    %1189 = vmatprep.subr.mxu0 0.0
    %1190 = vmatpush1.msra.mxu0 %v1152
    %1191 = vmatprep.subr.mxu0 0.0
    %1192 = vmatpush1.msra.mxu0 %v1150
    %1193 = vmatprep.subr.mxu0 0.0
    %1194 = vmatpush2.msra.mxu0 0.0
    %1195 = vmatprep.subr.mxu0 0.0
    %1196 = vmatpush2.msra.mxu0 0.0
    %1197 = vmatprep.subr.mxu0 0.0
    %1198 = vmatpush2.msra.mxu0 0.0
    %1199 = vmatprep.subr.mxu0 0.0
    %1200 = vmatpush2.msra.mxu0 0.0
    %1201 = vmatprep.subr.mxu0 0.0
    %1202 = vmatpush2.msra.mxu0 0.0
    %1203 = vmatprep.subr.mxu0 0.0
    %1204 = vmatpush2.msra.mxu0 0.0
    %1205 = vmatprep.subr.mxu0 0.0
    %1206 = vmatpush2.msra.mxu0 0.0
    %1207 = vmatprep.subr.mxu0 0.0
    %1208 = vmatpush2.msra.mxu0 0.0
    %1209 = vmatprep.subr.mxu0 0.0
    %1210 = vmatpush2.msra.mxu0 0.0
    %1211 = vmatprep.subr.mxu0 0.0
    %1212 = vmatpush2.msra.mxu0 0.0
    %1213 = vmatprep.subr.mxu0 0.0
    %1214 = vmatpush2.msra.mxu0 0.0
    %1215 = vmatprep.subr.mxu0 0.0
    %1216 = vmatpush2.msra.mxu0 0.0
    %1217 = vmatprep.subr.mxu0 0.0
    %1218 = vmatpush2.msra.mxu0 0.0
    %1219 = vmatprep.subr.mxu0 0.0
    %1220 = vmatpush2.msra.mxu0 0.0
    %1221 = vmatprep.subr.mxu0 0.0
    %1222 = vmatpush2.msra.mxu0 0.0
    %1223 = vmatprep.subr.mxu0 0.0
    %1224 = vmatpush2.msra.mxu0 0.0
    %1225 = vmatprep.mubr.f32.mxu0 0.0
    %1226 = vmatmul.mubr.f32.gmra.mxu0 %v1156
    %v1227 = vpop.f32.mrf.mxu0
    %v1228 = vadd.f32 0.0, %v1227
    %v1229 = vpop.f32.mrf.mxu0
    %1230 = vmatprep.mubr.f32.mxu0 0.0
    %1231 = vmatmul.mubr.f32.gmra.mxu0 %v1159
    %v1232 = vpop.f32.mrf.mxu0
    %v1233 = vadd.f32 0.0, %v1232
    %v1234 = vpop.f32.mrf.mxu0
    %1235 = vdwg.mxu0
    %1238 = vrot.lane.b32.xlu0 %v722, 32
    %v1239 = vpop.permute.xlu0 %1238
    %1240 = vrot.lane.b32.xlu0 %v723, 32
    %v1241 = vpop.permute.xlu0 %1240
    %v1245 = vsel %vm835, %v1228, 0
    %v1248 = vsel %vm835, %v1233, 0
    %1250 = vmatprep.subr.mxu0 0.0
    %1251 = vmatpush1.msra.mxu0 0.0
    %1252 = vmatprep.subr.mxu0 0.0
    %1253 = vmatpush1.msra.mxu0 0.0
    %1254 = vmatprep.subr.mxu0 0.0
    %1255 = vmatpush1.msra.mxu0 0.0
    %1256 = vmatprep.subr.mxu0 0.0
    %1257 = vmatpush1.msra.mxu0 0.0
    %1258 = vmatprep.subr.mxu0 0.0
    %1259 = vmatpush1.msra.mxu0 0.0
    %1260 = vmatprep.subr.mxu0 0.0
    %1261 = vmatpush1.msra.mxu0 0.0
    %1262 = vmatprep.subr.mxu0 0.0
    %1263 = vmatpush1.msra.mxu0 0.0
    %1264 = vmatprep.subr.mxu0 0.0
    %1265 = vmatpush1.msra.mxu0 0.0
    %1266 = vmatprep.subr.mxu0 0.0
    %1267 = vmatpush1.msra.mxu0 0.0
    %1268 = vmatprep.subr.mxu0 0.0
    %1269 = vmatpush1.msra.mxu0 0.0
    %1270 = vmatprep.subr.mxu0 0.0
    %1271 = vmatpush1.msra.mxu0 0.0
    %1272 = vmatprep.subr.mxu0 0.0
    %1273 = vmatpush1.msra.mxu0 0.0
    %1274 = vmatprep.subr.mxu0 0.0
    %1275 = vmatpush1.msra.mxu0 0.0
    %1276 = vmatprep.subr.mxu0 0.0
    %1277 = vmatpush1.msra.mxu0 0.0
    %1278 = vmatprep.subr.mxu0 0.0
    %1279 = vmatpush1.msra.mxu0 %v1241
    %1280 = vmatprep.subr.mxu0 0.0
    %1281 = vmatpush1.msra.mxu0 %v1239
    %1282 = vmatprep.subr.mxu0 0.0
    %1283 = vmatpush2.msra.mxu0 0.0
    %1284 = vmatprep.subr.mxu0 0.0
    %1285 = vmatpush2.msra.mxu0 0.0
    %1286 = vmatprep.subr.mxu0 0.0
    %1287 = vmatpush2.msra.mxu0 0.0
    %1288 = vmatprep.subr.mxu0 0.0
    %1289 = vmatpush2.msra.mxu0 0.0
    %1290 = vmatprep.subr.mxu0 0.0
    %1291 = vmatpush2.msra.mxu0 0.0
    %1292 = vmatprep.subr.mxu0 0.0
    %1293 = vmatpush2.msra.mxu0 0.0
    %1294 = vmatprep.subr.mxu0 0.0
    %1295 = vmatpush2.msra.mxu0 0.0
    %1296 = vmatprep.subr.mxu0 0.0
    %1297 = vmatpush2.msra.mxu0 0.0
    %1298 = vmatprep.subr.mxu0 0.0
    %1299 = vmatpush2.msra.mxu0 0.0
    %1300 = vmatprep.subr.mxu0 0.0
    %1301 = vmatpush2.msra.mxu0 0.0
    %1302 = vmatprep.subr.mxu0 0.0
    %1303 = vmatpush2.msra.mxu0 0.0
    %1304 = vmatprep.subr.mxu0 0.0
    %1305 = vmatpush2.msra.mxu0 0.0
    %1306 = vmatprep.subr.mxu0 0.0
    %1307 = vmatpush2.msra.mxu0 0.0
    %1308 = vmatprep.subr.mxu0 0.0
    %1309 = vmatpush2.msra.mxu0 0.0
    %1310 = vmatprep.subr.mxu0 0.0
    %1311 = vmatpush2.msra.mxu0 0.0
    %1312 = vmatprep.subr.mxu0 0.0
    %1313 = vmatpush2.msra.mxu0 0.0
    %1314 = vmatprep.mubr.f32.mxu0 0.0
    %1315 = vmatmul.mubr.f32.gmra.mxu0 %v1245
    %v1316 = vpop.f32.mrf.mxu0
    %v1317 = vadd.f32 0.0, %v1316
    %v1318 = vpop.f32.mrf.mxu0
    %1319 = vmatprep.mubr.f32.mxu0 0.0
    %1320 = vmatmul.mubr.f32.gmra.mxu0 %v1248
    %v1321 = vpop.f32.mrf.mxu0
    %v1322 = vadd.f32 0.0, %v1321
    %v1323 = vpop.f32.mrf.mxu0
    %1324 = vdwg.mxu0
    %1327 = vrot.lane.b32.xlu0 %v720, 32
    %v1328 = vpop.permute.xlu0 %1327
    %1329 = vrot.lane.b32.xlu0 %v721, 32
    %v1330 = vpop.permute.xlu0 %1329
    %v1334 = vsel %vm835, %v1024, 0
    %v1337 = vsel %vm835, %v1029, 0
    %1339 = vmatprep.subr.mxu0 0.0
    %1340 = vmatpush1.msra.mxu0 0.0
    %1341 = vmatprep.subr.mxu0 0.0
    %1342 = vmatpush1.msra.mxu0 0.0
    %1343 = vmatprep.subr.mxu0 0.0
    %1344 = vmatpush1.msra.mxu0 0.0
    %1345 = vmatprep.subr.mxu0 0.0
    %1346 = vmatpush1.msra.mxu0 0.0
    %1347 = vmatprep.subr.mxu0 0.0
    %1348 = vmatpush1.msra.mxu0 0.0
    %1349 = vmatprep.subr.mxu0 0.0
    %1350 = vmatpush1.msra.mxu0 0.0
    %1351 = vmatprep.subr.mxu0 0.0
    %1352 = vmatpush1.msra.mxu0 0.0
    %1353 = vmatprep.subr.mxu0 0.0
    %1354 = vmatpush1.msra.mxu0 0.0
    %1355 = vmatprep.subr.mxu0 0.0
    %1356 = vmatpush1.msra.mxu0 0.0
    %1357 = vmatprep.subr.mxu0 0.0
    %1358 = vmatpush1.msra.mxu0 0.0
    %1359 = vmatprep.subr.mxu0 0.0
    %1360 = vmatpush1.msra.mxu0 0.0
    %1361 = vmatprep.subr.mxu0 0.0
    %1362 = vmatpush1.msra.mxu0 0.0
    %1363 = vmatprep.subr.mxu0 0.0
    %1364 = vmatpush1.msra.mxu0 0.0
    %1365 = vmatprep.subr.mxu0 0.0
    %1366 = vmatpush1.msra.mxu0 0.0
    %1367 = vmatprep.subr.mxu0 0.0
    %1368 = vmatpush1.msra.mxu0 %v1330
    %1369 = vmatprep.subr.mxu0 0.0
    %1370 = vmatpush1.msra.mxu0 %v1328
    %1371 = vmatprep.subr.mxu0 0.0
    %1372 = vmatpush2.msra.mxu0 0.0
    %1373 = vmatprep.subr.mxu0 0.0
    %1374 = vmatpush2.msra.mxu0 0.0
    %1375 = vmatprep.subr.mxu0 0.0
    %1376 = vmatpush2.msra.mxu0 0.0
    %1377 = vmatprep.subr.mxu0 0.0
    %1378 = vmatpush2.msra.mxu0 0.0
    %1379 = vmatprep.subr.mxu0 0.0
    %1380 = vmatpush2.msra.mxu0 0.0
    %1381 = vmatprep.subr.mxu0 0.0
    %1382 = vmatpush2.msra.mxu0 0.0
    %1383 = vmatprep.subr.mxu0 0.0
    %1384 = vmatpush2.msra.mxu0 0.0
    %1385 = vmatprep.subr.mxu0 0.0
    %1386 = vmatpush2.msra.mxu0 0.0
    %1387 = vmatprep.subr.mxu0 0.0
    %1388 = vmatpush2.msra.mxu0 0.0
    %1389 = vmatprep.subr.mxu0 0.0
    %1390 = vmatpush2.msra.mxu0 0.0
    %1391 = vmatprep.subr.mxu0 0.0
    %1392 = vmatpush2.msra.mxu0 0.0
    %1393 = vmatprep.subr.mxu0 0.0
    %1394 = vmatpush2.msra.mxu0 0.0
    %1395 = vmatprep.subr.mxu0 0.0
    %1396 = vmatpush2.msra.mxu0 0.0
    %1397 = vmatprep.subr.mxu0 0.0
    %1398 = vmatpush2.msra.mxu0 0.0
    %1399 = vmatprep.subr.mxu0 0.0
    %1400 = vmatpush2.msra.mxu0 0.0
    %1401 = vmatprep.subr.mxu0 0.0
    %1402 = vmatpush2.msra.mxu0 0.0
    %1403 = vmatprep.mubr.f32.mxu0 0.0
    %1404 = vmatmul.mubr.f32.gmra.mxu0 %v1334
    %v1405 = vpop.f32.mrf.mxu0
    %v1406 = vadd.f32 %v1317, %v1405
    %v1407 = vpop.f32.mrf.mxu0
    %1408 = vmatprep.mubr.f32.mxu0 0.0
    %1409 = vmatmul.mubr.f32.gmra.mxu0 %v1337
    %v1410 = vpop.f32.mrf.mxu0
    %v1411 = vadd.f32 %v1322, %v1410
    %v1412 = vpop.f32.mrf.mxu0
    %1413 = vdwg.mxu0
    %v1414 = vlaneseq
    %v1415 = vshrl.u32 %v1414, 7
    %v1416 = vsub.s32 0, %v1415
    %v1417 = vrot.slane %v725, %v1416
    %v1418 = vadd.f32 %v1406, %v1417
    %v1419 = vadd.f32 %v1411, %v1417
    %v1420 = vadd.f32 %v1418, %v705
    %v1421 = vadd.f32 %v1419, %v706
    %v1422 = vsel %vm667, %v1420, 0.0
    %1423 = vadd.xlane.f32.xlu0 %v1422
    %v1424 = vpop.xlane.xlu0 %1423
    %v1425 = vsel %vm667, %v1421, 0.0
    %1426 = vadd.xlane.f32.xlu0 %v1425
    %v1427 = vpop.xlane.xlu0 %1426
    %v1428 = vmul.f32 %v1424, %v674
    %v1429 = vmul.f32 %v1427, %v674
    %v1430 = vsub.f32 %v1420, %v1428
    %v1431 = vsub.f32 %v1421, %v1429
    %v1432 = vmul.f32 %v1430, %v1430
    %v1433 = vmul.f32 %v1431, %v1431
    %v1434 = vsel %vm667, %v1432, 0.0
    %1435 = vadd.xlane.f32.xlu0 %v1434
    %v1436 = vpop.xlane.xlu0 %1435
    %v1437 = vsel %vm667, %v1433, 0.0
    %1438 = vadd.xlane.f32.xlu0 %v1437
    %v1439 = vpop.xlane.xlu0 %1438
    %v1440 = vmul.f32 %v1436, %v674
    %v1441 = vmul.f32 %v1439, %v674
    %v1442 = vadd.f32 %v1440, 1e-06
    %v1443 = vadd.f32 %v1441, 1e-06
    %v1444 = vrsqrt.pop %v1442
    %v1445 = vrsqrt.pop %v1443
    %v1446 = vmul.f32 %v1430, %v1444
    %v1447 = vmul.f32 %v1431, %v1445
    %v1448 = vlaneseq
    %v1449 = vshrl.u32 %v1448, 7
    %v1450 = vsub.s32 0, %v1449
    %v1451 = vrot.slane %v726, %v1450
    %v1452 = vmul.f32 %v1446, %v1451
    %v1453 = vmul.f32 %v1447, %v1451
    %v1454 = vlaneseq
    %v1455 = vshrl.u32 %v1454, 7
    %v1456 = vsub.s32 0, %v1455
    %v1457 = vrot.slane %v727, %v1456
    %v1458 = vadd.f32 %v1452, %v1457
    %v1459 = vadd.f32 %v1453, %v1457
    %v1460 = vlaneseq
    %v1461 = vshrl.u32 %v1460, 7
    %v1462 = vsub.s32 0, %v1461
    %v1463 = vrot.slane %v728, %v1462
    %v1465 = vsel %vm667, %v1458, 0
    %v1468 = vsel %vm667, %v1459, 0
    %1470 = vmatprep.subr.mxu0 0.0
    %1471 = vmatpush1.msra.mxu0 0.0
    %1472 = vmatprep.subr.mxu0 0.0
    %1473 = vmatpush1.msra.mxu0 0.0
    %1474 = vmatprep.subr.mxu0 0.0
    %1475 = vmatpush1.msra.mxu0 0.0
    %1476 = vmatprep.subr.mxu0 0.0
    %1477 = vmatpush1.msra.mxu0 0.0
    %1478 = vmatprep.subr.mxu0 0.0
    %1479 = vmatpush1.msra.mxu0 0.0
    %1480 = vmatprep.subr.mxu0 0.0
    %1481 = vmatpush1.msra.mxu0 0.0
    %1482 = vmatprep.subr.mxu0 0.0
    %1483 = vmatpush1.msra.mxu0 0.0
    %1484 = vmatprep.subr.mxu0 0.0
    %1485 = vmatpush1.msra.mxu0 0.0
    %1486 = vmatprep.subr.mxu0 0.0
    %1487 = vmatpush1.msra.mxu0 0.0
    %1488 = vmatprep.subr.mxu0 0.0
    %1489 = vmatpush1.msra.mxu0 0.0
    %1490 = vmatprep.subr.mxu0 0.0
    %1491 = vmatpush1.msra.mxu0 0.0
    %1492 = vmatprep.subr.mxu0 0.0
    %1493 = vmatpush1.msra.mxu0 0.0
    %1494 = vmatprep.subr.mxu0 0.0
    %1495 = vmatpush1.msra.mxu0 %v735
    %1496 = vmatprep.subr.mxu0 0.0
    %1497 = vmatpush1.msra.mxu0 %v734
    %1498 = vmatprep.subr.mxu0 0.0
    %1499 = vmatpush1.msra.mxu0 %v733
    %1500 = vmatprep.subr.mxu0 0.0
    %1501 = vmatpush1.msra.mxu0 %v732
    %1502 = vmatprep.subr.mxu0 0.0
    %1503 = vmatpush2.msra.mxu0 0.0
    %1504 = vmatprep.subr.mxu0 0.0
    %1505 = vmatpush2.msra.mxu0 0.0
    %1506 = vmatprep.subr.mxu0 0.0
    %1507 = vmatpush2.msra.mxu0 0.0
    %1508 = vmatprep.subr.mxu0 0.0
    %1509 = vmatpush2.msra.mxu0 0.0
    %1510 = vmatprep.subr.mxu0 0.0
    %1511 = vmatpush2.msra.mxu0 0.0
    %1512 = vmatprep.subr.mxu0 0.0
    %1513 = vmatpush2.msra.mxu0 0.0
    %1514 = vmatprep.subr.mxu0 0.0
    %1515 = vmatpush2.msra.mxu0 0.0
    %1516 = vmatprep.subr.mxu0 0.0
    %1517 = vmatpush2.msra.mxu0 0.0
    %1518 = vmatprep.subr.mxu0 0.0
    %1519 = vmatpush2.msra.mxu0 0.0
    %1520 = vmatprep.subr.mxu0 0.0
    %1521 = vmatpush2.msra.mxu0 0.0
    %1522 = vmatprep.subr.mxu0 0.0
    %1523 = vmatpush2.msra.mxu0 0.0
    %1524 = vmatprep.subr.mxu0 0.0
    %1525 = vmatpush2.msra.mxu0 0.0
    %1526 = vmatprep.subr.mxu0 0.0
    %1527 = vmatpush2.msra.mxu0 0.0
    %1528 = vmatprep.subr.mxu0 0.0
    %1529 = vmatpush2.msra.mxu0 0.0
    %1530 = vmatprep.subr.mxu0 0.0
    %1531 = vmatpush2.msra.mxu0 0.0
    %1532 = vmatprep.subr.mxu0 0.0
    %1533 = vmatpush2.msra.mxu0 0.0
    %1534 = vmatprep.mubr.f32.mxu0 0.0
    %1535 = vmatmul.mubr.f32.gmra.mxu0 %v1465
    %v1536 = vpop.f32.mrf.mxu0
    %v1537 = vadd.f32 %v1463, %v1536
    %v1538 = vpop.f32.mrf.mxu0
    %1539 = vmatprep.mubr.f32.mxu0 0.0
    %1540 = vmatmul.mubr.f32.gmra.mxu0 %v1468
    %v1541 = vpop.f32.mrf.mxu0
    %v1542 = vadd.f32 %v1463, %v1541
    %v1543 = vpop.f32.mrf.mxu0
    %1544 = vdwg.mxu0
    %v1545 = vmax.f32 %v1537, 0.0
    %v1546 = vmax.f32 %v1542, 0.0
    %v1547 = vlaneseq
    %v1548 = vshrl.u32 %v1547, 7
    %v1549 = vsub.s32 0, %v1548
    %v1550 = vrot.slane %v729, %v1549
    %vm1551 = vcmask 523264
    %v1553 = vsel %vm1551, %v1545, 0
    %v1556 = vsel %vm1551, %v1546, 0
    %1558 = vmatprep.subr.mxu0 0.0
    %1559 = vmatpush1.msra.mxu0 0.0
    %1560 = vmatprep.subr.mxu0 0.0
    %1561 = vmatpush1.msra.mxu0 0.0
    %1562 = vmatprep.subr.mxu0 0.0
    %1563 = vmatpush1.msra.mxu0 0.0
    %1564 = vmatprep.subr.mxu0 0.0
    %1565 = vmatpush1.msra.mxu0 0.0
    %1566 = vmatprep.subr.mxu0 0.0
    %1567 = vmatpush1.msra.mxu0 0.0
    %1568 = vmatprep.subr.mxu0 0.0
    %1569 = vmatpush1.msra.mxu0 0.0
    %1570 = vmatprep.subr.mxu0 0.0
    %1571 = vmatpush1.msra.mxu0 0.0
    %1572 = vmatprep.subr.mxu0 0.0
    %1573 = vmatpush1.msra.mxu0 0.0
    %1574 = vmatprep.subr.mxu0 0.0
    %1575 = vmatpush1.msra.mxu0 %v743
    %1576 = vmatprep.subr.mxu0 0.0
    %1577 = vmatpush1.msra.mxu0 %v742
    %1578 = vmatprep.subr.mxu0 0.0
    %1579 = vmatpush1.msra.mxu0 %v741
    %1580 = vmatprep.subr.mxu0 0.0
    %1581 = vmatpush1.msra.mxu0 %v740
    %1582 = vmatprep.subr.mxu0 0.0
    %1583 = vmatpush1.msra.mxu0 %v739
    %1584 = vmatprep.subr.mxu0 0.0
    %1585 = vmatpush1.msra.mxu0 %v738
    %1586 = vmatprep.subr.mxu0 0.0
    %1587 = vmatpush1.msra.mxu0 %v737
    %1588 = vmatprep.subr.mxu0 0.0
    %1589 = vmatpush1.msra.mxu0 %v736
    %1590 = vmatprep.subr.mxu0 0.0
    %1591 = vmatpush2.msra.mxu0 0.0
    %1592 = vmatprep.subr.mxu0 0.0
    %1593 = vmatpush2.msra.mxu0 0.0
    %1594 = vmatprep.subr.mxu0 0.0
    %1595 = vmatpush2.msra.mxu0 0.0
    %1596 = vmatprep.subr.mxu0 0.0
    %1597 = vmatpush2.msra.mxu0 0.0
    %1598 = vmatprep.subr.mxu0 0.0
    %1599 = vmatpush2.msra.mxu0 0.0
    %1600 = vmatprep.subr.mxu0 0.0
    %1601 = vmatpush2.msra.mxu0 0.0
    %1602 = vmatprep.subr.mxu0 0.0
    %1603 = vmatpush2.msra.mxu0 0.0
    %1604 = vmatprep.subr.mxu0 0.0
    %1605 = vmatpush2.msra.mxu0 0.0
    %1606 = vmatprep.subr.mxu0 0.0
    %1607 = vmatpush2.msra.mxu0 0.0
    %1608 = vmatprep.subr.mxu0 0.0
    %1609 = vmatpush2.msra.mxu0 0.0
    %1610 = vmatprep.subr.mxu0 0.0
    %1611 = vmatpush2.msra.mxu0 0.0
    %1612 = vmatprep.subr.mxu0 0.0
    %1613 = vmatpush2.msra.mxu0 0.0
    %1614 = vmatprep.subr.mxu0 0.0
    %1615 = vmatpush2.msra.mxu0 0.0
    %1616 = vmatprep.subr.mxu0 0.0
    %1617 = vmatpush2.msra.mxu0 0.0
    %1618 = vmatprep.subr.mxu0 0.0
    %1619 = vmatpush2.msra.mxu0 0.0
    %1620 = vmatprep.subr.mxu0 0.0
    %1621 = vmatpush2.msra.mxu0 0.0
    %1622 = vmatprep.mubr.f32.mxu0 0.0
    %1623 = vmatmul.mubr.f32.gmra.mxu0 %v1553
    %v1624 = vpop.f32.mrf.mxu0
    %v1625 = vadd.f32 %v1550, %v1624
    %v1626 = vpop.f32.mrf.mxu0
    %1627 = vmatprep.mubr.f32.mxu0 0.0
    %1628 = vmatmul.mubr.f32.gmra.mxu0 %v1556
    %v1629 = vpop.f32.mrf.mxu0
    %v1630 = vadd.f32 %v1550, %v1629
    %v1631 = vpop.f32.mrf.mxu0
    %1632 = vdwg.mxu0
    %v1633 = vadd.f32 %v1625, %v1458
    %v1634 = vadd.f32 %v1630, %v1459
    %v1635 = vsel %vm667, %v1633, 0.0
    %1636 = vadd.xlane.f32.xlu0 %v1635
    %v1637 = vpop.xlane.xlu0 %1636
    %v1638 = vsel %vm667, %v1634, 0.0
    %1639 = vadd.xlane.f32.xlu0 %v1638
    %v1640 = vpop.xlane.xlu0 %1639
    %v1641 = vmul.f32 %v1637, %v674
    %v1642 = vmul.f32 %v1640, %v674
    %v1643 = vsub.f32 %v1633, %v1641
    %v1644 = vsub.f32 %v1634, %v1642
    %v1645 = vmul.f32 %v1643, %v1643
    %v1646 = vmul.f32 %v1644, %v1644
    %v1647 = vsel %vm667, %v1645, 0.0
    %1648 = vadd.xlane.f32.xlu0 %v1647
    %v1649 = vpop.xlane.xlu0 %1648
    %v1650 = vsel %vm667, %v1646, 0.0
    %1651 = vadd.xlane.f32.xlu0 %v1650
    %v1652 = vpop.xlane.xlu0 %1651
    %v1653 = vmul.f32 %v1649, %v674
    %v1654 = vmul.f32 %v1652, %v674
    %v1655 = vadd.f32 %v1653, 1e-06
    %v1656 = vadd.f32 %v1654, 1e-06
    %v1657 = vrsqrt.pop %v1655
    %v1658 = vrsqrt.pop %v1656
    %v1659 = vmul.f32 %v1643, %v1657
    %v1660 = vmul.f32 %v1644, %v1658
    %v1661 = vlaneseq
    %v1662 = vshrl.u32 %v1661, 7
    %v1663 = vsub.s32 0, %v1662
    %v1664 = vrot.slane %v730, %v1663
    %v1665 = vmul.f32 %v1659, %v1664
    %v1666 = vmul.f32 %v1660, %v1664
    %v1667 = vlaneseq
    %v1668 = vshrl.u32 %v1667, 7
    %v1669 = vsub.s32 0, %v1668
    %v1670 = vrot.slane %v731, %v1669
    %v1671 = vadd.f32 %v1665, %v1670
    %v1672 = vadd.f32 %v1666, %v1670
    %v1673 = vld [vmem:[#allocation2 + $0x168] sm:$0xff]
    %v1674 = vld [vmem:[#allocation2 + $0x170] sm:$0xff]
    %v1675 = vld [vmem:[#allocation2 + $0x178] sm:$0xff]
    %v1676 = vld [vmem:[#allocation2 + $0x180] sm:$0xff]
    %v1677 = vld [vmem:[#allocation2 + $0x188] sm:$0x1]
    %v1678 = vld [vmem:[#allocation2 + $0x189] sm:$0x1]
    %v1679 = vld [vmem:[#allocation2 + $0x18a] sm:$0x1]
    %v1680 = vld [vmem:[#allocation2 + $0x18b] sm:$0x1]
    %v1681 = vld [vmem:[#allocation2 + $0x18c] sm:$0x1]
    %v1682 = vld [vmem:[#allocation2 + $0x18d] sm:$0x1]
    %v1683 = vld [vmem:[#allocation2 + $0x18e] sm:$0x1]
    %v1684 = vld [vmem:[#allocation2 + $0x18f] sm:$0x1]
    %v1685 = vld [vmem:[#allocation2 + $0x190] sm:$0xff]
    %v1686 = vld [vmem:[#allocation2 + $0x198] sm:$0xff]
    %v1687 = vld [vmem:[#allocation2 + $0x1a0] sm:$0xff]
    %v1688 = vld [vmem:[#allocation2 + $0x1a8] sm:$0xff]
    %v1689 = vld [vmem:[#allocation2 + $0x1b0] sm:$0xff]
    %v1690 = vld [vmem:[#allocation2 + $0x1b8] sm:$0xff]
    %v1691 = vld [vmem:[#allocation2 + $0x1c0] sm:$0xff]
    %v1692 = vld [vmem:[#allocation2 + $0x1c8] sm:$0xff]
    %v1693 = vld [vmem:[#allocation2 + $0x1d0] sm:$0xff]
    %v1694 = vld [vmem:[#allocation2 + $0x1d8] sm:$0xff]
    %v1695 = vld [vmem:[#allocation2 + $0x1e0] sm:$0xff]
    %v1696 = vld [vmem:[#allocation2 + $0x1e8] sm:$0xff]
    %v1697 = vlaneseq
    %v1698 = vshrl.u32 %v1697, 7
    %v1699 = vsub.s32 0, %v1698
    %v1700 = vrot.slane %v1677, %v1699
    %v1702 = vsel %vm667, %v1671, 0
    %v1705 = vsel %vm667, %v1672, 0
    %1707 = vmatprep.subr.mxu0 0.0
    %1708 = vmatpush1.msra.mxu0 0.0
    %1709 = vmatprep.subr.mxu0 0.0
    %1710 = vmatpush1.msra.mxu0 0.0
    %1711 = vmatprep.subr.mxu0 0.0
    %1712 = vmatpush1.msra.mxu0 0.0
    %1713 = vmatprep.subr.mxu0 0.0
    %1714 = vmatpush1.msra.mxu0 0.0
    %1715 = vmatprep.subr.mxu0 0.0
    %1716 = vmatpush1.msra.mxu0 0.0
    %1717 = vmatprep.subr.mxu0 0.0
    %1718 = vmatpush1.msra.mxu0 0.0
    %1719 = vmatprep.subr.mxu0 0.0
    %1720 = vmatpush1.msra.mxu0 0.0
    %1721 = vmatprep.subr.mxu0 0.0
    %1722 = vmatpush1.msra.mxu0 0.0
    %1723 = vmatprep.subr.mxu0 0.0
    %1724 = vmatpush1.msra.mxu0 0.0
    %1725 = vmatprep.subr.mxu0 0.0
    %1726 = vmatpush1.msra.mxu0 0.0
    %1727 = vmatprep.subr.mxu0 0.0
    %1728 = vmatpush1.msra.mxu0 0.0
    %1729 = vmatprep.subr.mxu0 0.0
    %1730 = vmatpush1.msra.mxu0 0.0
    %1731 = vmatprep.subr.mxu0 0.0
    %1732 = vmatpush1.msra.mxu0 %v1676
    %1733 = vmatprep.subr.mxu0 0.0
    %1734 = vmatpush1.msra.mxu0 %v1675
    %1735 = vmatprep.subr.mxu0 0.0
    %1736 = vmatpush1.msra.mxu0 %v1674
    %1737 = vmatprep.subr.mxu0 0.0
    %1738 = vmatpush1.msra.mxu0 %v1673
    %1739 = vmatprep.subr.mxu0 0.0
    %1740 = vmatpush2.msra.mxu0 0.0
    %1741 = vmatprep.subr.mxu0 0.0
    %1742 = vmatpush2.msra.mxu0 0.0
    %1743 = vmatprep.subr.mxu0 0.0
    %1744 = vmatpush2.msra.mxu0 0.0
    %1745 = vmatprep.subr.mxu0 0.0
    %1746 = vmatpush2.msra.mxu0 0.0
    %1747 = vmatprep.subr.mxu0 0.0
    %1748 = vmatpush2.msra.mxu0 0.0
    %1749 = vmatprep.subr.mxu0 0.0
    %1750 = vmatpush2.msra.mxu0 0.0
    %1751 = vmatprep.subr.mxu0 0.0
    %1752 = vmatpush2.msra.mxu0 0.0
    %1753 = vmatprep.subr.mxu0 0.0
    %1754 = vmatpush2.msra.mxu0 0.0
    %1755 = vmatprep.subr.mxu0 0.0
    %1756 = vmatpush2.msra.mxu0 0.0
    %1757 = vmatprep.subr.mxu0 0.0
    %1758 = vmatpush2.msra.mxu0 0.0
    %1759 = vmatprep.subr.mxu0 0.0
    %1760 = vmatpush2.msra.mxu0 0.0
    %1761 = vmatprep.subr.mxu0 0.0
    %1762 = vmatpush2.msra.mxu0 0.0
    %1763 = vmatprep.subr.mxu0 0.0
    %1764 = vmatpush2.msra.mxu0 0.0
    %1765 = vmatprep.subr.mxu0 0.0
    %1766 = vmatpush2.msra.mxu0 0.0
    %1767 = vmatprep.subr.mxu0 0.0
    %1768 = vmatpush2.msra.mxu0 0.0
    %1769 = vmatprep.subr.mxu0 0.0
    %1770 = vmatpush2.msra.mxu0 0.0
    %1771 = vmatprep.mubr.f32.mxu0 0.0
    %1772 = vmatmul.mubr.f32.gmra.mxu0 %v1702
    %v1773 = vpop.f32.mrf.mxu0
    %v1774 = vadd.f32 %v1700, %v1773
    %v1775 = vpop.f32.mrf.mxu0
    %1776 = vmatprep.mubr.f32.mxu0 0.0
    %1777 = vmatmul.mubr.f32.gmra.mxu0 %v1705
    %v1778 = vpop.f32.mrf.mxu0
    %v1779 = vadd.f32 %v1700, %v1778
    %v1780 = vpop.f32.mrf.mxu0
    %1781 = vdwg.mxu0
    %1784 = vrot.lane.b32.xlu0 %v1774, 96
    %v1785 = vpop.permute.xlu0 %1784
    %1786 = vrot.lane.b32.xlu0 %v1779, 96
    %v1787 = vpop.permute.xlu0 %1786
    %v1788 = vsel %vm835, %v1774, 0
    %v1790 = vsel %vm835, %v1779, 0
    %v1792 = vsel %vm835, %v1785, 0
    %v1794 = vsel %vm835, %v1787, 0
    %1796 = vmatprep.subr.mxu0 0.0
    %1797 = vmatpush1.xpose.msra.mxu0 0.0
    %1798 = vmatprep.subr.mxu0 0.0
    %1799 = vmatpush1.xpose.msra.mxu0 0.0
    %1800 = vmatprep.subr.mxu0 0.0
    %1801 = vmatpush1.xpose.msra.mxu0 0.0
    %1802 = vmatprep.subr.mxu0 0.0
    %1803 = vmatpush1.xpose.msra.mxu0 0.0
    %1804 = vmatprep.subr.mxu0 0.0
    %1805 = vmatpush1.xpose.msra.mxu0 0.0
    %1806 = vmatprep.subr.mxu0 0.0
    %1807 = vmatpush1.xpose.msra.mxu0 0.0
    %1808 = vmatprep.subr.mxu0 0.0
    %1809 = vmatpush1.xpose.msra.mxu0 0.0
    %1810 = vmatprep.subr.mxu0 0.0
    %1811 = vmatpush1.xpose.msra.mxu0 0.0
    %1812 = vmatprep.subr.mxu0 0.0
    %1813 = vmatpush1.xpose.msra.mxu0 0.0
    %1814 = vmatprep.subr.mxu0 0.0
    %1815 = vmatpush1.xpose.msra.mxu0 0.0
    %1816 = vmatprep.subr.mxu0 0.0
    %1817 = vmatpush1.xpose.msra.mxu0 0.0
    %1818 = vmatprep.subr.mxu0 0.0
    %1819 = vmatpush1.xpose.msra.mxu0 0.0
    %1820 = vmatprep.subr.mxu0 0.0
    %1821 = vmatpush1.xpose.msra.mxu0 0.0
    %1822 = vmatprep.subr.mxu0 0.0
    %1823 = vmatpush1.xpose.msra.mxu0 0.0
    %1824 = vmatprep.subr.mxu0 0.0
    %1825 = vmatpush1.xpose.msra.mxu0 %v1794
    %1826 = vmatprep.subr.mxu0 0.0
    %1827 = vmatpush1.xpose.msra.mxu0 %v1792
    %1828 = vmatprep.subr.mxu0 0.0
    %1829 = vmatpush2.xpose.msra.mxu0 0.0
    %1830 = vmatprep.subr.mxu0 0.0
    %1831 = vmatpush2.xpose.msra.mxu0 0.0
    %1832 = vmatprep.subr.mxu0 0.0
    %1833 = vmatpush2.xpose.msra.mxu0 0.0
    %1834 = vmatprep.subr.mxu0 0.0
    %1835 = vmatpush2.xpose.msra.mxu0 0.0
    %1836 = vmatprep.subr.mxu0 0.0
    %1837 = vmatpush2.xpose.msra.mxu0 0.0
    %1838 = vmatprep.subr.mxu0 0.0
    %1839 = vmatpush2.xpose.msra.mxu0 0.0
    %1840 = vmatprep.subr.mxu0 0.0
    %1841 = vmatpush2.xpose.msra.mxu0 0.0
    %1842 = vmatprep.subr.mxu0 0.0
    %1843 = vmatpush2.xpose.msra.mxu0 0.0
    %1844 = vmatprep.subr.mxu0 0.0
    %1845 = vmatpush2.xpose.msra.mxu0 0.0
    %1846 = vmatprep.subr.mxu0 0.0
    %1847 = vmatpush2.xpose.msra.mxu0 0.0
    %1848 = vmatprep.subr.mxu0 0.0
    %1849 = vmatpush2.xpose.msra.mxu0 0.0
    %1850 = vmatprep.subr.mxu0 0.0
    %1851 = vmatpush2.xpose.msra.mxu0 0.0
    %1852 = vmatprep.subr.mxu0 0.0
    %1853 = vmatpush2.xpose.msra.mxu0 0.0
    %1854 = vmatprep.subr.mxu0 0.0
    %1855 = vmatpush2.xpose.msra.mxu0 0.0
    %1856 = vmatprep.subr.mxu0 0.0
    %1857 = vmatpush2.xpose.msra.mxu0 0.0
    %1858 = vmatprep.subr.mxu0 0.0
    %1859 = vmatpush2.xpose.msra.mxu0 0.0
    %1860 = vmatprep.mubr.f32.mxu0 0.0
    %1861 = vmatmul.mubr.f32.gmra.mxu0 %v1788
    %v1862 = vpop.f32.mrf.mxu0
    %v1863 = vadd.f32 0.0, %v1862
    %v1864 = vpop.f32.mrf.mxu0
    %1865 = vmatprep.mubr.f32.mxu0 0.0
    %1866 = vmatmul.mubr.f32.gmra.mxu0 %v1790
    %v1867 = vpop.f32.mrf.mxu0
    %v1868 = vadd.f32 0.0, %v1867
    %v1869 = vpop.f32.mrf.mxu0
    %1870 = vdwg.mxu0
    %v1871 = vmul.f32 %v1863, 0.25
    %v1872 = vmul.f32 %v1868, 0.25
    %v1873 = vadd.f32 %v1871, %v718
    %v1874 = vadd.f32 %v1872, %v719
    %v1875 = vsel %vm835, %v1873, -inf
    %1876 = vmax.xlane.f32.xlu0 %v1875
    %v1877 = vpop.xlane.xlu0 %1876
    %v1878 = vsel %vm835, %v1874, -inf
    %1879 = vmax.xlane.f32.xlu0 %v1878
    %v1880 = vpop.xlane.xlu0 %1879
    %v1881 = vsub.f32 %v1873, %v1877
    %v1882 = vsub.f32 %v1874, %v1880
    %v1883 = vmul.f32 %v1881, 1.442695
    %v1884 = vpow.pop %v1883
    %v1885 = vmul.f32 %v1882, 1.442695
    %v1886 = vpow.pop %v1885
    %v1887 = vsel %vm835, %v1884, 0.0
    %1888 = vadd.xlane.f32.xlu0 %v1887
    %v1889 = vpop.xlane.xlu0 %1888
    %v1890 = vsel %vm835, %v1886, 0.0
    %1891 = vadd.xlane.f32.xlu0 %v1890
    %v1892 = vpop.xlane.xlu0 %1891
    %v1893 = vrcp.pop %v1889
    %v1894 = vrcp.pop %v1892
    %v1895 = vmul.f32 %v1884, %v1893
    %v1896 = vmul.f32 %v1886, %v1894
    %1897 = vrot.lane.b32.xlu0 %v1774, 64
    %v1898 = vpop.permute.xlu0 %1897
    %1899 = vrot.lane.b32.xlu0 %v1779, 64
    %v1900 = vpop.permute.xlu0 %1899
    %v1904 = vsel %vm835, %v1895, 0
    %v1907 = vsel %vm835, %v1896, 0
    %1909 = vmatprep.subr.mxu0 0.0
    %1910 = vmatpush1.msra.mxu0 0.0
    %1911 = vmatprep.subr.mxu0 0.0
    %1912 = vmatpush1.msra.mxu0 0.0
    %1913 = vmatprep.subr.mxu0 0.0
    %1914 = vmatpush1.msra.mxu0 0.0
    %1915 = vmatprep.subr.mxu0 0.0
    %1916 = vmatpush1.msra.mxu0 0.0
    %1917 = vmatprep.subr.mxu0 0.0
    %1918 = vmatpush1.msra.mxu0 0.0
    %1919 = vmatprep.subr.mxu0 0.0
    %1920 = vmatpush1.msra.mxu0 0.0
    %1921 = vmatprep.subr.mxu0 0.0
    %1922 = vmatpush1.msra.mxu0 0.0
    %1923 = vmatprep.subr.mxu0 0.0
    %1924 = vmatpush1.msra.mxu0 0.0
    %1925 = vmatprep.subr.mxu0 0.0
    %1926 = vmatpush1.msra.mxu0 0.0
    %1927 = vmatprep.subr.mxu0 0.0
    %1928 = vmatpush1.msra.mxu0 0.0
    %1929 = vmatprep.subr.mxu0 0.0
    %1930 = vmatpush1.msra.mxu0 0.0
    %1931 = vmatprep.subr.mxu0 0.0
    %1932 = vmatpush1.msra.mxu0 0.0
    %1933 = vmatprep.subr.mxu0 0.0
    %1934 = vmatpush1.msra.mxu0 0.0
    %1935 = vmatprep.subr.mxu0 0.0
    %1936 = vmatpush1.msra.mxu0 0.0
    %1937 = vmatprep.subr.mxu0 0.0
    %1938 = vmatpush1.msra.mxu0 %v1900
    %1939 = vmatprep.subr.mxu0 0.0
    %1940 = vmatpush1.msra.mxu0 %v1898
    %1941 = vmatprep.subr.mxu0 0.0
    %1942 = vmatpush2.msra.mxu0 0.0
    %1943 = vmatprep.subr.mxu0 0.0
    %1944 = vmatpush2.msra.mxu0 0.0
    %1945 = vmatprep.subr.mxu0 0.0
    %1946 = vmatpush2.msra.mxu0 0.0
    %1947 = vmatprep.subr.mxu0 0.0
    %1948 = vmatpush2.msra.mxu0 0.0
    %1949 = vmatprep.subr.mxu0 0.0
    %1950 = vmatpush2.msra.mxu0 0.0
    %1951 = vmatprep.subr.mxu0 0.0
    %1952 = vmatpush2.msra.mxu0 0.0
    %1953 = vmatprep.subr.mxu0 0.0
    %1954 = vmatpush2.msra.mxu0 0.0
    %1955 = vmatprep.subr.mxu0 0.0
    %1956 = vmatpush2.msra.mxu0 0.0
    %1957 = vmatprep.subr.mxu0 0.0
    %1958 = vmatpush2.msra.mxu0 0.0
    %1959 = vmatprep.subr.mxu0 0.0
    %1960 = vmatpush2.msra.mxu0 0.0
    %1961 = vmatprep.subr.mxu0 0.0
    %1962 = vmatpush2.msra.mxu0 0.0
    %1963 = vmatprep.subr.mxu0 0.0
    %1964 = vmatpush2.msra.mxu0 0.0
    %1965 = vmatprep.subr.mxu0 0.0
    %1966 = vmatpush2.msra.mxu0 0.0
    %1967 = vmatprep.subr.mxu0 0.0
    %1968 = vmatpush2.msra.mxu0 0.0
    %1969 = vmatprep.subr.mxu0 0.0
    %1970 = vmatpush2.msra.mxu0 0.0
    %1971 = vmatprep.subr.mxu0 0.0
    %1972 = vmatpush2.msra.mxu0 0.0
    %1973 = vmatprep.mubr.f32.mxu0 0.0
    %1974 = vmatmul.mubr.f32.gmra.mxu0 %v1904
    %v1975 = vpop.f32.mrf.mxu0
    %v1976 = vadd.f32 0.0, %v1975
    %v1977 = vpop.f32.mrf.mxu0
    %1978 = vmatprep.mubr.f32.mxu0 0.0
    %1979 = vmatmul.mubr.f32.gmra.mxu0 %v1907
    %v1980 = vpop.f32.mrf.mxu0
    %v1981 = vadd.f32 0.0, %v1980
    %v1982 = vpop.f32.mrf.mxu0
    %1983 = vdwg.mxu0
    %1984 = vrot.lane.b32.xlu0 %v1774, 112
    %v1985 = vpop.permute.xlu0 %1984
    %1986 = vrot.lane.b32.xlu0 %v1779, 112
    %v1987 = vpop.permute.xlu0 %1986
    %1988 = vrot.lane.b32.xlu0 %v1774, 80
    %v1989 = vpop.permute.xlu0 %1988
    %1990 = vrot.lane.b32.xlu0 %v1779, 80
    %v1991 = vpop.permute.xlu0 %1990
    %v1992 = vsel %vm835, %v1985, 0
    %v1994 = vsel %vm835, %v1987, 0
    %v1996 = vsel %vm835, %v1989, 0
    %v1998 = vsel %vm835, %v1991, 0
    %2000 = vmatprep.subr.mxu0 0.0
    %2001 = vmatpush1.xpose.msra.mxu0 0.0
    %2002 = vmatprep.subr.mxu0 0.0
    %2003 = vmatpush1.xpose.msra.mxu0 0.0
    %2004 = vmatprep.subr.mxu0 0.0
    %2005 = vmatpush1.xpose.msra.mxu0 0.0
    %2006 = vmatprep.subr.mxu0 0.0
    %2007 = vmatpush1.xpose.msra.mxu0 0.0
    %2008 = vmatprep.subr.mxu0 0.0
    %2009 = vmatpush1.xpose.msra.mxu0 0.0
    %2010 = vmatprep.subr.mxu0 0.0
    %2011 = vmatpush1.xpose.msra.mxu0 0.0
    %2012 = vmatprep.subr.mxu0 0.0
    %2013 = vmatpush1.xpose.msra.mxu0 0.0
    %2014 = vmatprep.subr.mxu0 0.0
    %2015 = vmatpush1.xpose.msra.mxu0 0.0
    %2016 = vmatprep.subr.mxu0 0.0
    %2017 = vmatpush1.xpose.msra.mxu0 0.0
    %2018 = vmatprep.subr.mxu0 0.0
    %2019 = vmatpush1.xpose.msra.mxu0 0.0
    %2020 = vmatprep.subr.mxu0 0.0
    %2021 = vmatpush1.xpose.msra.mxu0 0.0
    %2022 = vmatprep.subr.mxu0 0.0
    %2023 = vmatpush1.xpose.msra.mxu0 0.0
    %2024 = vmatprep.subr.mxu0 0.0
    %2025 = vmatpush1.xpose.msra.mxu0 0.0
    %2026 = vmatprep.subr.mxu0 0.0
    %2027 = vmatpush1.xpose.msra.mxu0 0.0
    %2028 = vmatprep.subr.mxu0 0.0
    %2029 = vmatpush1.xpose.msra.mxu0 %v1998
    %2030 = vmatprep.subr.mxu0 0.0
    %2031 = vmatpush1.xpose.msra.mxu0 %v1996
    %2032 = vmatprep.subr.mxu0 0.0
    %2033 = vmatpush2.xpose.msra.mxu0 0.0
    %2034 = vmatprep.subr.mxu0 0.0
    %2035 = vmatpush2.xpose.msra.mxu0 0.0
    %2036 = vmatprep.subr.mxu0 0.0
    %2037 = vmatpush2.xpose.msra.mxu0 0.0
    %2038 = vmatprep.subr.mxu0 0.0
    %2039 = vmatpush2.xpose.msra.mxu0 0.0
    %2040 = vmatprep.subr.mxu0 0.0
    %2041 = vmatpush2.xpose.msra.mxu0 0.0
    %2042 = vmatprep.subr.mxu0 0.0
    %2043 = vmatpush2.xpose.msra.mxu0 0.0
    %2044 = vmatprep.subr.mxu0 0.0
    %2045 = vmatpush2.xpose.msra.mxu0 0.0
    %2046 = vmatprep.subr.mxu0 0.0
    %2047 = vmatpush2.xpose.msra.mxu0 0.0
    %2048 = vmatprep.subr.mxu0 0.0
    %2049 = vmatpush2.xpose.msra.mxu0 0.0
    %2050 = vmatprep.subr.mxu0 0.0
    %2051 = vmatpush2.xpose.msra.mxu0 0.0
    %2052 = vmatprep.subr.mxu0 0.0
    %2053 = vmatpush2.xpose.msra.mxu0 0.0
    %2054 = vmatprep.subr.mxu0 0.0
    %2055 = vmatpush2.xpose.msra.mxu0 0.0
    %2056 = vmatprep.subr.mxu0 0.0
    %2057 = vmatpush2.xpose.msra.mxu0 0.0
    %2058 = vmatprep.subr.mxu0 0.0
    %2059 = vmatpush2.xpose.msra.mxu0 0.0
    %2060 = vmatprep.subr.mxu0 0.0
    %2061 = vmatpush2.xpose.msra.mxu0 0.0
    %2062 = vmatprep.subr.mxu0 0.0
    %2063 = vmatpush2.xpose.msra.mxu0 0.0
    %2064 = vmatprep.mubr.f32.mxu0 0.0
    %2065 = vmatmul.mubr.f32.gmra.mxu0 %v1992
    %v2066 = vpop.f32.mrf.mxu0
    %v2067 = vadd.f32 0.0, %v2066
    %v2068 = vpop.f32.mrf.mxu0
    %2069 = vmatprep.mubr.f32.mxu0 0.0
    %2070 = vmatmul.mubr.f32.gmra.mxu0 %v1994
    %v2071 = vpop.f32.mrf.mxu0
    %v2072 = vadd.f32 0.0, %v2071
    %v2073 = vpop.f32.mrf.mxu0
    %2074 = vdwg.mxu0
    %v2075 = vmul.f32 %v2067, 0.25
    %v2076 = vmul.f32 %v2072, 0.25
    %v2077 = vadd.f32 %v2075, %v718
    %v2078 = vadd.f32 %v2076, %v719
    %v2079 = vsel %vm835, %v2077, -inf
    %2080 = vmax.xlane.f32.xlu0 %v2079
    %v2081 = vpop.xlane.xlu0 %2080
    %v2082 = vsel %vm835, %v2078, -inf
    %2083 = vmax.xlane.f32.xlu0 %v2082
    %v2084 = vpop.xlane.xlu0 %2083
    %v2085 = vsub.f32 %v2077, %v2081
    %v2086 = vsub.f32 %v2078, %v2084
    %v2087 = vmul.f32 %v2085, 1.442695
    %v2088 = vpow.pop %v2087
    %v2089 = vmul.f32 %v2086, 1.442695
    %v2090 = vpow.pop %v2089
    %v2091 = vsel %vm835, %v2088, 0.0
    %2092 = vadd.xlane.f32.xlu0 %v2091
    %v2093 = vpop.xlane.xlu0 %2092
    %v2094 = vsel %vm835, %v2090, 0.0
    %2095 = vadd.xlane.f32.xlu0 %v2094
    %v2096 = vpop.xlane.xlu0 %2095
    %v2097 = vrcp.pop %v2093
    %v2098 = vrcp.pop %v2096
    %v2099 = vmul.f32 %v2088, %v2097
    %v2100 = vmul.f32 %v2090, %v2098
    %2101 = vrot.lane.b32.xlu0 %v1774, 48
    %v2102 = vpop.permute.xlu0 %2101
    %2103 = vrot.lane.b32.xlu0 %v1779, 48
    %v2104 = vpop.permute.xlu0 %2103
    %v2108 = vsel %vm835, %v2099, 0
    %v2111 = vsel %vm835, %v2100, 0
    %2113 = vmatprep.subr.mxu0 0.0
    %2114 = vmatpush1.msra.mxu0 0.0
    %2115 = vmatprep.subr.mxu0 0.0
    %2116 = vmatpush1.msra.mxu0 0.0
    %2117 = vmatprep.subr.mxu0 0.0
    %2118 = vmatpush1.msra.mxu0 0.0
    %2119 = vmatprep.subr.mxu0 0.0
    %2120 = vmatpush1.msra.mxu0 0.0
    %2121 = vmatprep.subr.mxu0 0.0
    %2122 = vmatpush1.msra.mxu0 0.0
    %2123 = vmatprep.subr.mxu0 0.0
    %2124 = vmatpush1.msra.mxu0 0.0
    %2125 = vmatprep.subr.mxu0 0.0
    %2126 = vmatpush1.msra.mxu0 0.0
    %2127 = vmatprep.subr.mxu0 0.0
    %2128 = vmatpush1.msra.mxu0 0.0
    %2129 = vmatprep.subr.mxu0 0.0
    %2130 = vmatpush1.msra.mxu0 0.0
    %2131 = vmatprep.subr.mxu0 0.0
    %2132 = vmatpush1.msra.mxu0 0.0
    %2133 = vmatprep.subr.mxu0 0.0
    %2134 = vmatpush1.msra.mxu0 0.0
    %2135 = vmatprep.subr.mxu0 0.0
    %2136 = vmatpush1.msra.mxu0 0.0
    %2137 = vmatprep.subr.mxu0 0.0
    %2138 = vmatpush1.msra.mxu0 0.0
    %2139 = vmatprep.subr.mxu0 0.0
    %2140 = vmatpush1.msra.mxu0 0.0
    %2141 = vmatprep.subr.mxu0 0.0
    %2142 = vmatpush1.msra.mxu0 %v2104
    %2143 = vmatprep.subr.mxu0 0.0
    %2144 = vmatpush1.msra.mxu0 %v2102
    %2145 = vmatprep.subr.mxu0 0.0
    %2146 = vmatpush2.msra.mxu0 0.0
    %2147 = vmatprep.subr.mxu0 0.0
    %2148 = vmatpush2.msra.mxu0 0.0
    %2149 = vmatprep.subr.mxu0 0.0
    %2150 = vmatpush2.msra.mxu0 0.0
    %2151 = vmatprep.subr.mxu0 0.0
    %2152 = vmatpush2.msra.mxu0 0.0
    %2153 = vmatprep.subr.mxu0 0.0
    %2154 = vmatpush2.msra.mxu0 0.0
    %2155 = vmatprep.subr.mxu0 0.0
    %2156 = vmatpush2.msra.mxu0 0.0
    %2157 = vmatprep.subr.mxu0 0.0
    %2158 = vmatpush2.msra.mxu0 0.0
    %2159 = vmatprep.subr.mxu0 0.0
    %2160 = vmatpush2.msra.mxu0 0.0
    %2161 = vmatprep.subr.mxu0 0.0
    %2162 = vmatpush2.msra.mxu0 0.0
    %2163 = vmatprep.subr.mxu0 0.0
    %2164 = vmatpush2.msra.mxu0 0.0
    %2165 = vmatprep.subr.mxu0 0.0
    %2166 = vmatpush2.msra.mxu0 0.0
    %2167 = vmatprep.subr.mxu0 0.0
    %2168 = vmatpush2.msra.mxu0 0.0
    %2169 = vmatprep.subr.mxu0 0.0
    %2170 = vmatpush2.msra.mxu0 0.0
    %2171 = vmatprep.subr.mxu0 0.0
    %2172 = vmatpush2.msra.mxu0 0.0
    %2173 = vmatprep.subr.mxu0 0.0
    %2174 = vmatpush2.msra.mxu0 0.0
    %2175 = vmatprep.subr.mxu0 0.0
    %2176 = vmatpush2.msra.mxu0 0.0
    %2177 = vmatprep.mubr.f32.mxu0 0.0
    %2178 = vmatmul.mubr.f32.gmra.mxu0 %v2108
    %v2179 = vpop.f32.mrf.mxu0
    %v2180 = vadd.f32 0.0, %v2179
    %v2181 = vpop.f32.mrf.mxu0
    %2182 = vmatprep.mubr.f32.mxu0 0.0
    %2183 = vmatmul.mubr.f32.gmra.mxu0 %v2111
    %v2184 = vpop.f32.mrf.mxu0
    %v2185 = vadd.f32 0.0, %v2184
    %v2186 = vpop.f32.mrf.mxu0
    %2187 = vdwg.mxu0
    %2190 = vrot.lane.b32.xlu0 %v1675, 32
    %v2191 = vpop.permute.xlu0 %2190
    %2192 = vrot.lane.b32.xlu0 %v1676, 32
    %v2193 = vpop.permute.xlu0 %2192
    %v2197 = vsel %vm835, %v2180, 0
    %v2200 = vsel %vm835, %v2185, 0
    %2202 = vmatprep.subr.mxu0 0.0
    %2203 = vmatpush1.msra.mxu0 0.0
    %2204 = vmatprep.subr.mxu0 0.0
    %2205 = vmatpush1.msra.mxu0 0.0
    %2206 = vmatprep.subr.mxu0 0.0
    %2207 = vmatpush1.msra.mxu0 0.0
    %2208 = vmatprep.subr.mxu0 0.0
    %2209 = vmatpush1.msra.mxu0 0.0
    %2210 = vmatprep.subr.mxu0 0.0
    %2211 = vmatpush1.msra.mxu0 0.0
    %2212 = vmatprep.subr.mxu0 0.0
    %2213 = vmatpush1.msra.mxu0 0.0
    %2214 = vmatprep.subr.mxu0 0.0
    %2215 = vmatpush1.msra.mxu0 0.0
    %2216 = vmatprep.subr.mxu0 0.0
    %2217 = vmatpush1.msra.mxu0 0.0
    %2218 = vmatprep.subr.mxu0 0.0
    %2219 = vmatpush1.msra.mxu0 0.0
    %2220 = vmatprep.subr.mxu0 0.0
    %2221 = vmatpush1.msra.mxu0 0.0
    %2222 = vmatprep.subr.mxu0 0.0
    %2223 = vmatpush1.msra.mxu0 0.0
    %2224 = vmatprep.subr.mxu0 0.0
    %2225 = vmatpush1.msra.mxu0 0.0
    %2226 = vmatprep.subr.mxu0 0.0
    %2227 = vmatpush1.msra.mxu0 0.0
    %2228 = vmatprep.subr.mxu0 0.0
    %2229 = vmatpush1.msra.mxu0 0.0
    %2230 = vmatprep.subr.mxu0 0.0
    %2231 = vmatpush1.msra.mxu0 %v2193
    %2232 = vmatprep.subr.mxu0 0.0
    %2233 = vmatpush1.msra.mxu0 %v2191
    %2234 = vmatprep.subr.mxu0 0.0
    %2235 = vmatpush2.msra.mxu0 0.0
    %2236 = vmatprep.subr.mxu0 0.0
    %2237 = vmatpush2.msra.mxu0 0.0
    %2238 = vmatprep.subr.mxu0 0.0
    %2239 = vmatpush2.msra.mxu0 0.0
    %2240 = vmatprep.subr.mxu0 0.0
    %2241 = vmatpush2.msra.mxu0 0.0
    %2242 = vmatprep.subr.mxu0 0.0
    %2243 = vmatpush2.msra.mxu0 0.0
    %2244 = vmatprep.subr.mxu0 0.0
    %2245 = vmatpush2.msra.mxu0 0.0
    %2246 = vmatprep.subr.mxu0 0.0
    %2247 = vmatpush2.msra.mxu0 0.0
    %2248 = vmatprep.subr.mxu0 0.0
    %2249 = vmatpush2.msra.mxu0 0.0
    %2250 = vmatprep.subr.mxu0 0.0
    %2251 = vmatpush2.msra.mxu0 0.0
    %2252 = vmatprep.subr.mxu0 0.0
    %2253 = vmatpush2.msra.mxu0 0.0
    %2254 = vmatprep.subr.mxu0 0.0
    %2255 = vmatpush2.msra.mxu0 0.0
    %2256 = vmatprep.subr.mxu0 0.0
    %2257 = vmatpush2.msra.mxu0 0.0
    %2258 = vmatprep.subr.mxu0 0.0
    %2259 = vmatpush2.msra.mxu0 0.0
    %2260 = vmatprep.subr.mxu0 0.0
    %2261 = vmatpush2.msra.mxu0 0.0
    %2262 = vmatprep.subr.mxu0 0.0
    %2263 = vmatpush2.msra.mxu0 0.0
    %2264 = vmatprep.subr.mxu0 0.0
    %2265 = vmatpush2.msra.mxu0 0.0
    %2266 = vmatprep.mubr.f32.mxu0 0.0
    %2267 = vmatmul.mubr.f32.gmra.mxu0 %v2197
    %v2268 = vpop.f32.mrf.mxu0
    %v2269 = vadd.f32 0.0, %v2268
    %v2270 = vpop.f32.mrf.mxu0
    %2271 = vmatprep.mubr.f32.mxu0 0.0
    %2272 = vmatmul.mubr.f32.gmra.mxu0 %v2200
    %v2273 = vpop.f32.mrf.mxu0
    %v2274 = vadd.f32 0.0, %v2273
    %v2275 = vpop.f32.mrf.mxu0
    %2276 = vdwg.mxu0
    %2279 = vrot.lane.b32.xlu0 %v1673, 32
    %v2280 = vpop.permute.xlu0 %2279
    %2281 = vrot.lane.b32.xlu0 %v1674, 32
    %v2282 = vpop.permute.xlu0 %2281
    %v2286 = vsel %vm835, %v1976, 0
    %v2289 = vsel %vm835, %v1981, 0
    %2291 = vmatprep.subr.mxu0 0.0
    %2292 = vmatpush1.msra.mxu0 0.0
    %2293 = vmatprep.subr.mxu0 0.0
    %2294 = vmatpush1.msra.mxu0 0.0
    %2295 = vmatprep.subr.mxu0 0.0
    %2296 = vmatpush1.msra.mxu0 0.0
    %2297 = vmatprep.subr.mxu0 0.0
    %2298 = vmatpush1.msra.mxu0 0.0
    %2299 = vmatprep.subr.mxu0 0.0
    %2300 = vmatpush1.msra.mxu0 0.0
    %2301 = vmatprep.subr.mxu0 0.0
    %2302 = vmatpush1.msra.mxu0 0.0
    %2303 = vmatprep.subr.mxu0 0.0
    %2304 = vmatpush1.msra.mxu0 0.0
    %2305 = vmatprep.subr.mxu0 0.0
    %2306 = vmatpush1.msra.mxu0 0.0
    %2307 = vmatprep.subr.mxu0 0.0
    %2308 = vmatpush1.msra.mxu0 0.0
    %2309 = vmatprep.subr.mxu0 0.0
    %2310 = vmatpush1.msra.mxu0 0.0
    %2311 = vmatprep.subr.mxu0 0.0
    %2312 = vmatpush1.msra.mxu0 0.0
    %2313 = vmatprep.subr.mxu0 0.0
    %2314 = vmatpush1.msra.mxu0 0.0
    %2315 = vmatprep.subr.mxu0 0.0
    %2316 = vmatpush1.msra.mxu0 0.0
    %2317 = vmatprep.subr.mxu0 0.0
    %2318 = vmatpush1.msra.mxu0 0.0
    %2319 = vmatprep.subr.mxu0 0.0
    %2320 = vmatpush1.msra.mxu0 %v2282
    %2321 = vmatprep.subr.mxu0 0.0
    %2322 = vmatpush1.msra.mxu0 %v2280
    %2323 = vmatprep.subr.mxu0 0.0
    %2324 = vmatpush2.msra.mxu0 0.0
    %2325 = vmatprep.subr.mxu0 0.0
    %2326 = vmatpush2.msra.mxu0 0.0
    %2327 = vmatprep.subr.mxu0 0.0
    %2328 = vmatpush2.msra.mxu0 0.0
    %2329 = vmatprep.subr.mxu0 0.0
    %2330 = vmatpush2.msra.mxu0 0.0
    %2331 = vmatprep.subr.mxu0 0.0
    %2332 = vmatpush2.msra.mxu0 0.0
    %2333 = vmatprep.subr.mxu0 0.0
    %2334 = vmatpush2.msra.mxu0 0.0
    %2335 = vmatprep.subr.mxu0 0.0
    %2336 = vmatpush2.msra.mxu0 0.0
    %2337 = vmatprep.subr.mxu0 0.0
    %2338 = vmatpush2.msra.mxu0 0.0
    %2339 = vmatprep.subr.mxu0 0.0
    %2340 = vmatpush2.msra.mxu0 0.0
    %2341 = vmatprep.subr.mxu0 0.0
    %2342 = vmatpush2.msra.mxu0 0.0
    %2343 = vmatprep.subr.mxu0 0.0
    %2344 = vmatpush2.msra.mxu0 0.0
    %2345 = vmatprep.subr.mxu0 0.0
    %2346 = vmatpush2.msra.mxu0 0.0
    %2347 = vmatprep.subr.mxu0 0.0
    %2348 = vmatpush2.msra.mxu0 0.0
    %2349 = vmatprep.subr.mxu0 0.0
    %2350 = vmatpush2.msra.mxu0 0.0
    %2351 = vmatprep.subr.mxu0 0.0
    %2352 = vmatpush2.msra.mxu0 0.0
    %2353 = vmatprep.subr.mxu0 0.0
    %2354 = vmatpush2.msra.mxu0 0.0
    %2355 = vmatprep.mubr.f32.mxu0 0.0
    %2356 = vmatmul.mubr.f32.gmra.mxu0 %v2286
    %v2357 = vpop.f32.mrf.mxu0
    %v2358 = vadd.f32 %v2269, %v2357
    %v2359 = vpop.f32.mrf.mxu0
    %2360 = vmatprep.mubr.f32.mxu0 0.0
    %2361 = vmatmul.mubr.f32.gmra.mxu0 %v2289
    %v2362 = vpop.f32.mrf.mxu0
    %v2363 = vadd.f32 %v2274, %v2362
    %v2364 = vpop.f32.mrf.mxu0
    %2365 = vdwg.mxu0
    %v2366 = vlaneseq
    %v2367 = vshrl.u32 %v2366, 7
    %v2368 = vsub.s32 0, %v2367
    %v2369 = vrot.slane %v1678, %v2368
    %v2370 = vadd.f32 %v2358, %v2369
    %v2371 = vadd.f32 %v2363, %v2369
    %v2372 = vadd.f32 %v2370, %v1671
    %v2373 = vadd.f32 %v2371, %v1672
    %v2374 = vsel %vm667, %v2372, 0.0
    %2375 = vadd.xlane.f32.xlu0 %v2374
    %v2376 = vpop.xlane.xlu0 %2375
    %v2377 = vsel %vm667, %v2373, 0.0
    %2378 = vadd.xlane.f32.xlu0 %v2377
    %v2379 = vpop.xlane.xlu0 %2378
    %v2380 = vmul.f32 %v2376, %v674
    %v2381 = vmul.f32 %v2379, %v674
    %v2382 = vsub.f32 %v2372, %v2380
    %v2383 = vsub.f32 %v2373, %v2381
    %v2384 = vmul.f32 %v2382, %v2382
    %v2385 = vmul.f32 %v2383, %v2383
    %v2386 = vsel %vm667, %v2384, 0.0
    %2387 = vadd.xlane.f32.xlu0 %v2386
    %v2388 = vpop.xlane.xlu0 %2387
    %v2389 = vsel %vm667, %v2385, 0.0
    %2390 = vadd.xlane.f32.xlu0 %v2389
    %v2391 = vpop.xlane.xlu0 %2390
    %v2392 = vmul.f32 %v2388, %v674
    %v2393 = vmul.f32 %v2391, %v674
    %v2394 = vadd.f32 %v2392, 1e-06
    %v2395 = vadd.f32 %v2393, 1e-06
    %v2396 = vrsqrt.pop %v2394
    %v2397 = vrsqrt.pop %v2395
    %v2398 = vmul.f32 %v2382, %v2396
    %v2399 = vmul.f32 %v2383, %v2397
    %v2400 = vlaneseq
    %v2401 = vshrl.u32 %v2400, 7
    %v2402 = vsub.s32 0, %v2401
    %v2403 = vrot.slane %v1679, %v2402
    %v2404 = vmul.f32 %v2398, %v2403
    %v2405 = vmul.f32 %v2399, %v2403
    %v2406 = vlaneseq
    %v2407 = vshrl.u32 %v2406, 7
    %v2408 = vsub.s32 0, %v2407
    %v2409 = vrot.slane %v1680, %v2408
    %v2410 = vadd.f32 %v2404, %v2409
    %v2411 = vadd.f32 %v2405, %v2409
    %v2412 = vlaneseq
    %v2413 = vshrl.u32 %v2412, 7
    %v2414 = vsub.s32 0, %v2413
    %v2415 = vrot.slane %v1681, %v2414
    %v2417 = vsel %vm667, %v2410, 0
    %v2420 = vsel %vm667, %v2411, 0
    %2422 = vmatprep.subr.mxu0 0.0
    %2423 = vmatpush1.msra.mxu0 0.0
    %2424 = vmatprep.subr.mxu0 0.0
    %2425 = vmatpush1.msra.mxu0 0.0
    %2426 = vmatprep.subr.mxu0 0.0
    %2427 = vmatpush1.msra.mxu0 0.0
    %2428 = vmatprep.subr.mxu0 0.0
    %2429 = vmatpush1.msra.mxu0 0.0
    %2430 = vmatprep.subr.mxu0 0.0
    %2431 = vmatpush1.msra.mxu0 0.0
    %2432 = vmatprep.subr.mxu0 0.0
    %2433 = vmatpush1.msra.mxu0 0.0
    %2434 = vmatprep.subr.mxu0 0.0
    %2435 = vmatpush1.msra.mxu0 0.0
    %2436 = vmatprep.subr.mxu0 0.0
    %2437 = vmatpush1.msra.mxu0 0.0
    %2438 = vmatprep.subr.mxu0 0.0
    %2439 = vmatpush1.msra.mxu0 0.0
    %2440 = vmatprep.subr.mxu0 0.0
    %2441 = vmatpush1.msra.mxu0 0.0
    %2442 = vmatprep.subr.mxu0 0.0
    %2443 = vmatpush1.msra.mxu0 0.0
    %2444 = vmatprep.subr.mxu0 0.0
    %2445 = vmatpush1.msra.mxu0 0.0
    %2446 = vmatprep.subr.mxu0 0.0
    %2447 = vmatpush1.msra.mxu0 %v1688
    %2448 = vmatprep.subr.mxu0 0.0
    %2449 = vmatpush1.msra.mxu0 %v1687
    %2450 = vmatprep.subr.mxu0 0.0
    %2451 = vmatpush1.msra.mxu0 %v1686
    %2452 = vmatprep.subr.mxu0 0.0
    %2453 = vmatpush1.msra.mxu0 %v1685
    %2454 = vmatprep.subr.mxu0 0.0
    %2455 = vmatpush2.msra.mxu0 0.0
    %2456 = vmatprep.subr.mxu0 0.0
    %2457 = vmatpush2.msra.mxu0 0.0
    %2458 = vmatprep.subr.mxu0 0.0
    %2459 = vmatpush2.msra.mxu0 0.0
    %2460 = vmatprep.subr.mxu0 0.0
    %2461 = vmatpush2.msra.mxu0 0.0
    %2462 = vmatprep.subr.mxu0 0.0
    %2463 = vmatpush2.msra.mxu0 0.0
    %2464 = vmatprep.subr.mxu0 0.0
    %2465 = vmatpush2.msra.mxu0 0.0
    %2466 = vmatprep.subr.mxu0 0.0
    %2467 = vmatpush2.msra.mxu0 0.0
    %2468 = vmatprep.subr.mxu0 0.0
    %2469 = vmatpush2.msra.mxu0 0.0
    %2470 = vmatprep.subr.mxu0 0.0
    %2471 = vmatpush2.msra.mxu0 0.0
    %2472 = vmatprep.subr.mxu0 0.0
    %2473 = vmatpush2.msra.mxu0 0.0
    %2474 = vmatprep.subr.mxu0 0.0
    %2475 = vmatpush2.msra.mxu0 0.0
    %2476 = vmatprep.subr.mxu0 0.0
    %2477 = vmatpush2.msra.mxu0 0.0
    %2478 = vmatprep.subr.mxu0 0.0
    %2479 = vmatpush2.msra.mxu0 0.0
    %2480 = vmatprep.subr.mxu0 0.0
    %2481 = vmatpush2.msra.mxu0 0.0
    %2482 = vmatprep.subr.mxu0 0.0
    %2483 = vmatpush2.msra.mxu0 0.0
    %2484 = vmatprep.subr.mxu0 0.0
    %2485 = vmatpush2.msra.mxu0 0.0
    %2486 = vmatprep.mubr.f32.mxu0 0.0
    %2487 = vmatmul.mubr.f32.gmra.mxu0 %v2417
    %v2488 = vpop.f32.mrf.mxu0
    %v2489 = vadd.f32 %v2415, %v2488
    %v2490 = vpop.f32.mrf.mxu0
    %2491 = vmatprep.mubr.f32.mxu0 0.0
    %2492 = vmatmul.mubr.f32.gmra.mxu0 %v2420
    %v2493 = vpop.f32.mrf.mxu0
    %v2494 = vadd.f32 %v2415, %v2493
    %v2495 = vpop.f32.mrf.mxu0
    %2496 = vdwg.mxu0
    %v2497 = vmax.f32 %v2489, 0.0
    %v2498 = vmax.f32 %v2494, 0.0
    %v2499 = vlaneseq
    %v2500 = vshrl.u32 %v2499, 7
    %v2501 = vsub.s32 0, %v2500
    %v2502 = vrot.slane %v1682, %v2501
    %v2504 = vsel %vm1551, %v2497, 0
    %v2507 = vsel %vm1551, %v2498, 0
    %2509 = vmatprep.subr.mxu0 0.0
    %2510 = vmatpush1.msra.mxu0 0.0
    %2511 = vmatprep.subr.mxu0 0.0
    %2512 = vmatpush1.msra.mxu0 0.0
    %2513 = vmatprep.subr.mxu0 0.0
    %2514 = vmatpush1.msra.mxu0 0.0
    %2515 = vmatprep.subr.mxu0 0.0
    %2516 = vmatpush1.msra.mxu0 0.0
    %2517 = vmatprep.subr.mxu0 0.0
    %2518 = vmatpush1.msra.mxu0 0.0
    %2519 = vmatprep.subr.mxu0 0.0
    %2520 = vmatpush1.msra.mxu0 0.0
    %2521 = vmatprep.subr.mxu0 0.0
    %2522 = vmatpush1.msra.mxu0 0.0
    %2523 = vmatprep.subr.mxu0 0.0
    %2524 = vmatpush1.msra.mxu0 0.0
    %2525 = vmatprep.subr.mxu0 0.0
    %2526 = vmatpush1.msra.mxu0 %v1696
    %2527 = vmatprep.subr.mxu0 0.0
    %2528 = vmatpush1.msra.mxu0 %v1695
    %2529 = vmatprep.subr.mxu0 0.0
    %2530 = vmatpush1.msra.mxu0 %v1694
    %2531 = vmatprep.subr.mxu0 0.0
    %2532 = vmatpush1.msra.mxu0 %v1693
    %2533 = vmatprep.subr.mxu0 0.0
    %2534 = vmatpush1.msra.mxu0 %v1692
    %2535 = vmatprep.subr.mxu0 0.0
    %2536 = vmatpush1.msra.mxu0 %v1691
    %2537 = vmatprep.subr.mxu0 0.0
    %2538 = vmatpush1.msra.mxu0 %v1690
    %2539 = vmatprep.subr.mxu0 0.0
    %2540 = vmatpush1.msra.mxu0 %v1689
    %2541 = vmatprep.subr.mxu0 0.0
    %2542 = vmatpush2.msra.mxu0 0.0
    %2543 = vmatprep.subr.mxu0 0.0
    %2544 = vmatpush2.msra.mxu0 0.0
    %2545 = vmatprep.subr.mxu0 0.0
    %2546 = vmatpush2.msra.mxu0 0.0
    %2547 = vmatprep.subr.mxu0 0.0
    %2548 = vmatpush2.msra.mxu0 0.0
    %2549 = vmatprep.subr.mxu0 0.0
    %2550 = vmatpush2.msra.mxu0 0.0
    %2551 = vmatprep.subr.mxu0 0.0
    %2552 = vmatpush2.msra.mxu0 0.0
    %2553 = vmatprep.subr.mxu0 0.0
    %2554 = vmatpush2.msra.mxu0 0.0
    %2555 = vmatprep.subr.mxu0 0.0
    %2556 = vmatpush2.msra.mxu0 0.0
    %2557 = vmatprep.subr.mxu0 0.0
    %2558 = vmatpush2.msra.mxu0 0.0
    %2559 = vmatprep.subr.mxu0 0.0
    %2560 = vmatpush2.msra.mxu0 0.0
    %2561 = vmatprep.subr.mxu0 0.0
    %2562 = vmatpush2.msra.mxu0 0.0
    %2563 = vmatprep.subr.mxu0 0.0
    %2564 = vmatpush2.msra.mxu0 0.0
    %2565 = vmatprep.subr.mxu0 0.0
    %2566 = vmatpush2.msra.mxu0 0.0
    %2567 = vmatprep.subr.mxu0 0.0
    %2568 = vmatpush2.msra.mxu0 0.0
    %2569 = vmatprep.subr.mxu0 0.0
    %2570 = vmatpush2.msra.mxu0 0.0
    %2571 = vmatprep.subr.mxu0 0.0
    %2572 = vmatpush2.msra.mxu0 0.0
    %2573 = vmatprep.mubr.f32.mxu0 0.0
    %2574 = vmatmul.mubr.f32.gmra.mxu0 %v2504
    %v2575 = vpop.f32.mrf.mxu0
    %v2576 = vadd.f32 %v2502, %v2575
    %v2577 = vpop.f32.mrf.mxu0
    %2578 = vmatprep.mubr.f32.mxu0 0.0
    %2579 = vmatmul.mubr.f32.gmra.mxu0 %v2507
    %v2580 = vpop.f32.mrf.mxu0
    %v2581 = vadd.f32 %v2502, %v2580
    %v2582 = vpop.f32.mrf.mxu0
    %2583 = vdwg.mxu0
    %v2584 = vadd.f32 %v2576, %v2410
    %v2585 = vadd.f32 %v2581, %v2411
    %v2586 = vsel %vm667, %v2584, 0.0
    %2587 = vadd.xlane.f32.xlu0 %v2586
    %v2588 = vpop.xlane.xlu0 %2587
    %v2589 = vsel %vm667, %v2585, 0.0
    %2590 = vadd.xlane.f32.xlu0 %v2589
    %v2591 = vpop.xlane.xlu0 %2590
    %v2592 = vmul.f32 %v2588, %v674
    %v2593 = vmul.f32 %v2591, %v674
    %v2594 = vsub.f32 %v2584, %v2592
    %v2595 = vsub.f32 %v2585, %v2593
    %v2596 = vmul.f32 %v2594, %v2594
    %v2597 = vmul.f32 %v2595, %v2595
    %v2598 = vsel %vm667, %v2596, 0.0
    %2599 = vadd.xlane.f32.xlu0 %v2598
    %v2600 = vpop.xlane.xlu0 %2599
    %v2601 = vsel %vm667, %v2597, 0.0
    %2602 = vadd.xlane.f32.xlu0 %v2601
    %v2603 = vpop.xlane.xlu0 %2602
    %v2604 = vmul.f32 %v2600, %v674
    %v2605 = vmul.f32 %v2603, %v674
    %v2606 = vadd.f32 %v2604, 1e-06
    %v2607 = vadd.f32 %v2605, 1e-06
    %v2608 = vrsqrt.pop %v2606
    %v2609 = vrsqrt.pop %v2607
    %v2610 = vmul.f32 %v2594, %v2608
    %v2611 = vmul.f32 %v2595, %v2609
    %v2612 = vlaneseq
    %v2613 = vshrl.u32 %v2612, 7
    %v2614 = vsub.s32 0, %v2613
    %v2615 = vrot.slane %v1683, %v2614
    %v2616 = vmul.f32 %v2610, %v2615
    %v2617 = vmul.f32 %v2611, %v2615
    %v2618 = vlaneseq
    %v2619 = vshrl.u32 %v2618, 7
    %v2620 = vsub.s32 0, %v2619
    %v2621 = vrot.slane %v1684, %v2620
    %v2622 = vadd.f32 %v2616, %v2621
    %v2623 = vadd.f32 %v2617, %v2621
    %2624 = vst.msk [vmem:[#allocation5] sm:$0xff] %vm667, %v2622
    %2625 = vst.msk [vmem:[#allocation5 + $0x8] sm:$0xff] %vm667, %v2623
    // Predicated region
    $region18: #{encoder_forward.1} parent=1 // pred_check
      _
    $region19: #{encoder_forward.1} parent=1 // pred_check_branch
      %2627 = sbr.rel (0) target = $region21
    $region20: #{encoder_forward.1} parent=1 // pred_region
      %s2629 = ssub.s32 256, 256
      %2630 = vsyncadd [#allocation4], %s2629
      %s2631 = sshll.u32 [#allocation5], 4
      %s2632 = int_to_ptr.vmem [resolvable:$true] %s2631
      %2637 = dma.vmem_to_hbm [thread:$0]  %s2632, 256, %s3, [#allocation4], 128, 128, 8
    $region21: #{encoder_forward.1} parent=1 // pred_fallthru
      _
    // Predicated region
    $region22: #{encoder_forward.1} parent=1 // pred_check
      _
    $region23: #{encoder_forward.1} parent=1 // pred_check_branch
      %2639 = sbr.rel (0) target = $region25
    $region24: #{encoder_forward.1} parent=1 // pred_region
      %2640 = dma.done [#allocation4], 256
    $region25: #{encoder_forward.1} parent=1 // pred_fallthru
      _
    %2641 = vsyncpa [#allocation3], 1
    %2642 = vsyncpa [#allocation4], 1

</llo_original>
